<compile_context>
chip_gen: v5e
topology: v5e:2x2
jax: 0.10.0
libtpu: 0.0.40
codegen_flags: <defaults>
</compile_context>

<pallas_src>
import functools

import jax
import jax.numpy as jnp
from jax.experimental import pallas as pl
from jax.experimental.pallas import tpu as pltpu

DIM = 64
OUT_PAD = 128            # lane-dense padded width for the final [B, 1] output
NEG_SLOPE = 0.01         # nn.LeakyReLU default


def _leaky_relu(x):
    return jnp.where(x > 0, x, NEG_SLOPE * x)


def _vmem_specs(n):
    return [pl.BlockSpec(memory_space=pltpu.MemorySpace.VMEM) for _ in range(n)]


# ----------------------------------------------------------------------------
# Kernel 1: edge network  Linear(4,128) -> LeakyReLU -> Linear(128, DIM*DIM)
#           (computed once; constant across the 12 conv steps; stored in bf16)
# ----------------------------------------------------------------------------
def _edge_net_kernel(ea_ref, w1_ref, b1_ref, w2_ref, b2_ref, o_ref):
    eh = _leaky_relu(
        jnp.dot(ea_ref[...], w1_ref[...], preferred_element_type=jnp.float32)
        + b1_ref[...])
    we = jnp.dot(eh.astype(jnp.bfloat16), w2_ref[...],
                 preferred_element_type=jnp.float32) + b2_ref[...]
    o_ref[...] = we.astype(o_ref.dtype)


# ----------------------------------------------------------------------------
# Kernel 2: fully fused forward
#   lin0 -> num_conv_steps x (NNConv + LeakyReLU + GRU) -> Set2Set -> lin3
# ----------------------------------------------------------------------------
def _mpnn_fused_kernel(x_ref, we_ref, src_oh_ref, dst_ohT_ref, invcnt_ref,
                       seg_oh_ref, seg_ohT_ref,
                       lin0_w_ref, lin0_b_ref, conv_root_ref, conv_bias_ref,
                       gru_w_ref, gru_b_ref, lstm_w_ref, lstm_b_ref,
                       lin3_w_ref, lin3_b_ref,
                       out_ref,
                       h_s, qstar_s, hs_s, cs_s,
                       *, num_conv_steps, set2set_steps):
    f32 = jnp.float32
    bf16 = jnp.bfloat16
    n_edges = we_ref.shape[0]

    # -------- lin0 + LeakyReLU: initial node state (out == GRU hidden) --------
    h_s[...] = _leaky_relu(
        jnp.dot(x_ref[...], lin0_w_ref[...], preferred_element_type=f32)
        + lin0_b_ref[...])

    # -------- num_conv_steps x (NNConv(mean) + LeakyReLU + GRU cell) --------
    @pl.loop(0, num_conv_steps)
    def _conv_step(step):
        out = h_s[...]                                   # [N, DIM] f32
        out_b = out.astype(bf16)
        # gather source-node features on the MXU: xsrc[e, :] = out[src[e], :]
        xsrc = jnp.dot(src_oh_ref[...], out_b,
                       preferred_element_type=f32)                        # [E, DIM]
        # per-edge message: batched MXU contraction 'ei,eio->eo'
        msg = jax.lax.dot_general(
            xsrc.astype(bf16)[:, None, :], we_ref[...],
            dimension_numbers=(((2,), (1,)), ((0,), (0,))),
            preferred_element_type=f32).reshape(n_edges, DIM)             # [E, DIM]
        # mean-scatter to destination nodes + root transform + bias + LeakyReLU
        agg = jnp.dot(dst_ohT_ref[...], msg.astype(bf16),
                      preferred_element_type=f32) * invcnt_ref[...]       # [N, DIM]
        m = _leaky_relu(agg
                        + jnp.dot(out, conv_root_ref[...],
                                  preferred_element_type=f32)
                        + conv_bias_ref[...])
        # GRU cell: one MXU pass -> [gi | gh] via block-diag(W_ih, W_hh)
        g = jnp.dot(jnp.concatenate([m, out], axis=-1), gru_w_ref[...],
                    preferred_element_type=f32) + gru_b_ref[...]          # [N, 6*DIM]
        gi = g[:, :3 * DIM]
        gh = g[:, 3 * DIM:]
        r = jax.nn.sigmoid(gi[:, :DIM] + gh[:, :DIM])
        z = jax.nn.sigmoid(gi[:, DIM:2 * DIM] + gh[:, DIM:2 * DIM])
        cand = jnp.tanh(gi[:, 2 * DIM:] + r * gh[:, 2 * DIM:])
        h_s[...] = (1.0 - z) * cand + z * out

    # -------- Set2Set readout (set2set_steps iterations) --------
    qstar_s[...] = jnp.zeros_like(qstar_s)
    hs_s[...] = jnp.zeros_like(hs_s)
    cs_s[...] = jnp.zeros_like(cs_s)

    @pl.loop(0, set2set_steps)
    def _s2s_step(step):
        xf = h_s[...]                                    # final node embeddings [N, DIM]
        seg_oh = seg_oh_ref[...]                         # [N, B] f32
        seg_ohT = seg_ohT_ref[...]                       # [B, N] f32
        # LSTM cell: one MXU pass over [q_star | h] @ [W_ih ; W_hh]
        g = jnp.dot(jnp.concatenate([qstar_s[...], hs_s[...]], axis=-1),
                    lstm_w_ref[...], preferred_element_type=f32) + lstm_b_ref[...]
        i_g = jax.nn.sigmoid(g[:, :DIM])
        f_g = jax.nn.sigmoid(g[:, DIM:2 * DIM])
        g_g = jnp.tanh(g[:, 2 * DIM:3 * DIM])
        o_g = jax.nn.sigmoid(g[:, 3 * DIM:])
        c_new = f_g * cs_s[...] + i_g * g_g
        q = o_g * jnp.tanh(c_new)                        # [B, DIM]
        hs_s[...] = q
        cs_s[...] = c_new
        # segment-softmax attention + weighted readout (MXU contractions)
        qn = jnp.dot(seg_oh, q, preferred_element_type=f32)        # [N, DIM] = q[batch]
        e_lg = jnp.sum(xf * qn, axis=-1, keepdims=True)            # [N, 1]
        e_msk = jnp.where(seg_oh > 0, e_lg, -1e30)                 # [N, B]
        mseg = jnp.max(e_msk, axis=0, keepdims=True)               # [1, B] per-graph max
        mn = jnp.sum(seg_oh * mseg, axis=1, keepdims=True)         # [N, 1] gathered max
        a = jnp.exp(e_lg - mn)                                     # [N, 1] unnormalized
        # softmax normalization folded into the readout: r_b = (sum a x)/(sum a)
        num = jnp.dot(seg_ohT, a * xf, preferred_element_type=f32)  # [B, DIM]
        den = jnp.dot(seg_ohT, a, preferred_element_type=f32)       # [B, 1]
        r_rd = num / jnp.maximum(den, 1e-20)                        # guard empty graphs
        qstar_s[...] = jnp.concatenate([q, r_rd], axis=-1)

    # -------- lin3 (output padded to 128 lanes; sliced outside) --------
    out_ref[...] = (jnp.dot(qstar_s[...], lin3_w_ref[...],
                            preferred_element_type=f32) + lin3_b_ref[...])


# ----------------------------------------------------------------------------
# Parameters (deterministic, synthetic)
# ----------------------------------------------------------------------------
def init_params(key, num_feat=14, num_vec=3, dim=DIM, num_out_per_mol=1):
    keys = jax.random.split(key, 18)
    s = 0.1

    def rnd(k, shape, scale=s):
        return (jax.random.normal(k, shape, jnp.float32) * scale).astype(jnp.float32)

    p = {}
    p["lin0_w"] = rnd(keys[0], (num_feat + num_vec, dim))
    p["lin0_b"] = rnd(keys[1], (dim,))
    # edge network: Linear(4,128) -> LeakyReLU -> Linear(128, dim*dim)
    p["edge_w1"] = rnd(keys[2], (4, 128))
    p["edge_b1"] = rnd(keys[3], (128,))
    p["edge_w2"] = rnd(keys[4], (128, dim * dim), scale=0.01)
    p["edge_b2"] = rnd(keys[5], (dim * dim,), scale=0.01)
    # NNConv root weight + bias
    p["conv_root"] = rnd(keys[6], (dim, dim))
    p["conv_bias"] = rnd(keys[7], (dim,))
    # GRU (1 layer), gates ordered [r, z, n] as in PyTorch
    p["gru_wih"] = rnd(keys[8], (dim, 3 * dim))
    p["gru_whh"] = rnd(keys[9], (dim, 3 * dim))
    p["gru_bih"] = rnd(keys[10], (3 * dim,))
    p["gru_bhh"] = rnd(keys[11], (3 * dim,))
    # Set2Set LSTM (input 2*dim, hidden dim), gates ordered [i, f, g, o]
    p["s2s_wih"] = rnd(keys[12], (2 * dim, 4 * dim))
    p["s2s_whh"] = rnd(keys[13], (dim, 4 * dim))
    p["s2s_bih"] = rnd(keys[14], (4 * dim,))
    p["s2s_bhh"] = rnd(keys[15], (4 * dim,))
    # lin3: Linear(2*dim, num_out_per_mol)
    p["lin3_w"] = rnd(keys[16], (2 * dim, num_out_per_mol))
    p["lin3_b"] = rnd(keys[17], (num_out_per_mol,))
    return p


# ----------------------------------------------------------------------------
# Forward pass (dropout p=0 / do_dropout=False -> identity, omitted)
# ----------------------------------------------------------------------------
def mpnnet_forward(params, x, edge_index, edge_attr, batch, num_graphs,
                   num_conv_steps=12, set2set_steps=3):
    n = x.shape[0]
    e = edge_attr.shape[0]
    bf16 = jnp.bfloat16

    # ---- edge network (one launch; per-edge weights constant across steps) ----
    we_flat = pl.pallas_call(
        _edge_net_kernel,
        out_shape=jax.ShapeDtypeStruct((e, DIM * DIM), bf16),
        in_specs=_vmem_specs(5),
        out_specs=pl.BlockSpec(memory_space=pltpu.MemorySpace.VMEM),
    )(edge_attr,
      params["edge_w1"], params["edge_b1"].reshape(1, -1),
      params["edge_w2"].astype(bf16), params["edge_b2"].reshape(1, -1))
    we = we_flat.reshape(e, DIM, DIM)                                 # [E, in, out] bf16

    # ---- gather / scatter operators as one-hot matrices (bf16 for the big ones) ----
    src, dst = edge_index[0], edge_index[1]
    node_ids = jnp.arange(n)
    src_oh = (src[:, None] == node_ids[None, :]).astype(bf16)         # [E, N]
    dst_oh = (dst[:, None] == node_ids[None, :]).astype(jnp.float32)  # [E, N]
    counts = jnp.sum(dst_oh, axis=0)                                  # in-degree
    invcnt = jnp.where(counts > 0, 1.0 / jnp.maximum(counts, 1.0), 0.0)[:, None]
    dst_ohT = dst_oh.T.astype(bf16)                                   # [N, E]

    seg_oh = (batch[:, None] == jnp.arange(num_graphs)[None, :]).astype(jnp.float32)
    seg_ohT = seg_oh.T

    # ---- fold GRU / LSTM weight pairs into single-MXU-pass layouts ----
    gru_w_bd = jnp.zeros((2 * DIM, 6 * DIM), jnp.float32)
    gru_w_bd = gru_w_bd.at[:DIM, :3 * DIM].set(params["gru_wih"])
    gru_w_bd = gru_w_bd.at[DIM:, 3 * DIM:].set(params["gru_whh"])
    gru_b = jnp.concatenate([params["gru_bih"], params["gru_bhh"]])[None, :]   # [1, 6*DIM]

    lstm_w = jnp.concatenate([params["s2s_wih"], params["s2s_whh"]], axis=0)   # [3*DIM, 4*DIM]
    lstm_b = (params["s2s_bih"] + params["s2s_bhh"])[None, :]                  # [1, 4*DIM]

    # ---- lane-dense padded lin3 (avoids masked sub-128 stores) ----
    num_out = params["lin3_w"].shape[1]
    lin3_w = jnp.zeros((2 * DIM, OUT_PAD), jnp.float32).at[:, :num_out].set(params["lin3_w"])
    lin3_b = jnp.zeros((1, OUT_PAD), jnp.float32).at[0, :num_out].set(params["lin3_b"])

    out_pad = pl.pallas_call(
        functools.partial(_mpnn_fused_kernel,
                          num_conv_steps=num_conv_steps,
                          set2set_steps=set2set_steps),
        out_shape=jax.ShapeDtypeStruct((num_graphs, OUT_PAD), jnp.float32),
        in_specs=_vmem_specs(17),
        out_specs=pl.BlockSpec(memory_space=pltpu.MemorySpace.VMEM),
        scratch_shapes=[pltpu.VMEM((n, DIM), jnp.float32),                # node state (out == h)
                        pltpu.VMEM((num_graphs, 2 * DIM), jnp.float32),   # q_star
                        pltpu.VMEM((num_graphs, DIM), jnp.float32),       # LSTM h
                        pltpu.VMEM((num_graphs, DIM), jnp.float32)],      # LSTM c
    )(x, we, src_oh, dst_ohT, invcnt, seg_oh, seg_ohT,
      params["lin0_w"], params["lin0_b"].reshape(1, -1),
      params["conv_root"], params["conv_bias"].reshape(1, -1),
      gru_w_bd, gru_b, lstm_w, lstm_b, lin3_w, lin3_b)

    # NOTE: bond2out is defined in __init__ but never used in forward(); omitted.
    return out_pad[:, :num_out]


# ----------------------------------------------------------------------------
if __name__ == "__main__":
    key = jax.random.PRNGKey(0)
    kx, ke, kp, kei = jax.random.split(key, 4)

    N, E, B = 8, 16, 2
    num_feat, num_vec = 14, 3

    x = jax.random.normal(kx, (N, num_feat + num_vec), jnp.float32)
    edge_attr = jax.random.normal(ke, (E, 4), jnp.float32)

    # edges stay within each graph: nodes 0..3 -> graph 0, nodes 4..7 -> graph 1
    src0 = jax.random.randint(kei, (E // 2,), 0, 4)
    dst0 = jax.random.randint(jax.random.fold_in(kei, 1), (E // 2,), 0, 4)
    src1 = jax.random.randint(jax.random.fold_in(kei, 2), (E // 2,), 4, 8)
    dst1 = jax.random.randint(jax.random.fold_in(kei, 3), (E // 2,), 4, 8)
    edge_index = jnp.stack([jnp.concatenate([src0, src1]),
                            jnp.concatenate([dst0, dst1])]).astype(jnp.int32)
    batch = jnp.array([0, 0, 0, 0, 1, 1, 1, 1], jnp.int32)

    params = init_params(kp)

    fwd = jax.jit(mpnnet_forward,
                  static_argnames=("num_graphs", "num_conv_steps", "set2set_steps"))
    per_mol = fwd(params, x, edge_index, edge_attr, batch, num_graphs=B)
    per_mol = jax.block_until_ready(per_mol)
    assert per_mol.shape == (B, 1)
    assert bool(jnp.all(jnp.isfinite(per_mol)))
    print("KERNEL_OK")
</pallas_src>

<mosaic_0001>
module attributes {stable_mosaic.version = 11 : i64} {
  func.func @_edge_net_kernel(%arg0: memref<16x4xf32, #tpu.memory_space<vmem>>, %arg1: memref<4x128xf32, #tpu.memory_space<vmem>>, %arg2: memref<1x128xf32, #tpu.memory_space<vmem>>, %arg3: memref<128x4096xbf16, #tpu.memory_space<vmem>>, %arg4: memref<1x4096xf32, #tpu.memory_space<vmem>>, %arg5: memref<16x4096xbf16, #tpu.memory_space<vmem>>) attributes {dimension_semantics = [], scalar_prefetch = 0 : i64, scratch_operands = 0 : i64, tpu.core_type = #tpu.core_type<tc>} {
    %c0 = arith.constant 0 : index
    %c0_0 = arith.constant 0 : index
    %0 = vector.load %arg0[%c0, %c0_0] : memref<16x4xf32, #tpu.memory_space<vmem>>, vector<16x4xf32>
    %c0_1 = arith.constant 0 : index
    %c0_2 = arith.constant 0 : index
    %1 = vector.load %arg1[%c0_1, %c0_2] : memref<4x128xf32, #tpu.memory_space<vmem>>, vector<4x128xf32>
    %cst = arith.constant dense<0.000000e+00> : vector<16x128xf32>
    %2 = tpu.matmul %0, %1, %cst {dimension_numbers = #tpu.dot_dimension_numbers<[1], [0], [0], [1], [0, 0, 1, 1], [], []>} : vector<16x4xf32>, vector<4x128xf32>, vector<16x128xf32> -> vector<16x128xf32>
    %c0_3 = arith.constant 0 : index
    %c0_4 = arith.constant 0 : index
    %3 = vector.load %arg2[%c0_3, %c0_4] : memref<1x128xf32, #tpu.memory_space<vmem>>, vector<1x128xf32>
    %4 = vector.broadcast %3 : vector<1x128xf32> to vector<16x128xf32>
    %5 = arith.addf %2, %4 : vector<16x128xf32>
    %cst_5 = arith.constant 0.000000e+00 : f32
    %6 = vector.broadcast %cst_5 : f32 to vector<16x128xf32>
    %7 = arith.cmpf ogt, %5, %6 : vector<16x128xf32>
    %cst_6 = arith.constant 0.00999999977 : f32
    %8 = vector.broadcast %cst_6 : f32 to vector<16x128xf32>
    %9 = arith.mulf %8, %5 : vector<16x128xf32>
    %10 = arith.select %7, %5, %9 : vector<16x128xi1>, vector<16x128xf32>
    %11 = arith.truncf %10 : vector<16x128xf32> to vector<16x128xbf16>
    %c0_7 = arith.constant 0 : index
    %c0_8 = arith.constant 0 : index
    %12 = vector.load %arg3[%c0_7, %c0_8] : memref<128x4096xbf16, #tpu.memory_space<vmem>>, vector<128x4096xbf16>
    %cst_9 = arith.constant dense<0.000000e+00> : vector<16x4096xf32>
    %13 = tpu.matmul %11, %12, %cst_9 {dimension_numbers = #tpu.dot_dimension_numbers<[1], [0], [0], [1], [0, 0, 1, 1], [], []>} : vector<16x128xbf16>, vector<128x4096xbf16>, vector<16x4096xf32> -> vector<16x4096xf32>
    %c0_10 = arith.constant 0 : index
    %c0_11 = arith.constant 0 : index
    %14 = vector.load %arg4[%c0_10, %c0_11] : memref<1x4096xf32, #tpu.memory_space<vmem>>, vector<1x4096xf32>
    %15 = vector.broadcast %14 : vector<1x4096xf32> to vector<16x4096xf32>
    %16 = arith.addf %13, %15 : vector<16x4096xf32>
    %17 = arith.truncf %16 : vector<16x4096xf32> to vector<16x4096xbf16>
    %c0_12 = arith.constant 0 : index
    %c0_13 = arith.constant 0 : index
    %18 = vector.load %arg5[%c0_12, %c0_13] : memref<16x4096xbf16, #tpu.memory_space<vmem>>, vector<16x4096xbf16>
    tpu.vector_store %arg5[%c0_12, %c0_13], %17 {strides = array<i32>} : memref<16x4096xbf16, #tpu.memory_space<vmem>>, vector<16x4096xbf16>,
    return
  }
}

module attributes {stable_mosaic.version = 11 : i64} {
  func.func @_mpnn_fused_kernel(%arg0: memref<8x17xf32, #tpu.memory_space<vmem>>, %arg1: memref<16x64x64xbf16, #tpu.memory_space<vmem>>, %arg2: memref<16x8xbf16, #tpu.memory_space<vmem>>, %arg3: memref<8x16xbf16, #tpu.memory_space<vmem>>, %arg4: memref<8x1xf32, #tpu.memory_space<vmem>>, %arg5: memref<8x2xf32, #tpu.memory_space<vmem>>, %arg6: memref<2x8xf32, #tpu.memory_space<vmem>>, %arg7: memref<17x64xf32, #tpu.memory_space<vmem>>, %arg8: memref<1x64xf32, #tpu.memory_space<vmem>>, %arg9: memref<64x64xf32, #tpu.memory_space<vmem>>, %arg10: memref<1x64xf32, #tpu.memory_space<vmem>>, %arg11: memref<128x384xf32, #tpu.memory_space<vmem>>, %arg12: memref<1x384xf32, #tpu.memory_space<vmem>>, %arg13: memref<192x256xf32, #tpu.memory_space<vmem>>, %arg14: memref<1x256xf32, #tpu.memory_space<vmem>>, %arg15: memref<128x128xf32, #tpu.memory_space<vmem>>, %arg16: memref<1x128xf32, #tpu.memory_space<vmem>>, %arg17: memref<2x128xf32, #tpu.memory_space<vmem>>, %arg18: memref<8x64xf32, #tpu.memory_space<vmem>>, %arg19: memref<2x128xf32, #tpu.memory_space<vmem>>, %arg20: memref<2x64xf32, #tpu.memory_space<vmem>>, %arg21: memref<2x64xf32, #tpu.memory_space<vmem>>) attributes {dimension_semantics = [], scalar_prefetch = 0 : i64, scratch_operands = 4 : i64, tpu.core_type = #tpu.core_type<tc>} {
    %c0 = arith.constant 0 : index
    %c0_0 = arith.constant 0 : index
    %0 = vector.load %arg0[%c0, %c0_0] : memref<8x17xf32, #tpu.memory_space<vmem>>, vector<8x17xf32>
    %c0_1 = arith.constant 0 : index
    %c0_2 = arith.constant 0 : index
    %1 = vector.load %arg7[%c0_1, %c0_2] : memref<17x64xf32, #tpu.memory_space<vmem>>, vector<17x64xf32>
    %cst = arith.constant dense<0.000000e+00> : vector<8x64xf32>
    %2 = tpu.matmul %0, %1, %cst {dimension_numbers = #tpu.dot_dimension_numbers<[1], [0], [0], [1], [0, 0, 1, 1], [], []>} : vector<8x17xf32>, vector<17x64xf32>, vector<8x64xf32> -> vector<8x64xf32>
    %c0_3 = arith.constant 0 : index
    %c0_4 = arith.constant 0 : index
    %3 = vector.load %arg8[%c0_3, %c0_4] : memref<1x64xf32, #tpu.memory_space<vmem>>, vector<1x64xf32>
    %4 = vector.broadcast %3 : vector<1x64xf32> to vector<8x64xf32>
    %5 = arith.addf %2, %4 : vector<8x64xf32>
    %cst_5 = arith.constant 0.000000e+00 : f32
    %6 = vector.broadcast %cst_5 : f32 to vector<8x64xf32>
    %7 = arith.cmpf ogt, %5, %6 : vector<8x64xf32>
    %cst_6 = arith.constant 0.00999999977 : f32
    %8 = vector.broadcast %cst_6 : f32 to vector<8x64xf32>
    %9 = arith.mulf %8, %5 : vector<8x64xf32>
    %10 = arith.select %7, %5, %9 : vector<8x64xi1>, vector<8x64xf32>
    %c0_7 = arith.constant 0 : index
    %c0_8 = arith.constant 0 : index
    %11 = vector.load %arg18[%c0_7, %c0_8] : memref<8x64xf32, #tpu.memory_space<vmem>>, vector<8x64xf32>
    tpu.vector_store %arg18[%c0_7, %c0_8], %10 {strides = array<i32>} : memref<8x64xf32, #tpu.memory_space<vmem>>, vector<8x64xf32>,
    %c0_i32 = arith.constant 0 : i32
    %c12_i32 = arith.constant 12 : i32
    %12 = arith.addi %c0_i32, %c12_i32 : i32
    %c1_i32 = arith.constant 1 : i32
    scf.for %arg22 = %c0_i32 to %12 step %c1_i32  : i32 {
      %c0_29 = arith.constant 0 : index
      %c0_30 = arith.constant 0 : index
      %27 = vector.load %arg18[%c0_29, %c0_30] : memref<8x64xf32, #tpu.memory_space<vmem>>, vector<8x64xf32>
      %28 = arith.truncf %27 : vector<8x64xf32> to vector<8x64xbf16>
      %c0_31 = arith.constant 0 : index
      %c0_32 = arith.constant 0 : index
      %29 = vector.load %arg2[%c0_31, %c0_32] : memref<16x8xbf16, #tpu.memory_space<vmem>>, vector<16x8xbf16>
      %cst_33 = arith.constant dense<0.000000e+00> : vector<16x64xf32>
      %30 = tpu.matmul %29, %28, %cst_33 {dimension_numbers = #tpu.dot_dimension_numbers<[1], [0], [0], [1], [0, 0, 1, 1], [], []>} : vector<16x8xbf16>, vector<8x64xbf16>, vector<16x64xf32> -> vector<16x64xf32>
      %31 = arith.truncf %30 : vector<16x64xf32> to vector<16x64xbf16>
      %32 = vector.shape_cast %31 : vector<16x64xbf16> to vector<16x1x64xbf16>
      %c0_34 = arith.constant 0 : index
      %c0_35 = arith.constant 0 : index
      %c0_36 = arith.constant 0 : index
      %33 = vector.load %arg1[%c0_34, %c0_35, %c0_36] : memref<16x64x64xbf16, #tpu.memory_space<vmem>>, vector<16x64x64xbf16>
      %cst_37 = arith.constant dense<0.000000e+00> : vector<16x1x64xf32>
      %34 = tpu.matmul %32, %33, %cst_37 {dimension_numbers = #tpu.dot_dimension_numbers<[2], [1], [1], [2], [0, 0, 0, 1, 1, 2], [0], [0]>} : vector<16x1x64xbf16>, vector<16x64x64xbf16>, vector<16x1x64xf32> -> vector<16x1x64xf32>
      %35 = vector.shape_cast %34 : vector<16x1x64xf32> to vector<16x64xf32>
      %c0_38 = arith.constant 0 : index
      %c0_39 = arith.constant 0 : index
      %36 = vector.load %arg3[%c0_38, %c0_39] : memref<8x16xbf16, #tpu.memory_space<vmem>>, vector<8x16xbf16>
      %37 = arith.truncf %35 : vector<16x64xf32> to vector<16x64xbf16>
      %cst_40 = arith.constant dense<0.000000e+00> : vector<8x64xf32>
      %38 = tpu.matmul %36, %37, %cst_40 {dimension_numbers = #tpu.dot_dimension_numbers<[1], [0], [0], [1], [0, 0, 1, 1], [], []>} : vector<8x16xbf16>, vector<16x64xbf16>, vector<8x64xf32> -> vector<8x64xf32>
      %c0_41 = arith.constant 0 : index
      %c0_42 = arith.constant 0 : index
      %39 = vector.load %arg4[%c0_41, %c0_42] : memref<8x1xf32, #tpu.memory_space<vmem>>, vector<8x1xf32>
      %40 = vector.broadcast %39 : vector<8x1xf32> to vector<8x64xf32>
      %41 = arith.mulf %38, %40 : vector<8x64xf32>
      %c0_43 = arith.constant 0 : index
      %c0_44 = arith.constant 0 : index
      %42 = vector.load %arg9[%c0_43, %c0_44] : memref<64x64xf32, #tpu.memory_space<vmem>>, vector<64x64xf32>
      %cst_45 = arith.constant dense<0.000000e+00> : vector<8x64xf32>
      %43 = tpu.matmul %27, %42, %cst_45 {dimension_numbers = #tpu.dot_dimension_numbers<[1], [0], [0], [1], [0, 0, 1, 1], [], []>} : vector<8x64xf32>, vector<64x64xf32>, vector<8x64xf32> -> vector<8x64xf32>
      %44 = arith.addf %41, %43 : vector<8x64xf32>
      %c0_46 = arith.constant 0 : index
      %c0_47 = arith.constant 0 : index
      %45 = vector.load %arg10[%c0_46, %c0_47] : memref<1x64xf32, #tpu.memory_space<vmem>>, vector<1x64xf32>
      %46 = vector.broadcast %45 : vector<1x64xf32> to vector<8x64xf32>
      %47 = arith.addf %44, %46 : vector<8x64xf32>
      %cst_48 = arith.constant 0.000000e+00 : f32
      %48 = vector.broadcast %cst_48 : f32 to vector<8x64xf32>
      %49 = arith.cmpf ogt, %47, %48 : vector<8x64xf32>
      %cst_49 = arith.constant 0.00999999977 : f32
      %50 = vector.broadcast %cst_49 : f32 to vector<8x64xf32>
      %51 = arith.mulf %50, %47 : vector<8x64xf32>
      %52 = arith.select %49, %47, %51 : vector<8x64xi1>, vector<8x64xf32>
      %53 = tpu.concatenate %52, %27 in 1 : vector<8x64xf32>, vector<8x64xf32> -> vector<8x128xf32>
      %c0_50 = arith.constant 0 : index
      %c0_51 = arith.constant 0 : index
      %54 = vector.load %arg11[%c0_50, %c0_51] : memref<128x384xf32, #tpu.memory_space<vmem>>, vector<128x384xf32>
      %cst_52 = arith.constant dense<0.000000e+00> : vector<8x384xf32>
      %55 = tpu.matmul %53, %54, %cst_52 {dimension_numbers = #tpu.dot_dimension_numbers<[1], [0], [0], [1], [0, 0, 1, 1], [], []>} : vector<8x128xf32>, vector<128x384xf32>, vector<8x384xf32> -> vector<8x384xf32>
      %c0_53 = arith.constant 0 : index
      %c0_54 = arith.constant 0 : index
      %56 = vector.load %arg12[%c0_53, %c0_54] : memref<1x384xf32, #tpu.memory_space<vmem>>, vector<1x384xf32>
      %57 = vector.broadcast %56 : vector<1x384xf32> to vector<8x384xf32>
      %58 = arith.addf %55, %57 : vector<8x384xf32>
      %59 = vector.extract_strided_slice %58 {offsets = [0, 0], sizes = [8, 192], strides = [1, 1]} : vector<8x384xf32> to vector<8x192xf32>
      %60 = vector.extract_strided_slice %58 {offsets = [0, 192], sizes = [8, 192], strides = [1, 1]} : vector<8x384xf32> to vector<8x192xf32>
      %61 = vector.extract_strided_slice %59 {offsets = [0, 0], sizes = [8, 64], strides = [1, 1]} : vector<8x192xf32> to vector<8x64xf32>
      %62 = vector.extract_strided_slice %60 {offsets = [0, 0], sizes = [8, 64], strides = [1, 1]} : vector<8x192xf32> to vector<8x64xf32>
      %63 = arith.addf %61, %62 : vector<8x64xf32>
      %64 = arith.negf %63 : vector<8x64xf32>
      %65 = math.exp %64 : vector<8x64xf32>
      %cst_55 = arith.constant 1.000000e+00 : f32
      %66 = vector.broadcast %cst_55 : f32 to vector<8x64xf32>
      %67 = arith.addf %66, %65 : vector<8x64xf32>
      %68 = arith.divf %66, %67 : vector<8x64xf32>
      %69 = vector.extract_strided_slice %59 {offsets = [0, 64], sizes = [8, 64], strides = [1, 1]} : vector<8x192xf32> to vector<8x64xf32>
      %70 = vector.extract_strided_slice %60 {offsets = [0, 64], sizes = [8, 64], strides = [1, 1]} : vector<8x192xf32> to vector<8x64xf32>
      %71 = arith.addf %69, %70 : vector<8x64xf32>
      %72 = arith.negf %71 : vector<8x64xf32>
      %73 = math.exp %72 : vector<8x64xf32>
      %cst_56 = arith.constant 1.000000e+00 : f32
      %74 = vector.broadcast %cst_56 : f32 to vector<8x64xf32>
      %75 = arith.addf %74, %73 : vector<8x64xf32>
      %76 = arith.divf %74, %75 : vector<8x64xf32>
      %77 = vector.extract_strided_slice %59 {offsets = [0, 128], sizes = [8, 64], strides = [1, 1]} : vector<8x192xf32> to vector<8x64xf32>
      %78 = vector.extract_strided_slice %60 {offsets = [0, 128], sizes = [8, 64], strides = [1, 1]} : vector<8x192xf32> to vector<8x64xf32>
      %79 = arith.mulf %68, %78 : vector<8x64xf32>
      %80 = arith.addf %77, %79 : vector<8x64xf32>
      %81 = math.tanh %80 : vector<8x64xf32>
      %cst_57 = arith.constant 1.000000e+00 : f32
      %82 = vector.broadcast %cst_57 : f32 to vector<8x64xf32>
      %83 = arith.subf %82, %76 : vector<8x64xf32>
      %84 = arith.mulf %83, %81 : vector<8x64xf32>
      %85 = arith.mulf %76, %27 : vector<8x64xf32>
      %86 = arith.addf %84, %85 : vector<8x64xf32>
      %c0_58 = arith.constant 0 : index
      %c0_59 = arith.constant 0 : index
      %87 = vector.load %arg18[%c0_58, %c0_59] : memref<8x64xf32, #tpu.memory_space<vmem>>, vector<8x64xf32>
      tpu.vector_store %arg18[%c0_58, %c0_59], %86 {strides = array<i32>} : memref<8x64xf32, #tpu.memory_space<vmem>>, vector<8x64xf32>,
    }
    %cst_9 = arith.constant 0.000000e+00 : f32
    %13 = vector.broadcast %cst_9 : f32 to vector<2x128xf32>
    %c0_10 = arith.constant 0 : index
    %c0_11 = arith.constant 0 : index
    %14 = vector.load %arg19[%c0_10, %c0_11] : memref<2x128xf32, #tpu.memory_space<vmem>>, vector<2x128xf32>
    tpu.vector_store %arg19[%c0_10, %c0_11], %13 {strides = array<i32>} : memref<2x128xf32, #tpu.memory_space<vmem>>, vector<2x128xf32>,
    %cst_12 = arith.constant 0.000000e+00 : f32
    %15 = vector.broadcast %cst_12 : f32 to vector<2x64xf32>
    %c0_13 = arith.constant 0 : index
    %c0_14 = arith.constant 0 : index
    %16 = vector.load %arg20[%c0_13, %c0_14] : memref<2x64xf32, #tpu.memory_space<vmem>>, vector<2x64xf32>
    tpu.vector_store %arg20[%c0_13, %c0_14], %15 {strides = array<i32>} : memref<2x64xf32, #tpu.memory_space<vmem>>, vector<2x64xf32>,
    %cst_15 = arith.constant 0.000000e+00 : f32
    %17 = vector.broadcast %cst_15 : f32 to vector<2x64xf32>
    %c0_16 = arith.constant 0 : index
    %c0_17 = arith.constant 0 : index
    %18 = vector.load %arg21[%c0_16, %c0_17] : memref<2x64xf32, #tpu.memory_space<vmem>>, vector<2x64xf32>
    tpu.vector_store %arg21[%c0_16, %c0_17], %17 {strides = array<i32>} : memref<2x64xf32, #tpu.memory_space<vmem>>, vector<2x64xf32>,
    %c0_i32_18 = arith.constant 0 : i32
    %c3_i32 = arith.constant 3 : i32
    %19 = arith.addi %c0_i32_18, %c3_i32 : i32
    %c1_i32_19 = arith.constant 1 : i32
    scf.for %arg22 = %c0_i32_18 to %19 step %c1_i32_19  : i32 {
      %c0_29 = arith.constant 0 : index
      %c0_30 = arith.constant 0 : index
      %27 = vector.load %arg18[%c0_29, %c0_30] : memref<8x64xf32, #tpu.memory_space<vmem>>, vector<8x64xf32>
      %c0_31 = arith.constant 0 : index
      %c0_32 = arith.constant 0 : index
      %28 = vector.load %arg5[%c0_31, %c0_32] : memref<8x2xf32, #tpu.memory_space<vmem>>, vector<8x2xf32>
      %c0_33 = arith.constant 0 : index
      %c0_34 = arith.constant 0 : index
      %29 = vector.load %arg6[%c0_33, %c0_34] : memref<2x8xf32, #tpu.memory_space<vmem>>, vector<2x8xf32>
      %c0_35 = arith.constant 0 : index
      %c0_36 = arith.constant 0 : index
      %30 = vector.load %arg19[%c0_35, %c0_36] : memref<2x128xf32, #tpu.memory_space<vmem>>, vector<2x128xf32>
      %c0_37 = arith.constant 0 : index
      %c0_38 = arith.constant 0 : index
      %31 = vector.load %arg20[%c0_37, %c0_38] : memref<2x64xf32, #tpu.memory_space<vmem>>, vector<2x64xf32>
      %32 = tpu.concatenate %30, %31 in 1 : vector<2x128xf32>, vector<2x64xf32> -> vector<2x192xf32>
      %c0_39 = arith.constant 0 : index
      %c0_40 = arith.constant 0 : index
      %33 = vector.load %arg13[%c0_39, %c0_40] : memref<192x256xf32, #tpu.memory_space<vmem>>, vector<192x256xf32>
      %cst_41 = arith.constant dense<0.000000e+00> : vector<2x256xf32>
      %34 = tpu.matmul %32, %33, %cst_41 {dimension_numbers = #tpu.dot_dimension_numbers<[1], [0], [0], [1], [0, 0, 1, 1], [], []>} : vector<2x192xf32>, vector<192x256xf32>, vector<2x256xf32> -> vector<2x256xf32>
      %c0_42 = arith.constant 0 : index
      %c0_43 = arith.constant 0 : index
      %35 = vector.load %arg14[%c0_42, %c0_43] : memref<1x256xf32, #tpu.memory_space<vmem>>, vector<1x256xf32>
      %36 = vector.broadcast %35 : vector<1x256xf32> to vector<2x256xf32>
      %37 = arith.addf %34, %36 : vector<2x256xf32>
      %38 = vector.extract_strided_slice %37 {offsets = [0, 0], sizes = [2, 64], strides = [1, 1]} : vector<2x256xf32> to vector<2x64xf32>
      %39 = arith.negf %38 : vector<2x64xf32>
      %40 = math.exp %39 : vector<2x64xf32>
      %cst_44 = arith.constant 1.000000e+00 : f32
      %41 = vector.broadcast %cst_44 : f32 to vector<2x64xf32>
      %42 = arith.addf %41, %40 : vector<2x64xf32>
      %43 = arith.divf %41, %42 : vector<2x64xf32>
      %44 = vector.extract_strided_slice %37 {offsets = [0, 64], sizes = [2, 64], strides = [1, 1]} : vector<2x256xf32> to vector<2x64xf32>
      %45 = arith.negf %44 : vector<2x64xf32>
      %46 = math.exp %45 : vector<2x64xf32>
      %cst_45 = arith.constant 1.000000e+00 : f32
      %47 = vector.broadcast %cst_45 : f32 to vector<2x64xf32>
      %48 = arith.addf %47, %46 : vector<2x64xf32>
      %49 = arith.divf %47, %48 : vector<2x64xf32>
      %50 = vector.extract_strided_slice %37 {offsets = [0, 128], sizes = [2, 64], strides = [1, 1]} : vector<2x256xf32> to vector<2x64xf32>
      %51 = math.tanh %50 : vector<2x64xf32>
      %52 = vector.extract_strided_slice %37 {offsets = [0, 192], sizes = [2, 64], strides = [1, 1]} : vector<2x256xf32> to vector<2x64xf32>
      %53 = arith.negf %52 : vector<2x64xf32>
      %54 = math.exp %53 : vector<2x64xf32>
      %cst_46 = arith.constant 1.000000e+00 : f32
      %55 = vector.broadcast %cst_46 : f32 to vector<2x64xf32>
      %56 = arith.addf %55, %54 : vector<2x64xf32>
      %57 = arith.divf %55, %56 : vector<2x64xf32>
      %c0_47 = arith.constant 0 : index
      %c0_48 = arith.constant 0 : index
      %58 = vector.load %arg21[%c0_47, %c0_48] : memref<2x64xf32, #tpu.memory_space<vmem>>, vector<2x64xf32>
      %59 = arith.mulf %49, %58 : vector<2x64xf32>
      %60 = arith.mulf %43, %51 : vector<2x64xf32>
      %61 = arith.addf %59, %60 : vector<2x64xf32>
      %62 = math.tanh %61 : vector<2x64xf32>
      %63 = arith.mulf %57, %62 : vector<2x64xf32>
      %c0_49 = arith.constant 0 : index
      %c0_50 = arith.constant 0 : index
      %64 = vector.load %arg20[%c0_49, %c0_50] : memref<2x64xf32, #tpu.memory_space<vmem>>, vector<2x64xf32>
      tpu.vector_store %arg20[%c0_49, %c0_50], %63 {strides = array<i32>} : memref<2x64xf32, #tpu.memory_space<vmem>>, vector<2x64xf32>,
      %c0_51 = arith.constant 0 : index
      %c0_52 = arith.constant 0 : index
      %65 = vector.load %arg21[%c0_51, %c0_52] : memref<2x64xf32, #tpu.memory_space<vmem>>, vector<2x64xf32>
      tpu.vector_store %arg21[%c0_51, %c0_52], %61 {strides = array<i32>} : memref<2x64xf32, #tpu.memory_space<vmem>>, vector<2x64xf32>,
      %cst_53 = arith.constant dense<0.000000e+00> : vector<8x64xf32>
      %66 = tpu.matmul %28, %63, %cst_53 {dimension_numbers = #tpu.dot_dimension_numbers<[1], [0], [0], [1], [0, 0, 1, 1], [], []>} : vector<8x2xf32>, vector<2x64xf32>, vector<8x64xf32> -> vector<8x64xf32>
      %67 = arith.mulf %27, %66 : vector<8x64xf32>
      %cst_54 = arith.constant dense<0.000000e+00> : vector<8xf32>
      %68 = vector.multi_reduction <add>, %67, %cst_54 [1] : vector<8x64xf32> to vector<8xf32>
      %69 = vector.shape_cast %68 : vector<8xf32> to vector<8x1xf32>
      %cst_55 = arith.constant 0.000000e+00 : f32
      %70 = vector.broadcast %cst_55 : f32 to vector<8x2xf32>
      %71 = arith.cmpf ogt, %28, %70 : vector<8x2xf32>
      %cst_56 = arith.constant -1.000000e+30 : f32
      %72 = vector.shape_cast %69 : vector<8x1xf32> to vector<8x1xf32>
      %73 = vector.broadcast %72 : vector<8x1xf32> to vector<8x2xf32>
      %74 = vector.broadcast %cst_56 : f32 to vector<8x2xf32>
      %75 = arith.select %71, %73, %74 : vector<8x2xi1>, vector<8x2xf32>
      %cst_57 = arith.constant dense<0xFF800000> : vector<2xf32>
      %76 = vector.multi_reduction <maximumf>, %75, %cst_57 [0] : vector<8x2xf32> to vector<2xf32>
      %77 = vector.shape_cast %76 : vector<2xf32> to vector<1x2xf32>
      %78 = vector.broadcast %77 : vector<1x2xf32> to vector<8x2xf32>
      %79 = arith.mulf %28, %78 : vector<8x2xf32>
      %cst_58 = arith.constant dense<0.000000e+00> : vector<8xf32>
      %80 = vector.multi_reduction <add>, %79, %cst_58 [1] : vector<8x2xf32> to vector<8xf32>
      %81 = vector.shape_cast %80 : vector<8xf32> to vector<8x1xf32>
      %82 = arith.subf %69, %81 : vector<8x1xf32>
      %83 = math.exp %82 : vector<8x1xf32>
      %84 = vector.broadcast %83 : vector<8x1xf32> to vector<8x64xf32>
      %85 = arith.mulf %84, %27 : vector<8x64xf32>
      %cst_59 = arith.constant dense<0.000000e+00> : vector<2x64xf32>
      %86 = tpu.matmul %29, %85, %cst_59 {dimension_numbers = #tpu.dot_dimension_numbers<[1], [0], [0], [1], [0, 0, 1, 1], [], []>} : vector<2x8xf32>, vector<8x64xf32>, vector<2x64xf32> -> vector<2x64xf32>
      %cst_60 = arith.constant dense<0.000000e+00> : vector<2x1xf32>
      %87 = tpu.matmul %29, %83, %cst_60 {dimension_numbers = #tpu.dot_dimension_numbers<[1], [0], [0], [1], [0, 0, 1, 1], [], []>} : vector<2x8xf32>, vector<8x1xf32>, vector<2x1xf32> -> vector<2x1xf32>
      %cst_61 = arith.constant 9.99999968E-21 : f32
      %88 = vector.broadcast %cst_61 : f32 to vector<2x1xf32>
      %89 = arith.maximumf %87, %88 : vector<2x1xf32>
      %90 = vector.broadcast %89 : vector<2x1xf32> to vector<2x64xf32>
      %91 = arith.divf %86, %90 : vector<2x64xf32>
      %92 = tpu.concatenate %63, %91 in 1 : vector<2x64xf32>, vector<2x64xf32> -> vector<2x128xf32>
      %c0_62 = arith.constant 0 : index
      %c0_63 = arith.constant 0 : index
      %93 = vector.load %arg19[%c0_62, %c0_63] : memref<2x128xf32, #tpu.memory_space<vmem>>, vector<2x128xf32>
      tpu.vector_store %arg19[%c0_62, %c0_63], %92 {strides = array<i32>} : memref<2x128xf32, #tpu.memory_space<vmem>>, vector<2x128xf32>,
    }
    %c0_20 = arith.constant 0 : index
    %c0_21 = arith.constant 0 : index
    %20 = vector.load %arg19[%c0_20, %c0_21] : memref<2x128xf32, #tpu.memory_space<vmem>>, vector<2x128xf32>
    %c0_22 = arith.constant 0 : index
    %c0_23 = arith.constant 0 : index
    %21 = vector.load %arg15[%c0_22, %c0_23] : memref<128x128xf32, #tpu.memory_space<vmem>>, vector<128x128xf32>
    %cst_24 = arith.constant dense<0.000000e+00> : vector<2x128xf32>
    %22 = tpu.matmul %20, %21, %cst_24 {dimension_numbers = #tpu.dot_dimension_numbers<[1], [0], [0], [1], [0, 0, 1, 1], [], []>} : vector<2x128xf32>, vector<128x128xf32>, vector<2x128xf32> -> vector<2x128xf32>
    %c0_25 = arith.constant 0 : index
    %c0_26 = arith.constant 0 : index
    %23 = vector.load %arg16[%c0_25, %c0_26] : memref<1x128xf32, #tpu.memory_space<vmem>>, vector<1x128xf32>
    %24 = vector.broadcast %23 : vector<1x128xf32> to vector<2x128xf32>
    %25 = arith.addf %22, %24 : vector<2x128xf32>
    %c0_27 = arith.constant 0 : index
    %c0_28 = arith.constant 0 : index
    %26 = vector.load %arg17[%c0_27, %c0_28] : memref<2x128xf32, #tpu.memory_space<vmem>>, vector<2x128xf32>
    tpu.vector_store %arg17[%c0_27, %c0_28], %25 {strides = array<i32>} : memref<2x128xf32, #tpu.memory_space<vmem>>, vector<2x128xf32>,
    return
  }
}

</mosaic_0001>

<llo_original>
// kernel: mpnnet_forward.2
$region0: #{mpnnet_forward.2}
  #allocation0 [shape = 'u32[]', space=smem, size = 0x4, offset = 0x4, fixed_abs, tag = 'smem constant byte address 0x4 - core index']
  #allocation1 [shape = 'u32[72,128]{1,0:T(1,128)}', space=vmem, size = 0x9000, scoped, tag = 'internal scratch']
  %s0 = inlined_call_operand.vmem [shape: f32[16,4], index: 0, kind: input, shape index: {}]
  %s1 = inlined_call_operand.vmem [shape: f32[4,128], index: 1, kind: input, shape index: {}]
  %s2 = inlined_call_operand.vmem [shape: f32[1,128], index: 2, kind: input, shape index: {}]
  %s3 = inlined_call_operand.vmem [shape: bf16[128,4096], index: 3, kind: input, shape index: {}]
  %s4 = inlined_call_operand.vmem [shape: f32[1,4096], index: 4, kind: input, shape index: {}]
  %s5 = inlined_call_operand.vmem [shape: bf16[16,4096], index: 5, kind: output, shape index: {}]
  %s6 = sld [smem:[#allocation0]]
  $region30: #{mpnnet_forward.2} parent=0
    _
  %s8 = ssub.s32 1, %s6
  %s9 = scalar_select 0, %s8, %s6
  // Predicated region
  $region2: #{mpnnet_forward.2} parent=0 // pred_check
    _
  $region3: #{mpnnet_forward.2} parent=0 // pred_check_branch
    %11 = sbr.rel (0) target = $region5
  $region4: #{mpnnet_forward.2} parent=0 // pred_region
    _
  $region5: #{mpnnet_forward.2} parent=0 // pred_fallthru
    _
  // Predicated region
  $region6: #{mpnnet_forward.2} parent=0 // pred_check
    _
  $region7: #{mpnnet_forward.2} parent=0 // pred_check_branch
    %13 = sbr.rel (0) target = $region9
  $region8: #{mpnnet_forward.2} parent=0 // pred_region
    _
  $region9: #{mpnnet_forward.2} parent=0 // pred_fallthru
    _
  // Predicated region
  $region10: #{mpnnet_forward.2} parent=0 // pred_check
    _
  $region11: #{mpnnet_forward.2} parent=0 // pred_check_branch
    %15 = sbr.rel (0) target = $region13
  $region12: #{mpnnet_forward.2} parent=0 // pred_region
    _
  $region13: #{mpnnet_forward.2} parent=0 // pred_fallthru
    _
  // Predicated region
  $region14: #{mpnnet_forward.2} parent=0 // pred_check
    _
  $region15: #{mpnnet_forward.2} parent=0 // pred_check_branch
    %17 = sbr.rel (0) target = $region17
  $region16: #{mpnnet_forward.2} parent=0 // pred_region
    _
  $region17: #{mpnnet_forward.2} parent=0 // pred_fallthru
    _
  // Predicated region
  $region18: #{mpnnet_forward.2} parent=0 // pred_check
    _
  $region19: #{mpnnet_forward.2} parent=0 // pred_check_branch
    %19 = sbr.rel (0) target = $region21
  $region20: #{mpnnet_forward.2} parent=0 // pred_region
    _
  $region21: #{mpnnet_forward.2} parent=0 // pred_fallthru
    _
  %v20 = vld [vmem:[%s0] sm:$0xff]
  %v21 = vld [vmem:[%s0 + $0x8] sm:$0xff]
  %v22 = vld [vmem:[%s1] sm:$0xf]
  %v23 = vld [vmem:[%s2] sm:$0x1]
  %v25 = vperm.slane %v23, 0
  %vm27 = vcmask 31744
  %v29 = vsel %vm27, %v20, 0
  %v32 = vsel %vm27, %v21, 0
  %vm34 = vcmask 1043456
  %v36 = vsel %vm34, %v22, 0
  %38 = vmatpush.msra.mxu0 0.0
  %39 = vmatpush.msra.mxu0 0.0
  %40 = vmatpush.msra.mxu0 0.0
  %41 = vmatpush.msra.mxu0 0.0
  %42 = vmatpush.msra.mxu0 0.0
  %43 = vmatpush.msra.mxu0 0.0
  %44 = vmatpush.msra.mxu0 0.0
  %45 = vmatpush.msra.mxu0 0.0
  %46 = vmatpush.msra.mxu0 0.0
  %47 = vmatpush.msra.mxu0 0.0
  %48 = vmatpush.msra.mxu0 0.0
  %49 = vmatpush.msra.mxu0 0.0
  %50 = vmatpush.msra.mxu0 0.0
  %51 = vmatpush.msra.mxu0 0.0
  %52 = vmatpush.msra.mxu0 0.0
  %53 = vmatpush.msra.mxu0 %v36
  %54 = vmatmul.f32.gmra.mxu0 %v29
  %v55 = vpop.f32.mrf.mxu0
  %v56 = vadd.f32 %v25, %v55
  %57 = vmatmul.f32.gmra.mxu0 %v32
  %v58 = vpop.f32.mrf.mxu0
  %v59 = vadd.f32 %v25, %v58
  %60 = vdwg.mxu0
  %vm61 = vcmp.gt.f32.partialorder %v56, 0.0
  %vm62 = vcmp.gt.f32.partialorder %v59, 0.0
  %v63 = vmul.f32 %v56, 0.01
  %v64 = vmul.f32 %v59, 0.01
  %v65 = vsel %vm61, %v56, %v63
  %v66 = vsel %vm62, %v59, %v64
  %v67 = vpack.c.bf16 %v66, %v65
  %v68 = vld [vmem:[%s3] sm:$0xff]
  %v69 = vld [vmem:[%s3 + $0x8] sm:$0xff]
  %v70 = vld [vmem:[%s3 + $0x10] sm:$0xff]
  %v71 = vld [vmem:[%s3 + $0x18] sm:$0xff]
  %v72 = vld [vmem:[%s3 + $0x20] sm:$0xff]
  %v73 = vld [vmem:[%s3 + $0x28] sm:$0xff]
  %v74 = vld [vmem:[%s3 + $0x30] sm:$0xff]
  %v75 = vld [vmem:[%s3 + $0x38] sm:$0xff]
  %v76 = vld [vmem:[%s3 + $0x40] sm:$0xff]
  %v77 = vld [vmem:[%s3 + $0x48] sm:$0xff]
  %v78 = vld [vmem:[%s3 + $0x50] sm:$0xff]
  %v79 = vld [vmem:[%s3 + $0x58] sm:$0xff]
  %v80 = vld [vmem:[%s3 + $0x60] sm:$0xff]
  %v81 = vld [vmem:[%s3 + $0x68] sm:$0xff]
  %v82 = vld [vmem:[%s3 + $0x70] sm:$0xff]
  %v83 = vld [vmem:[%s3 + $0x78] sm:$0xff]
  %v84 = vld [vmem:[%s3 + $0x80] sm:$0xff]
  %v85 = vld [vmem:[%s3 + $0x88] sm:$0xff]
  %v86 = vld [vmem:[%s3 + $0x90] sm:$0xff]
  %v87 = vld [vmem:[%s3 + $0x98] sm:$0xff]
  %v88 = vld [vmem:[%s3 + $0xa0] sm:$0xff]
  %v89 = vld [vmem:[%s3 + $0xa8] sm:$0xff]
  %v90 = vld [vmem:[%s3 + $0xb0] sm:$0xff]
  %v91 = vld [vmem:[%s3 + $0xb8] sm:$0xff]
  %v92 = vld [vmem:[%s3 + $0xc0] sm:$0xff]
  %v93 = vld [vmem:[%s3 + $0xc8] sm:$0xff]
  %v94 = vld [vmem:[%s3 + $0xd0] sm:$0xff]
  %v95 = vld [vmem:[%s3 + $0xd8] sm:$0xff]
  %v96 = vld [vmem:[%s3 + $0xe0] sm:$0xff]
  %v97 = vld [vmem:[%s3 + $0xe8] sm:$0xff]
  %v98 = vld [vmem:[%s3 + $0xf0] sm:$0xff]
  %v99 = vld [vmem:[%s3 + $0xf8] sm:$0xff]
  %v100 = vld [vmem:[%s3 + $0x100] sm:$0xff]
  %v101 = vld [vmem:[%s3 + $0x108] sm:$0xff]
  %v102 = vld [vmem:[%s3 + $0x110] sm:$0xff]
  %v103 = vld [vmem:[%s3 + $0x118] sm:$0xff]
  %v104 = vld [vmem:[%s3 + $0x120] sm:$0xff]
  %v105 = vld [vmem:[%s3 + $0x128] sm:$0xff]
  %v106 = vld [vmem:[%s3 + $0x130] sm:$0xff]
  %v107 = vld [vmem:[%s3 + $0x138] sm:$0xff]
  %v108 = vld [vmem:[%s3 + $0x140] sm:$0xff]
  %v109 = vld [vmem:[%s3 + $0x148] sm:$0xff]
  %v110 = vld [vmem:[%s3 + $0x150] sm:$0xff]
  %v111 = vld [vmem:[%s3 + $0x158] sm:$0xff]
  %v112 = vld [vmem:[%s3 + $0x160] sm:$0xff]
  %v113 = vld [vmem:[%s3 + $0x168] sm:$0xff]
  %v114 = vld [vmem:[%s3 + $0x170] sm:$0xff]
  %v115 = vld [vmem:[%s3 + $0x178] sm:$0xff]
  %v116 = vld [vmem:[%s3 + $0x180] sm:$0xff]
  %v117 = vld [vmem:[%s3 + $0x188] sm:$0xff]
  %v118 = vld [vmem:[%s3 + $0x190] sm:$0xff]
  %v119 = vld [vmem:[%s3 + $0x198] sm:$0xff]
  %v120 = vld [vmem:[%s3 + $0x1a0] sm:$0xff]
  %v121 = vld [vmem:[%s3 + $0x1a8] sm:$0xff]
  %v122 = vld [vmem:[%s3 + $0x1b0] sm:$0xff]
  %v123 = vld [vmem:[%s3 + $0x1b8] sm:$0xff]
  %v124 = vld [vmem:[%s3 + $0x1c0] sm:$0xff]
  %v125 = vld [vmem:[%s3 + $0x1c8] sm:$0xff]
  %v126 = vld [vmem:[%s3 + $0x1d0] sm:$0xff]
  %v127 = vld [vmem:[%s3 + $0x1d8] sm:$0xff]
  %v128 = vld [vmem:[%s3 + $0x1e0] sm:$0xff]
  %v129 = vld [vmem:[%s3 + $0x1e8] sm:$0xff]
  %v130 = vld [vmem:[%s3 + $0x1f0] sm:$0xff]
  %v131 = vld [vmem:[%s3 + $0x1f8] sm:$0xff]
  %v132 = vld [vmem:[%s3 + $0x200] sm:$0xff]
  %v133 = vld [vmem:[%s3 + $0x208] sm:$0xff]
  %v134 = vld [vmem:[%s3 + $0x210] sm:$0xff]
  %v135 = vld [vmem:[%s3 + $0x218] sm:$0xff]
  %v136 = vld [vmem:[%s3 + $0x220] sm:$0xff]
  %v137 = vld [vmem:[%s3 + $0x228] sm:$0xff]
  %v138 = vld [vmem:[%s3 + $0x230] sm:$0xff]
  %v139 = vld [vmem:[%s3 + $0x238] sm:$0xff]
  %v140 = vld [vmem:[%s3 + $0x240] sm:$0xff]
  %v141 = vld [vmem:[%s3 + $0x248] sm:$0xff]
  %v142 = vld [vmem:[%s3 + $0x250] sm:$0xff]
  %v143 = vld [vmem:[%s3 + $0x258] sm:$0xff]
  %v144 = vld [vmem:[%s3 + $0x260] sm:$0xff]
  %v145 = vld [vmem:[%s3 + $0x268] sm:$0xff]
  %v146 = vld [vmem:[%s3 + $0x270] sm:$0xff]
  %v147 = vld [vmem:[%s3 + $0x278] sm:$0xff]
  %v148 = vld [vmem:[%s3 + $0x280] sm:$0xff]
  %v149 = vld [vmem:[%s3 + $0x288] sm:$0xff]
  %v150 = vld [vmem:[%s3 + $0x290] sm:$0xff]
  %v151 = vld [vmem:[%s3 + $0x298] sm:$0xff]
  %v152 = vld [vmem:[%s3 + $0x2a0] sm:$0xff]
  %v153 = vld [vmem:[%s3 + $0x2a8] sm:$0xff]
  %v154 = vld [vmem:[%s3 + $0x2b0] sm:$0xff]
  %v155 = vld [vmem:[%s3 + $0x2b8] sm:$0xff]
  %v156 = vld [vmem:[%s3 + $0x2c0] sm:$0xff]
  %v157 = vld [vmem:[%s3 + $0x2c8] sm:$0xff]
  %v158 = vld [vmem:[%s3 + $0x2d0] sm:$0xff]
  %v159 = vld [vmem:[%s3 + $0x2d8] sm:$0xff]
  %v160 = vld [vmem:[%s3 + $0x2e0] sm:$0xff]
  %v161 = vld [vmem:[%s3 + $0x2e8] sm:$0xff]
  %v162 = vld [vmem:[%s3 + $0x2f0] sm:$0xff]
  %v163 = vld [vmem:[%s3 + $0x2f8] sm:$0xff]
  %v164 = vld [vmem:[%s3 + $0x300] sm:$0xff]
  %v165 = vld [vmem:[%s3 + $0x308] sm:$0xff]
  %v166 = vld [vmem:[%s3 + $0x310] sm:$0xff]
  %v167 = vld [vmem:[%s3 + $0x318] sm:$0xff]
  %v168 = vld [vmem:[%s3 + $0x320] sm:$0xff]
  %v169 = vld [vmem:[%s3 + $0x328] sm:$0xff]
  %v170 = vld [vmem:[%s3 + $0x330] sm:$0xff]
  %v171 = vld [vmem:[%s3 + $0x338] sm:$0xff]
  %v172 = vld [vmem:[%s3 + $0x340] sm:$0xff]
  %v173 = vld [vmem:[%s3 + $0x348] sm:$0xff]
  %v174 = vld [vmem:[%s3 + $0x350] sm:$0xff]
  %v175 = vld [vmem:[%s3 + $0x358] sm:$0xff]
  %v176 = vld [vmem:[%s3 + $0x360] sm:$0xff]
  %v177 = vld [vmem:[%s3 + $0x368] sm:$0xff]
  %v178 = vld [vmem:[%s3 + $0x370] sm:$0xff]
  %v179 = vld [vmem:[%s3 + $0x378] sm:$0xff]
  %v180 = vld [vmem:[%s3 + $0x380] sm:$0xff]
  %v181 = vld [vmem:[%s3 + $0x388] sm:$0xff]
  %v182 = vld [vmem:[%s3 + $0x390] sm:$0xff]
  %v183 = vld [vmem:[%s3 + $0x398] sm:$0xff]
  %v184 = vld [vmem:[%s3 + $0x3a0] sm:$0xff]
  %v185 = vld [vmem:[%s3 + $0x3a8] sm:$0xff]
  %v186 = vld [vmem:[%s3 + $0x3b0] sm:$0xff]
  %v187 = vld [vmem:[%s3 + $0x3b8] sm:$0xff]
  %v188 = vld [vmem:[%s3 + $0x3c0] sm:$0xff]
  %v189 = vld [vmem:[%s3 + $0x3c8] sm:$0xff]
  %v190 = vld [vmem:[%s3 + $0x3d0] sm:$0xff]
  %v191 = vld [vmem:[%s3 + $0x3d8] sm:$0xff]
  %v192 = vld [vmem:[%s3 + $0x3e0] sm:$0xff]
  %v193 = vld [vmem:[%s3 + $0x3e8] sm:$0xff]
  %v194 = vld [vmem:[%s3 + $0x3f0] sm:$0xff]
  %v195 = vld [vmem:[%s3 + $0x3f8] sm:$0xff]
  %v196 = vld [vmem:[%s3 + $0x400] sm:$0xff]
  %v197 = vld [vmem:[%s3 + $0x408] sm:$0xff]
  %v198 = vld [vmem:[%s3 + $0x410] sm:$0xff]
  %v199 = vld [vmem:[%s3 + $0x418] sm:$0xff]
  %v200 = vld [vmem:[%s3 + $0x420] sm:$0xff]
  %v201 = vld [vmem:[%s3 + $0x428] sm:$0xff]
  %v202 = vld [vmem:[%s3 + $0x430] sm:$0xff]
  %v203 = vld [vmem:[%s3 + $0x438] sm:$0xff]
  %v204 = vld [vmem:[%s3 + $0x440] sm:$0xff]
  %v205 = vld [vmem:[%s3 + $0x448] sm:$0xff]
  %v206 = vld [vmem:[%s3 + $0x450] sm:$0xff]
  %v207 = vld [vmem:[%s3 + $0x458] sm:$0xff]
  %v208 = vld [vmem:[%s3 + $0x460] sm:$0xff]
  %v209 = vld [vmem:[%s3 + $0x468] sm:$0xff]
  %v210 = vld [vmem:[%s3 + $0x470] sm:$0xff]
  %v211 = vld [vmem:[%s3 + $0x478] sm:$0xff]
  %v212 = vld [vmem:[%s3 + $0x480] sm:$0xff]
  %v213 = vld [vmem:[%s3 + $0x488] sm:$0xff]
  %v214 = vld [vmem:[%s3 + $0x490] sm:$0xff]
  %v215 = vld [vmem:[%s3 + $0x498] sm:$0xff]
  %v216 = vld [vmem:[%s3 + $0x4a0] sm:$0xff]
  %v217 = vld [vmem:[%s3 + $0x4a8] sm:$0xff]
  %v218 = vld [vmem:[%s3 + $0x4b0] sm:$0xff]
  %v219 = vld [vmem:[%s3 + $0x4b8] sm:$0xff]
  %v220 = vld [vmem:[%s3 + $0x4c0] sm:$0xff]
  %v221 = vld [vmem:[%s3 + $0x4c8] sm:$0xff]
  %v222 = vld [vmem:[%s3 + $0x4d0] sm:$0xff]
  %v223 = vld [vmem:[%s3 + $0x4d8] sm:$0xff]
  %v224 = vld [vmem:[%s3 + $0x4e0] sm:$0xff]
  %v225 = vld [vmem:[%s3 + $0x4e8] sm:$0xff]
  %v226 = vld [vmem:[%s3 + $0x4f0] sm:$0xff]
  %v227 = vld [vmem:[%s3 + $0x4f8] sm:$0xff]
  %v228 = vld [vmem:[%s3 + $0x500] sm:$0xff]
  %v229 = vld [vmem:[%s3 + $0x508] sm:$0xff]
  %v230 = vld [vmem:[%s3 + $0x510] sm:$0xff]
  %v231 = vld [vmem:[%s3 + $0x518] sm:$0xff]
  %v232 = vld [vmem:[%s3 + $0x520] sm:$0xff]
  %v233 = vld [vmem:[%s3 + $0x528] sm:$0xff]
  %v234 = vld [vmem:[%s3 + $0x530] sm:$0xff]
  %v235 = vld [vmem:[%s3 + $0x538] sm:$0xff]
  %v236 = vld [vmem:[%s3 + $0x540] sm:$0xff]
  %v237 = vld [vmem:[%s3 + $0x548] sm:$0xff]
  %v238 = vld [vmem:[%s3 + $0x550] sm:$0xff]
  %v239 = vld [vmem:[%s3 + $0x558] sm:$0xff]
  %v240 = vld [vmem:[%s3 + $0x560] sm:$0xff]
  %v241 = vld [vmem:[%s3 + $0x568] sm:$0xff]
  %v242 = vld [vmem:[%s3 + $0x570] sm:$0xff]
  %v243 = vld [vmem:[%s3 + $0x578] sm:$0xff]
  %v244 = vld [vmem:[%s3 + $0x580] sm:$0xff]
  %v245 = vld [vmem:[%s3 + $0x588] sm:$0xff]
  %v246 = vld [vmem:[%s3 + $0x590] sm:$0xff]
  %v247 = vld [vmem:[%s3 + $0x598] sm:$0xff]
  %v248 = vld [vmem:[%s3 + $0x5a0] sm:$0xff]
  %v249 = vld [vmem:[%s3 + $0x5a8] sm:$0xff]
  %v250 = vld [vmem:[%s3 + $0x5b0] sm:$0xff]
  %v251 = vld [vmem:[%s3 + $0x5b8] sm:$0xff]
  %v252 = vld [vmem:[%s3 + $0x5c0] sm:$0xff]
  %v253 = vld [vmem:[%s3 + $0x5c8] sm:$0xff]
  %v254 = vld [vmem:[%s3 + $0x5d0] sm:$0xff]
  %v255 = vld [vmem:[%s3 + $0x5d8] sm:$0xff]
  %v256 = vld [vmem:[%s3 + $0x5e0] sm:$0xff]
  %v257 = vld [vmem:[%s3 + $0x5e8] sm:$0xff]
  %v258 = vld [vmem:[%s3 + $0x5f0] sm:$0xff]
  %v259 = vld [vmem:[%s3 + $0x5f8] sm:$0xff]
  %v260 = vld [vmem:[%s3 + $0x600] sm:$0xff]
  %v261 = vld [vmem:[%s3 + $0x608] sm:$0xff]
  %v262 = vld [vmem:[%s3 + $0x610] sm:$0xff]
  %v263 = vld [vmem:[%s3 + $0x618] sm:$0xff]
  %v264 = vld [vmem:[%s3 + $0x620] sm:$0xff]
  %v265 = vld [vmem:[%s3 + $0x628] sm:$0xff]
  %v266 = vld [vmem:[%s3 + $0x630] sm:$0xff]
  %v267 = vld [vmem:[%s3 + $0x638] sm:$0xff]
  %v268 = vld [vmem:[%s3 + $0x640] sm:$0xff]
  %v269 = vld [vmem:[%s3 + $0x648] sm:$0xff]
  %v270 = vld [vmem:[%s3 + $0x650] sm:$0xff]
  %v271 = vld [vmem:[%s3 + $0x658] sm:$0xff]
  %v272 = vld [vmem:[%s3 + $0x660] sm:$0xff]
  %v273 = vld [vmem:[%s3 + $0x668] sm:$0xff]
  %v274 = vld [vmem:[%s3 + $0x670] sm:$0xff]
  %v275 = vld [vmem:[%s3 + $0x678] sm:$0xff]
  %v276 = vld [vmem:[%s3 + $0x680] sm:$0xff]
  %v277 = vld [vmem:[%s3 + $0x688] sm:$0xff]
  %v278 = vld [vmem:[%s3 + $0x690] sm:$0xff]
  %v279 = vld [vmem:[%s3 + $0x698] sm:$0xff]
  %v280 = vld [vmem:[%s3 + $0x6a0] sm:$0xff]
  %v281 = vld [vmem:[%s3 + $0x6a8] sm:$0xff]
  %v282 = vld [vmem:[%s3 + $0x6b0] sm:$0xff]
  %v283 = vld [vmem:[%s3 + $0x6b8] sm:$0xff]
  %v284 = vld [vmem:[%s3 + $0x6c0] sm:$0xff]
  %v285 = vld [vmem:[%s3 + $0x6c8] sm:$0xff]
  %v286 = vld [vmem:[%s3 + $0x6d0] sm:$0xff]
  %v287 = vld [vmem:[%s3 + $0x6d8] sm:$0xff]
  %v288 = vld [vmem:[%s3 + $0x6e0] sm:$0xff]
  %v289 = vld [vmem:[%s3 + $0x6e8] sm:$0xff]
  %v290 = vld [vmem:[%s3 + $0x6f0] sm:$0xff]
  %v291 = vld [vmem:[%s3 + $0x6f8] sm:$0xff]
  %v292 = vld [vmem:[%s3 + $0x700] sm:$0xff]
  %v293 = vld [vmem:[%s3 + $0x708] sm:$0xff]
  %v294 = vld [vmem:[%s3 + $0x710] sm:$0xff]
  %v295 = vld [vmem:[%s3 + $0x718] sm:$0xff]
  %v296 = vld [vmem:[%s3 + $0x720] sm:$0xff]
  %v297 = vld [vmem:[%s3 + $0x728] sm:$0xff]
  %v298 = vld [vmem:[%s3 + $0x730] sm:$0xff]
  %v299 = vld [vmem:[%s3 + $0x738] sm:$0xff]
  %v300 = vld [vmem:[%s3 + $0x740] sm:$0xff]
  %v301 = vld [vmem:[%s3 + $0x748] sm:$0xff]
  %v302 = vld [vmem:[%s3 + $0x750] sm:$0xff]
  %v303 = vld [vmem:[%s3 + $0x758] sm:$0xff]
  %v304 = vld [vmem:[%s3 + $0x760] sm:$0xff]
  %v305 = vld [vmem:[%s3 + $0x768] sm:$0xff]
  %v306 = vld [vmem:[%s3 + $0x770] sm:$0xff]
  %v307 = vld [vmem:[%s3 + $0x778] sm:$0xff]
  %v308 = vld [vmem:[%s3 + $0x780] sm:$0xff]
  %v309 = vld [vmem:[%s3 + $0x788] sm:$0xff]
  %v310 = vld [vmem:[%s3 + $0x790] sm:$0xff]
  %v311 = vld [vmem:[%s3 + $0x798] sm:$0xff]
  %v312 = vld [vmem:[%s3 + $0x7a0] sm:$0xff]
  %v313 = vld [vmem:[%s3 + $0x7a8] sm:$0xff]
  %v314 = vld [vmem:[%s3 + $0x7b0] sm:$0xff]
  %v315 = vld [vmem:[%s3 + $0x7b8] sm:$0xff]
  %v316 = vld [vmem:[%s3 + $0x7c0] sm:$0xff]
  %v317 = vld [vmem:[%s3 + $0x7c8] sm:$0xff]
  %v318 = vld [vmem:[%s3 + $0x7d0] sm:$0xff]
  %v319 = vld [vmem:[%s3 + $0x7d8] sm:$0xff]
  %v320 = vld [vmem:[%s3 + $0x7e0] sm:$0xff]
  %v321 = vld [vmem:[%s3 + $0x7e8] sm:$0xff]
  %v322 = vld [vmem:[%s3 + $0x7f0] sm:$0xff]
  %v323 = vld [vmem:[%s3 + $0x7f8] sm:$0xff]
  %v324 = vld [vmem:[%s4] sm:$0xff]
  %v325 = vld [vmem:[%s4 + $0x8] sm:$0xff]
  %v326 = vld [vmem:[%s4 + $0x10] sm:$0xff]
  %v327 = vld [vmem:[%s4 + $0x18] sm:$0xff]
  %v332 = vperm.slane %v324, 0
  %v333 = vperm.slane %v324, 1
  %v334 = vperm.slane %v324, 2
  %v335 = vperm.slane %v324, 3
  %v336 = vperm.slane %v324, 4
  %v337 = vperm.slane %v324, 5
  %v338 = vperm.slane %v324, 6
  %v339 = vperm.slane %v324, 7
  %v340 = vperm.slane %v325, 0
  %v341 = vperm.slane %v325, 1
  %v342 = vperm.slane %v325, 2
  %v343 = vperm.slane %v325, 3
  %v344 = vperm.slane %v325, 4
  %v345 = vperm.slane %v325, 5
  %v346 = vperm.slane %v325, 6
  %v347 = vperm.slane %v325, 7
  %v348 = vperm.slane %v326, 0
  %v349 = vperm.slane %v326, 1
  %v350 = vperm.slane %v326, 2
  %v351 = vperm.slane %v326, 3
  %v352 = vperm.slane %v326, 4
  %v353 = vperm.slane %v326, 5
  %v354 = vperm.slane %v326, 6
  %v355 = vperm.slane %v326, 7
  %v356 = vperm.slane %v327, 0
  %v357 = vperm.slane %v327, 1
  %v358 = vperm.slane %v327, 2
  %v359 = vperm.slane %v327, 3
  %v360 = vperm.slane %v327, 4
  %v361 = vperm.slane %v327, 5
  %v362 = vperm.slane %v327, 6
  %v363 = vperm.slane %v327, 7
  %v652 = vunpack.c.l.b16 %v68
  %v653 = vunpack.c.h.b16 %v68
  %v654 = vunpack.c.l.b16 %v69
  %v655 = vunpack.c.h.b16 %v69
  %v656 = vunpack.c.l.b16 %v70
  %v657 = vunpack.c.h.b16 %v70
  %v658 = vunpack.c.l.b16 %v71
  %v659 = vunpack.c.h.b16 %v71
  %v660 = vunpack.c.l.b16 %v72
  %v661 = vunpack.c.h.b16 %v72
  %v662 = vunpack.c.l.b16 %v73
  %v663 = vunpack.c.h.b16 %v73
  %v664 = vunpack.c.l.b16 %v74
  %v665 = vunpack.c.h.b16 %v74
  %v666 = vunpack.c.l.b16 %v75
  %v667 = vunpack.c.h.b16 %v75
  %v668 = vunpack.c.l.b16 %v76
  %v669 = vunpack.c.h.b16 %v76
  %v670 = vunpack.c.l.b16 %v77
  %v671 = vunpack.c.h.b16 %v77
  %v672 = vunpack.c.l.b16 %v78
  %v673 = vunpack.c.h.b16 %v78
  %v674 = vunpack.c.l.b16 %v79
  %v675 = vunpack.c.h.b16 %v79
  %v676 = vunpack.c.l.b16 %v80
  %v677 = vunpack.c.h.b16 %v80
  %v678 = vunpack.c.l.b16 %v81
  %v679 = vunpack.c.h.b16 %v81
  %v680 = vunpack.c.l.b16 %v82
  %v681 = vunpack.c.h.b16 %v82
  %v682 = vunpack.c.l.b16 %v83
  %v683 = vunpack.c.h.b16 %v83
  %v684 = vunpack.c.l.b16 %v84
  %v685 = vunpack.c.h.b16 %v84
  %v686 = vunpack.c.l.b16 %v85
  %v687 = vunpack.c.h.b16 %v85
  %v688 = vunpack.c.l.b16 %v86
  %v689 = vunpack.c.h.b16 %v86
  %v690 = vunpack.c.l.b16 %v87
  %v691 = vunpack.c.h.b16 %v87
  %v692 = vunpack.c.l.b16 %v88
  %v693 = vunpack.c.h.b16 %v88
  %v694 = vunpack.c.l.b16 %v89
  %v695 = vunpack.c.h.b16 %v89
  %v696 = vunpack.c.l.b16 %v90
  %v697 = vunpack.c.h.b16 %v90
  %v698 = vunpack.c.l.b16 %v91
  %v699 = vunpack.c.h.b16 %v91
  %v700 = vunpack.c.l.b16 %v92
  %v701 = vunpack.c.h.b16 %v92
  %v702 = vunpack.c.l.b16 %v93
  %v703 = vunpack.c.h.b16 %v93
  %v704 = vunpack.c.l.b16 %v94
  %v705 = vunpack.c.h.b16 %v94
  %v706 = vunpack.c.l.b16 %v95
  %v707 = vunpack.c.h.b16 %v95
  %v708 = vunpack.c.l.b16 %v96
  %v709 = vunpack.c.h.b16 %v96
  %v710 = vunpack.c.l.b16 %v97
  %v711 = vunpack.c.h.b16 %v97
  %v712 = vunpack.c.l.b16 %v98
  %v713 = vunpack.c.h.b16 %v98
  %v714 = vunpack.c.l.b16 %v99
  %v715 = vunpack.c.h.b16 %v99
  %v716 = vunpack.c.l.b16 %v100
  %v717 = vunpack.c.h.b16 %v100
  %v718 = vunpack.c.l.b16 %v101
  %v719 = vunpack.c.h.b16 %v101
  %v720 = vunpack.c.l.b16 %v102
  %v721 = vunpack.c.h.b16 %v102
  %v722 = vunpack.c.l.b16 %v103
  %v723 = vunpack.c.h.b16 %v103
  %v724 = vunpack.c.l.b16 %v104
  %v725 = vunpack.c.h.b16 %v104
  %v726 = vunpack.c.l.b16 %v105
  %v727 = vunpack.c.h.b16 %v105
  %v728 = vunpack.c.l.b16 %v106
  %v729 = vunpack.c.h.b16 %v106
  %v730 = vunpack.c.l.b16 %v107
  %v731 = vunpack.c.h.b16 %v107
  %v732 = vunpack.c.l.b16 %v108
  %v733 = vunpack.c.h.b16 %v108
  %v734 = vunpack.c.l.b16 %v109
  %v735 = vunpack.c.h.b16 %v109
  %v736 = vunpack.c.l.b16 %v110
  %v737 = vunpack.c.h.b16 %v110
  %v738 = vunpack.c.l.b16 %v111
  %v739 = vunpack.c.h.b16 %v111
  %v740 = vunpack.c.l.b16 %v112
  %v741 = vunpack.c.h.b16 %v112
  %v742 = vunpack.c.l.b16 %v113
  %v743 = vunpack.c.h.b16 %v113
  %v744 = vunpack.c.l.b16 %v114
  %v745 = vunpack.c.h.b16 %v114
  %v746 = vunpack.c.l.b16 %v115
  %v747 = vunpack.c.h.b16 %v115
  %v748 = vunpack.c.l.b16 %v116
  %v749 = vunpack.c.h.b16 %v116
  %v750 = vunpack.c.l.b16 %v117
  %v751 = vunpack.c.h.b16 %v117
  %v752 = vunpack.c.l.b16 %v118
  %v753 = vunpack.c.h.b16 %v118
  %v754 = vunpack.c.l.b16 %v119
  %v755 = vunpack.c.h.b16 %v119
  %v756 = vunpack.c.l.b16 %v120
  %v757 = vunpack.c.h.b16 %v120
  %v758 = vunpack.c.l.b16 %v121
  %v759 = vunpack.c.h.b16 %v121
  %v760 = vunpack.c.l.b16 %v122
  %v761 = vunpack.c.h.b16 %v122
  %v762 = vunpack.c.l.b16 %v123
  %v763 = vunpack.c.h.b16 %v123
  %v764 = vunpack.c.l.b16 %v124
  %v765 = vunpack.c.h.b16 %v124
  %v766 = vunpack.c.l.b16 %v125
  %v767 = vunpack.c.h.b16 %v125
  %v768 = vunpack.c.l.b16 %v126
  %v769 = vunpack.c.h.b16 %v126
  %v770 = vunpack.c.l.b16 %v127
  %v771 = vunpack.c.h.b16 %v127
  %v772 = vunpack.c.l.b16 %v128
  %v773 = vunpack.c.h.b16 %v128
  %v774 = vunpack.c.l.b16 %v129
  %v775 = vunpack.c.h.b16 %v129
  %v776 = vunpack.c.l.b16 %v130
  %v777 = vunpack.c.h.b16 %v130
  %v778 = vunpack.c.l.b16 %v131
  %v779 = vunpack.c.h.b16 %v131
  %v780 = vunpack.c.l.b16 %v132
  %v781 = vunpack.c.h.b16 %v132
  %v782 = vunpack.c.l.b16 %v133
  %v783 = vunpack.c.h.b16 %v133
  %v784 = vunpack.c.l.b16 %v134
  %v785 = vunpack.c.h.b16 %v134
  %v786 = vunpack.c.l.b16 %v135
  %v787 = vunpack.c.h.b16 %v135
  %v788 = vunpack.c.l.b16 %v136
  %v789 = vunpack.c.h.b16 %v136
  %v790 = vunpack.c.l.b16 %v137
  %v791 = vunpack.c.h.b16 %v137
  %v792 = vunpack.c.l.b16 %v138
  %v793 = vunpack.c.h.b16 %v138
  %v794 = vunpack.c.l.b16 %v139
  %v795 = vunpack.c.h.b16 %v139
  %v796 = vunpack.c.l.b16 %v140
  %v797 = vunpack.c.h.b16 %v140
  %v798 = vunpack.c.l.b16 %v141
  %v799 = vunpack.c.h.b16 %v141
  %v800 = vunpack.c.l.b16 %v142
  %v801 = vunpack.c.h.b16 %v142
  %v802 = vunpack.c.l.b16 %v143
  %v803 = vunpack.c.h.b16 %v143
  %v804 = vunpack.c.l.b16 %v144
  %v805 = vunpack.c.h.b16 %v144
  %v806 = vunpack.c.l.b16 %v145
  %v807 = vunpack.c.h.b16 %v145
  %v808 = vunpack.c.l.b16 %v146
  %v809 = vunpack.c.h.b16 %v146
  %v810 = vunpack.c.l.b16 %v147
  %v811 = vunpack.c.h.b16 %v147
  %v812 = vunpack.c.l.b16 %v148
  %v813 = vunpack.c.h.b16 %v148
  %v814 = vunpack.c.l.b16 %v149
  %v815 = vunpack.c.h.b16 %v149
  %v816 = vunpack.c.l.b16 %v150
  %v817 = vunpack.c.h.b16 %v150
  %v818 = vunpack.c.l.b16 %v151
  %v819 = vunpack.c.h.b16 %v151
  %v820 = vunpack.c.l.b16 %v152
  %v821 = vunpack.c.h.b16 %v152
  %v822 = vunpack.c.l.b16 %v153
  %v823 = vunpack.c.h.b16 %v153
  %v824 = vunpack.c.l.b16 %v154
  %v825 = vunpack.c.h.b16 %v154
  %v826 = vunpack.c.l.b16 %v155
  %v827 = vunpack.c.h.b16 %v155
  %v828 = vunpack.c.l.b16 %v156
  %v829 = vunpack.c.h.b16 %v156
  %v830 = vunpack.c.l.b16 %v157
  %v831 = vunpack.c.h.b16 %v157
  %v832 = vunpack.c.l.b16 %v158
  %v833 = vunpack.c.h.b16 %v158
  %v834 = vunpack.c.l.b16 %v159
  %v835 = vunpack.c.h.b16 %v159
  %v836 = vunpack.c.l.b16 %v160
  %v837 = vunpack.c.h.b16 %v160
  %v838 = vunpack.c.l.b16 %v161
  %v839 = vunpack.c.h.b16 %v161
  %v840 = vunpack.c.l.b16 %v162
  %v841 = vunpack.c.h.b16 %v162
  %v842 = vunpack.c.l.b16 %v163
  %v843 = vunpack.c.h.b16 %v163
  %v844 = vunpack.c.l.b16 %v164
  %v845 = vunpack.c.h.b16 %v164
  %v846 = vunpack.c.l.b16 %v165
  %v847 = vunpack.c.h.b16 %v165
  %v848 = vunpack.c.l.b16 %v166
  %v849 = vunpack.c.h.b16 %v166
  %v850 = vunpack.c.l.b16 %v167
  %v851 = vunpack.c.h.b16 %v167
  %v852 = vunpack.c.l.b16 %v168
  %v853 = vunpack.c.h.b16 %v168
  %v854 = vunpack.c.l.b16 %v169
  %v855 = vunpack.c.h.b16 %v169
  %v856 = vunpack.c.l.b16 %v170
  %v857 = vunpack.c.h.b16 %v170
  %v858 = vunpack.c.l.b16 %v171
  %v859 = vunpack.c.h.b16 %v171
  %v860 = vunpack.c.l.b16 %v172
  %v861 = vunpack.c.h.b16 %v172
  %v862 = vunpack.c.l.b16 %v173
  %v863 = vunpack.c.h.b16 %v173
  %v864 = vunpack.c.l.b16 %v174
  %v865 = vunpack.c.h.b16 %v174
  %v866 = vunpack.c.l.b16 %v175
  %v867 = vunpack.c.h.b16 %v175
  %v868 = vunpack.c.l.b16 %v176
  %v869 = vunpack.c.h.b16 %v176
  %v870 = vunpack.c.l.b16 %v177
  %v871 = vunpack.c.h.b16 %v177
  %v872 = vunpack.c.l.b16 %v178
  %v873 = vunpack.c.h.b16 %v178
  %v874 = vunpack.c.l.b16 %v179
  %v875 = vunpack.c.h.b16 %v179
  %v876 = vunpack.c.l.b16 %v180
  %v877 = vunpack.c.h.b16 %v180
  %v878 = vunpack.c.l.b16 %v181
  %v879 = vunpack.c.h.b16 %v181
  %v880 = vunpack.c.l.b16 %v182
  %v881 = vunpack.c.h.b16 %v182
  %v882 = vunpack.c.l.b16 %v183
  %v883 = vunpack.c.h.b16 %v183
  %v884 = vunpack.c.l.b16 %v184
  %v885 = vunpack.c.h.b16 %v184
  %v886 = vunpack.c.l.b16 %v185
  %v887 = vunpack.c.h.b16 %v185
  %v888 = vunpack.c.l.b16 %v186
  %v889 = vunpack.c.h.b16 %v186
  %v890 = vunpack.c.l.b16 %v187
  %v891 = vunpack.c.h.b16 %v187
  %v892 = vunpack.c.l.b16 %v188
  %v893 = vunpack.c.h.b16 %v188
  %v894 = vunpack.c.l.b16 %v189
  %v895 = vunpack.c.h.b16 %v189
  %v896 = vunpack.c.l.b16 %v190
  %v897 = vunpack.c.h.b16 %v190
  %v898 = vunpack.c.l.b16 %v191
  %v899 = vunpack.c.h.b16 %v191
  %v900 = vunpack.c.l.b16 %v192
  %v901 = vunpack.c.h.b16 %v192
  %v902 = vunpack.c.l.b16 %v193
  %v903 = vunpack.c.h.b16 %v193
  %v904 = vunpack.c.l.b16 %v194
  %v905 = vunpack.c.h.b16 %v194
  %v906 = vunpack.c.l.b16 %v195
  %v907 = vunpack.c.h.b16 %v195
  %v908 = vunpack.c.l.b16 %v196
  %v909 = vunpack.c.h.b16 %v196
  %v910 = vunpack.c.l.b16 %v197
  %v911 = vunpack.c.h.b16 %v197
  %v912 = vunpack.c.l.b16 %v198
  %v913 = vunpack.c.h.b16 %v198
  %v914 = vunpack.c.l.b16 %v199
  %v915 = vunpack.c.h.b16 %v199
  %v916 = vunpack.c.l.b16 %v200
  %v917 = vunpack.c.h.b16 %v200
  %v918 = vunpack.c.l.b16 %v201
  %v919 = vunpack.c.h.b16 %v201
  %v920 = vunpack.c.l.b16 %v202
  %v921 = vunpack.c.h.b16 %v202
  %v922 = vunpack.c.l.b16 %v203
  %v923 = vunpack.c.h.b16 %v203
  %v924 = vunpack.c.l.b16 %v204
  %v925 = vunpack.c.h.b16 %v204
  %v926 = vunpack.c.l.b16 %v205
  %v927 = vunpack.c.h.b16 %v205
  %v928 = vunpack.c.l.b16 %v206
  %v929 = vunpack.c.h.b16 %v206
  %v930 = vunpack.c.l.b16 %v207
  %v931 = vunpack.c.h.b16 %v207
  %v932 = vunpack.c.l.b16 %v208
  %v933 = vunpack.c.h.b16 %v208
  %v934 = vunpack.c.l.b16 %v209
  %v935 = vunpack.c.h.b16 %v209
  %v936 = vunpack.c.l.b16 %v210
  %v937 = vunpack.c.h.b16 %v210
  %v938 = vunpack.c.l.b16 %v211
  %v939 = vunpack.c.h.b16 %v211
  %v940 = vunpack.c.l.b16 %v212
  %v941 = vunpack.c.h.b16 %v212
  %v942 = vunpack.c.l.b16 %v213
  %v943 = vunpack.c.h.b16 %v213
  %v944 = vunpack.c.l.b16 %v214
  %v945 = vunpack.c.h.b16 %v214
  %v946 = vunpack.c.l.b16 %v215
  %v947 = vunpack.c.h.b16 %v215
  %v948 = vunpack.c.l.b16 %v216
  %v949 = vunpack.c.h.b16 %v216
  %v950 = vunpack.c.l.b16 %v217
  %v951 = vunpack.c.h.b16 %v217
  %v952 = vunpack.c.l.b16 %v218
  %v953 = vunpack.c.h.b16 %v218
  %v954 = vunpack.c.l.b16 %v219
  %v955 = vunpack.c.h.b16 %v219
  %v956 = vunpack.c.l.b16 %v220
  %v957 = vunpack.c.h.b16 %v220
  %v958 = vunpack.c.l.b16 %v221
  %v959 = vunpack.c.h.b16 %v221
  %v960 = vunpack.c.l.b16 %v222
  %v961 = vunpack.c.h.b16 %v222
  %v962 = vunpack.c.l.b16 %v223
  %v963 = vunpack.c.h.b16 %v223
  %v964 = vunpack.c.l.b16 %v224
  %v965 = vunpack.c.h.b16 %v224
  %v966 = vunpack.c.l.b16 %v225
  %v967 = vunpack.c.h.b16 %v225
  %v968 = vunpack.c.l.b16 %v226
  %v969 = vunpack.c.h.b16 %v226
  %v970 = vunpack.c.l.b16 %v227
  %v971 = vunpack.c.h.b16 %v227
  %v972 = vunpack.c.l.b16 %v228
  %v973 = vunpack.c.h.b16 %v228
  %v974 = vunpack.c.l.b16 %v229
  %v975 = vunpack.c.h.b16 %v229
  %v976 = vunpack.c.l.b16 %v230
  %v977 = vunpack.c.h.b16 %v230
  %v978 = vunpack.c.l.b16 %v231
  %v979 = vunpack.c.h.b16 %v231
  %v980 = vunpack.c.l.b16 %v232
  %v981 = vunpack.c.h.b16 %v232
  %v982 = vunpack.c.l.b16 %v233
  %v983 = vunpack.c.h.b16 %v233
  %v984 = vunpack.c.l.b16 %v234
  %v985 = vunpack.c.h.b16 %v234
  %v986 = vunpack.c.l.b16 %v235
  %v987 = vunpack.c.h.b16 %v235
  %v988 = vunpack.c.l.b16 %v236
  %v989 = vunpack.c.h.b16 %v236
  %v990 = vunpack.c.l.b16 %v237
  %v991 = vunpack.c.h.b16 %v237
  %v992 = vunpack.c.l.b16 %v238
  %v993 = vunpack.c.h.b16 %v238
  %v994 = vunpack.c.l.b16 %v239
  %v995 = vunpack.c.h.b16 %v239
  %v996 = vunpack.c.l.b16 %v240
  %v997 = vunpack.c.h.b16 %v240
  %v998 = vunpack.c.l.b16 %v241
  %v999 = vunpack.c.h.b16 %v241
  %v1000 = vunpack.c.l.b16 %v242
  %v1001 = vunpack.c.h.b16 %v242
  %v1002 = vunpack.c.l.b16 %v243
  %v1003 = vunpack.c.h.b16 %v243
  %v1004 = vunpack.c.l.b16 %v244
  %v1005 = vunpack.c.h.b16 %v244
  %v1006 = vunpack.c.l.b16 %v245
  %v1007 = vunpack.c.h.b16 %v245
  %v1008 = vunpack.c.l.b16 %v246
  %v1009 = vunpack.c.h.b16 %v246
  %v1010 = vunpack.c.l.b16 %v247
  %v1011 = vunpack.c.h.b16 %v247
  %v1012 = vunpack.c.l.b16 %v248
  %v1013 = vunpack.c.h.b16 %v248
  %v1014 = vunpack.c.l.b16 %v249
  %v1015 = vunpack.c.h.b16 %v249
  %v1016 = vunpack.c.l.b16 %v250
  %v1017 = vunpack.c.h.b16 %v250
  %v1018 = vunpack.c.l.b16 %v251
  %v1019 = vunpack.c.h.b16 %v251
  %v1020 = vunpack.c.l.b16 %v252
  %v1021 = vunpack.c.h.b16 %v252
  %v1022 = vunpack.c.l.b16 %v253
  %v1023 = vunpack.c.h.b16 %v253
  %v1024 = vunpack.c.l.b16 %v254
  %v1025 = vunpack.c.h.b16 %v254
  %v1026 = vunpack.c.l.b16 %v255
  %v1027 = vunpack.c.h.b16 %v255
  %v1028 = vunpack.c.l.b16 %v256
  %v1029 = vunpack.c.h.b16 %v256
  %v1030 = vunpack.c.l.b16 %v257
  %v1031 = vunpack.c.h.b16 %v257
  %v1032 = vunpack.c.l.b16 %v258
  %v1033 = vunpack.c.h.b16 %v258
  %v1034 = vunpack.c.l.b16 %v259
  %v1035 = vunpack.c.h.b16 %v259
  %v1036 = vunpack.c.l.b16 %v260
  %v1037 = vunpack.c.h.b16 %v260
  %v1038 = vunpack.c.l.b16 %v261
  %v1039 = vunpack.c.h.b16 %v261
  %v1040 = vunpack.c.l.b16 %v262
  %v1041 = vunpack.c.h.b16 %v262
  %v1042 = vunpack.c.l.b16 %v263
  %v1043 = vunpack.c.h.b16 %v263
  %v1044 = vunpack.c.l.b16 %v264
  %v1045 = vunpack.c.h.b16 %v264
  %v1046 = vunpack.c.l.b16 %v265
  %v1047 = vunpack.c.h.b16 %v265
  %v1048 = vunpack.c.l.b16 %v266
  %v1049 = vunpack.c.h.b16 %v266
  %v1050 = vunpack.c.l.b16 %v267
  %v1051 = vunpack.c.h.b16 %v267
  %v1052 = vunpack.c.l.b16 %v268
  %v1053 = vunpack.c.h.b16 %v268
  %v1054 = vunpack.c.l.b16 %v269
  %v1055 = vunpack.c.h.b16 %v269
  %v1056 = vunpack.c.l.b16 %v270
  %v1057 = vunpack.c.h.b16 %v270
  %v1058 = vunpack.c.l.b16 %v271
  %v1059 = vunpack.c.h.b16 %v271
  %v1060 = vunpack.c.l.b16 %v272
  %v1061 = vunpack.c.h.b16 %v272
  %v1062 = vunpack.c.l.b16 %v273
  %v1063 = vunpack.c.h.b16 %v273
  %v1064 = vunpack.c.l.b16 %v274
  %v1065 = vunpack.c.h.b16 %v274
  %v1066 = vunpack.c.l.b16 %v275
  %v1067 = vunpack.c.h.b16 %v275
  %v1068 = vunpack.c.l.b16 %v276
  %v1069 = vunpack.c.h.b16 %v276
  %v1070 = vunpack.c.l.b16 %v277
  %v1071 = vunpack.c.h.b16 %v277
  %v1072 = vunpack.c.l.b16 %v278
  %v1073 = vunpack.c.h.b16 %v278
  %v1074 = vunpack.c.l.b16 %v279
  %v1075 = vunpack.c.h.b16 %v279
  %v1076 = vunpack.c.l.b16 %v280
  %v1077 = vunpack.c.h.b16 %v280
  %v1078 = vunpack.c.l.b16 %v281
  %v1079 = vunpack.c.h.b16 %v281
  %v1080 = vunpack.c.l.b16 %v282
  %v1081 = vunpack.c.h.b16 %v282
  %v1082 = vunpack.c.l.b16 %v283
  %v1083 = vunpack.c.h.b16 %v283
  %v1084 = vunpack.c.l.b16 %v284
  %v1085 = vunpack.c.h.b16 %v284
  %v1086 = vunpack.c.l.b16 %v285
  %v1087 = vunpack.c.h.b16 %v285
  %v1088 = vunpack.c.l.b16 %v286
  %v1089 = vunpack.c.h.b16 %v286
  %v1090 = vunpack.c.l.b16 %v287
  %v1091 = vunpack.c.h.b16 %v287
  %v1092 = vunpack.c.l.b16 %v288
  %v1093 = vunpack.c.h.b16 %v288
  %v1094 = vunpack.c.l.b16 %v289
  %v1095 = vunpack.c.h.b16 %v289
  %v1096 = vunpack.c.l.b16 %v290
  %v1097 = vunpack.c.h.b16 %v290
  %v1098 = vunpack.c.l.b16 %v291
  %v1099 = vunpack.c.h.b16 %v291
  %v1100 = vunpack.c.l.b16 %v292
  %v1101 = vunpack.c.h.b16 %v292
  %v1102 = vunpack.c.l.b16 %v293
  %v1103 = vunpack.c.h.b16 %v293
  %v1104 = vunpack.c.l.b16 %v294
  %v1105 = vunpack.c.h.b16 %v294
  %v1106 = vunpack.c.l.b16 %v295
  %v1107 = vunpack.c.h.b16 %v295
  %v1108 = vunpack.c.l.b16 %v296
  %v1109 = vunpack.c.h.b16 %v296
  %v1110 = vunpack.c.l.b16 %v297
  %v1111 = vunpack.c.h.b16 %v297
  %v1112 = vunpack.c.l.b16 %v298
  %v1113 = vunpack.c.h.b16 %v298
  %v1114 = vunpack.c.l.b16 %v299
  %v1115 = vunpack.c.h.b16 %v299
  %v1116 = vunpack.c.l.b16 %v300
  %v1117 = vunpack.c.h.b16 %v300
  %v1118 = vunpack.c.l.b16 %v301
  %v1119 = vunpack.c.h.b16 %v301
  %v1120 = vunpack.c.l.b16 %v302
  %v1121 = vunpack.c.h.b16 %v302
  %v1122 = vunpack.c.l.b16 %v303
  %v1123 = vunpack.c.h.b16 %v303
  %v1124 = vunpack.c.l.b16 %v304
  %v1125 = vunpack.c.h.b16 %v304
  %v1126 = vunpack.c.l.b16 %v305
  %v1127 = vunpack.c.h.b16 %v305
  %v1128 = vunpack.c.l.b16 %v306
  %v1129 = vunpack.c.h.b16 %v306
  %v1130 = vunpack.c.l.b16 %v307
  %v1131 = vunpack.c.h.b16 %v307
  %v1132 = vunpack.c.l.b16 %v308
  %v1133 = vunpack.c.h.b16 %v308
  %v1134 = vunpack.c.l.b16 %v309
  %v1135 = vunpack.c.h.b16 %v309
  %v1136 = vunpack.c.l.b16 %v310
  %v1137 = vunpack.c.h.b16 %v310
  %v1138 = vunpack.c.l.b16 %v311
  %v1139 = vunpack.c.h.b16 %v311
  %v1140 = vunpack.c.l.b16 %v312
  %v1141 = vunpack.c.h.b16 %v312
  %v1142 = vunpack.c.l.b16 %v313
  %v1143 = vunpack.c.h.b16 %v313
  %v1144 = vunpack.c.l.b16 %v314
  %v1145 = vunpack.c.h.b16 %v314
  %v1146 = vunpack.c.l.b16 %v315
  %v1147 = vunpack.c.h.b16 %v315
  %v1148 = vunpack.c.l.b16 %v316
  %v1149 = vunpack.c.h.b16 %v316
  %v1150 = vunpack.c.l.b16 %v317
  %v1151 = vunpack.c.h.b16 %v317
  %v1152 = vunpack.c.l.b16 %v318
  %v1153 = vunpack.c.h.b16 %v318
  %v1154 = vunpack.c.l.b16 %v319
  %v1155 = vunpack.c.h.b16 %v319
  %v1156 = vunpack.c.l.b16 %v320
  %v1157 = vunpack.c.h.b16 %v320
  %v1158 = vunpack.c.l.b16 %v321
  %v1159 = vunpack.c.h.b16 %v321
  %v1160 = vunpack.c.l.b16 %v322
  %v1161 = vunpack.c.h.b16 %v322
  %v1162 = vunpack.c.l.b16 %v323
  %v1163 = vunpack.c.h.b16 %v323
  %v1164 = vpack.c.b16 %v684, %v652
  %v1165 = vpack.c.b16 %v685, %v653
  %v1166 = vpack.c.b16 %v686, %v654
  %v1167 = vpack.c.b16 %v687, %v655
  %v1168 = vpack.c.b16 %v688, %v656
  %v1169 = vpack.c.b16 %v689, %v657
  %v1170 = vpack.c.b16 %v690, %v658
  %v1171 = vpack.c.b16 %v691, %v659
  %v1172 = vpack.c.b16 %v692, %v660
  %v1173 = vpack.c.b16 %v693, %v661
  %v1174 = vpack.c.b16 %v694, %v662
  %v1175 = vpack.c.b16 %v695, %v663
  %v1176 = vpack.c.b16 %v696, %v664
  %v1177 = vpack.c.b16 %v697, %v665
  %v1178 = vpack.c.b16 %v698, %v666
  %v1179 = vpack.c.b16 %v699, %v667
  %v1180 = vpack.c.b16 %v700, %v668
  %v1181 = vpack.c.b16 %v701, %v669
  %v1182 = vpack.c.b16 %v702, %v670
  %v1183 = vpack.c.b16 %v703, %v671
  %v1184 = vpack.c.b16 %v704, %v672
  %v1185 = vpack.c.b16 %v705, %v673
  %v1186 = vpack.c.b16 %v706, %v674
  %v1187 = vpack.c.b16 %v707, %v675
  %v1188 = vpack.c.b16 %v708, %v676
  %v1189 = vpack.c.b16 %v709, %v677
  %v1190 = vpack.c.b16 %v710, %v678
  %v1191 = vpack.c.b16 %v711, %v679
  %v1192 = vpack.c.b16 %v712, %v680
  %v1193 = vpack.c.b16 %v713, %v681
  %v1194 = vpack.c.b16 %v714, %v682
  %v1195 = vpack.c.b16 %v715, %v683
  %v1196 = vpack.c.b16 %v748, %v716
  %v1197 = vpack.c.b16 %v749, %v717
  %v1198 = vpack.c.b16 %v750, %v718
  %v1199 = vpack.c.b16 %v751, %v719
  %v1200 = vpack.c.b16 %v752, %v720
  %v1201 = vpack.c.b16 %v753, %v721
  %v1202 = vpack.c.b16 %v754, %v722
  %v1203 = vpack.c.b16 %v755, %v723
  %v1204 = vpack.c.b16 %v756, %v724
  %v1205 = vpack.c.b16 %v757, %v725
  %v1206 = vpack.c.b16 %v758, %v726
  %v1207 = vpack.c.b16 %v759, %v727
  %v1208 = vpack.c.b16 %v760, %v728
  %v1209 = vpack.c.b16 %v761, %v729
  %v1210 = vpack.c.b16 %v762, %v730
  %v1211 = vpack.c.b16 %v763, %v731
  %v1212 = vpack.c.b16 %v764, %v732
  %v1213 = vpack.c.b16 %v765, %v733
  %v1214 = vpack.c.b16 %v766, %v734
  %v1215 = vpack.c.b16 %v767, %v735
  %v1216 = vpack.c.b16 %v768, %v736
  %v1217 = vpack.c.b16 %v769, %v737
  %v1218 = vpack.c.b16 %v770, %v738
  %v1219 = vpack.c.b16 %v771, %v739
  %v1220 = vpack.c.b16 %v772, %v740
  %v1221 = vpack.c.b16 %v773, %v741
  %v1222 = vpack.c.b16 %v774, %v742
  %v1223 = vpack.c.b16 %v775, %v743
  %v1224 = vpack.c.b16 %v776, %v744
  %v1225 = vpack.c.b16 %v777, %v745
  %v1226 = vpack.c.b16 %v778, %v746
  %v1227 = vpack.c.b16 %v779, %v747
  %v1228 = vpack.c.b16 %v812, %v780
  %v1229 = vpack.c.b16 %v813, %v781
  %v1230 = vpack.c.b16 %v814, %v782
  %v1231 = vpack.c.b16 %v815, %v783
  %v1232 = vpack.c.b16 %v816, %v784
  %v1233 = vpack.c.b16 %v817, %v785
  %v1234 = vpack.c.b16 %v818, %v786
  %v1235 = vpack.c.b16 %v819, %v787
  %v1236 = vpack.c.b16 %v820, %v788
  %v1237 = vpack.c.b16 %v821, %v789
  %v1238 = vpack.c.b16 %v822, %v790
  %v1239 = vpack.c.b16 %v823, %v791
  %v1240 = vpack.c.b16 %v824, %v792
  %v1241 = vpack.c.b16 %v825, %v793
  %v1242 = vpack.c.b16 %v826, %v794
  %v1243 = vpack.c.b16 %v827, %v795
  %v1244 = vpack.c.b16 %v828, %v796
  %v1245 = vpack.c.b16 %v829, %v797
  %v1246 = vpack.c.b16 %v830, %v798
  %v1247 = vpack.c.b16 %v831, %v799
  %v1248 = vpack.c.b16 %v832, %v800
  %v1249 = vpack.c.b16 %v833, %v801
  %v1250 = vpack.c.b16 %v834, %v802
  %v1251 = vpack.c.b16 %v835, %v803
  %v1252 = vpack.c.b16 %v836, %v804
  %v1253 = vpack.c.b16 %v837, %v805
  %v1254 = vpack.c.b16 %v838, %v806
  %v1255 = vpack.c.b16 %v839, %v807
  %v1256 = vpack.c.b16 %v840, %v808
  %v1257 = vpack.c.b16 %v841, %v809
  %v1258 = vpack.c.b16 %v842, %v810
  %v1259 = vpack.c.b16 %v843, %v811
  %v1260 = vpack.c.b16 %v876, %v844
  %v1261 = vpack.c.b16 %v877, %v845
  %v1262 = vpack.c.b16 %v878, %v846
  %v1263 = vpack.c.b16 %v879, %v847
  %v1264 = vpack.c.b16 %v880, %v848
  %v1265 = vpack.c.b16 %v881, %v849
  %v1266 = vpack.c.b16 %v882, %v850
  %v1267 = vpack.c.b16 %v883, %v851
  %v1268 = vpack.c.b16 %v884, %v852
  %v1269 = vpack.c.b16 %v885, %v853
  %v1270 = vpack.c.b16 %v886, %v854
  %v1271 = vpack.c.b16 %v887, %v855
  %v1272 = vpack.c.b16 %v888, %v856
  %v1273 = vpack.c.b16 %v889, %v857
  %v1274 = vpack.c.b16 %v890, %v858
  %v1275 = vpack.c.b16 %v891, %v859
  %v1276 = vpack.c.b16 %v892, %v860
  %v1277 = vpack.c.b16 %v893, %v861
  %v1278 = vpack.c.b16 %v894, %v862
  %v1279 = vpack.c.b16 %v895, %v863
  %v1280 = vpack.c.b16 %v896, %v864
  %v1281 = vpack.c.b16 %v897, %v865
  %v1282 = vpack.c.b16 %v898, %v866
  %v1283 = vpack.c.b16 %v899, %v867
  %v1284 = vpack.c.b16 %v900, %v868
  %v1285 = vpack.c.b16 %v901, %v869
  %v1286 = vpack.c.b16 %v902, %v870
  %v1287 = vpack.c.b16 %v903, %v871
  %v1288 = vpack.c.b16 %v904, %v872
  %v1289 = vpack.c.b16 %v905, %v873
  %v1290 = vpack.c.b16 %v906, %v874
  %v1291 = vpack.c.b16 %v907, %v875
  %v1292 = vpack.c.b16 %v940, %v908
  %v1293 = vpack.c.b16 %v941, %v909
  %v1294 = vpack.c.b16 %v942, %v910
  %v1295 = vpack.c.b16 %v943, %v911
  %v1296 = vpack.c.b16 %v944, %v912
  %v1297 = vpack.c.b16 %v945, %v913
  %v1298 = vpack.c.b16 %v946, %v914
  %v1299 = vpack.c.b16 %v947, %v915
  %v1300 = vpack.c.b16 %v948, %v916
  %v1301 = vpack.c.b16 %v949, %v917
  %v1302 = vpack.c.b16 %v950, %v918
  %v1303 = vpack.c.b16 %v951, %v919
  %v1304 = vpack.c.b16 %v952, %v920
  %v1305 = vpack.c.b16 %v953, %v921
  %v1306 = vpack.c.b16 %v954, %v922
  %v1307 = vpack.c.b16 %v955, %v923
  %v1308 = vpack.c.b16 %v956, %v924
  %v1309 = vpack.c.b16 %v957, %v925
  %v1310 = vpack.c.b16 %v958, %v926
  %v1311 = vpack.c.b16 %v959, %v927
  %v1312 = vpack.c.b16 %v960, %v928
  %v1313 = vpack.c.b16 %v961, %v929
  %v1314 = vpack.c.b16 %v962, %v930
  %v1315 = vpack.c.b16 %v963, %v931
  %v1316 = vpack.c.b16 %v964, %v932
  %v1317 = vpack.c.b16 %v965, %v933
  %v1318 = vpack.c.b16 %v966, %v934
  %v1319 = vpack.c.b16 %v967, %v935
  %v1320 = vpack.c.b16 %v968, %v936
  %v1321 = vpack.c.b16 %v969, %v937
  %v1322 = vpack.c.b16 %v970, %v938
  %v1323 = vpack.c.b16 %v971, %v939
  %v1324 = vpack.c.b16 %v1004, %v972
  %v1325 = vpack.c.b16 %v1005, %v973
  %v1326 = vpack.c.b16 %v1006, %v974
  %v1327 = vpack.c.b16 %v1007, %v975
  %v1328 = vpack.c.b16 %v1008, %v976
  %v1329 = vpack.c.b16 %v1009, %v977
  %v1330 = vpack.c.b16 %v1010, %v978
  %v1331 = vpack.c.b16 %v1011, %v979
  %v1332 = vpack.c.b16 %v1012, %v980
  %v1333 = vpack.c.b16 %v1013, %v981
  %v1334 = vpack.c.b16 %v1014, %v982
  %v1335 = vpack.c.b16 %v1015, %v983
  %v1336 = vpack.c.b16 %v1016, %v984
  %v1337 = vpack.c.b16 %v1017, %v985
  %v1338 = vpack.c.b16 %v1018, %v986
  %v1339 = vpack.c.b16 %v1019, %v987
  %v1340 = vpack.c.b16 %v1020, %v988
  %v1341 = vpack.c.b16 %v1021, %v989
  %v1342 = vpack.c.b16 %v1022, %v990
  %v1343 = vpack.c.b16 %v1023, %v991
  %v1344 = vpack.c.b16 %v1024, %v992
  %v1345 = vpack.c.b16 %v1025, %v993
  %v1346 = vpack.c.b16 %v1026, %v994
  %v1347 = vpack.c.b16 %v1027, %v995
  %v1348 = vpack.c.b16 %v1028, %v996
  %v1349 = vpack.c.b16 %v1029, %v997
  %v1350 = vpack.c.b16 %v1030, %v998
  %v1351 = vpack.c.b16 %v1031, %v999
  %v1352 = vpack.c.b16 %v1032, %v1000
  %v1353 = vpack.c.b16 %v1033, %v1001
  %v1354 = vpack.c.b16 %v1034, %v1002
  %v1355 = vpack.c.b16 %v1035, %v1003
  %v1356 = vpack.c.b16 %v1068, %v1036
  %v1357 = vpack.c.b16 %v1069, %v1037
  %v1358 = vpack.c.b16 %v1070, %v1038
  %v1359 = vpack.c.b16 %v1071, %v1039
  %v1360 = vpack.c.b16 %v1072, %v1040
  %v1361 = vpack.c.b16 %v1073, %v1041
  %v1362 = vpack.c.b16 %v1074, %v1042
  %v1363 = vpack.c.b16 %v1075, %v1043
  %v1364 = vpack.c.b16 %v1076, %v1044
  %v1365 = vpack.c.b16 %v1077, %v1045
  %v1366 = vpack.c.b16 %v1078, %v1046
  %v1367 = vpack.c.b16 %v1079, %v1047
  %v1368 = vpack.c.b16 %v1080, %v1048
  %v1369 = vpack.c.b16 %v1081, %v1049
  %v1370 = vpack.c.b16 %v1082, %v1050
  %v1371 = vpack.c.b16 %v1083, %v1051
  %v1372 = vpack.c.b16 %v1084, %v1052
  %v1373 = vpack.c.b16 %v1085, %v1053
  %v1374 = vpack.c.b16 %v1086, %v1054
  %v1375 = vpack.c.b16 %v1087, %v1055
  %v1376 = vpack.c.b16 %v1088, %v1056
  %v1377 = vpack.c.b16 %v1089, %v1057
  %v1378 = vpack.c.b16 %v1090, %v1058
  %v1379 = vpack.c.b16 %v1091, %v1059
  %v1380 = vpack.c.b16 %v1092, %v1060
  %v1381 = vpack.c.b16 %v1093, %v1061
  %v1382 = vpack.c.b16 %v1094, %v1062
  %v1383 = vpack.c.b16 %v1095, %v1063
  %v1384 = vpack.c.b16 %v1096, %v1064
  %v1385 = vpack.c.b16 %v1097, %v1065
  %v1386 = vpack.c.b16 %v1098, %v1066
  %v1387 = vpack.c.b16 %v1099, %v1067
  %v1388 = vpack.c.b16 %v1132, %v1100
  %v1389 = vpack.c.b16 %v1133, %v1101
  %v1390 = vpack.c.b16 %v1134, %v1102
  %v1391 = vpack.c.b16 %v1135, %v1103
  %v1392 = vpack.c.b16 %v1136, %v1104
  %v1393 = vpack.c.b16 %v1137, %v1105
  %v1394 = vpack.c.b16 %v1138, %v1106
  %v1395 = vpack.c.b16 %v1139, %v1107
  %v1396 = vpack.c.b16 %v1140, %v1108
  %v1397 = vpack.c.b16 %v1141, %v1109
  %v1398 = vpack.c.b16 %v1142, %v1110
  %v1399 = vpack.c.b16 %v1143, %v1111
  %v1400 = vpack.c.b16 %v1144, %v1112
  %v1401 = vpack.c.b16 %v1145, %v1113
  %v1402 = vpack.c.b16 %v1146, %v1114
  %v1403 = vpack.c.b16 %v1147, %v1115
  %v1404 = vpack.c.b16 %v1148, %v1116
  %v1405 = vpack.c.b16 %v1149, %v1117
  %v1406 = vpack.c.b16 %v1150, %v1118
  %v1407 = vpack.c.b16 %v1151, %v1119
  %v1408 = vpack.c.b16 %v1152, %v1120
  %v1409 = vpack.c.b16 %v1153, %v1121
  %v1410 = vpack.c.b16 %v1154, %v1122
  %v1411 = vpack.c.b16 %v1155, %v1123
  %v1412 = vpack.c.b16 %v1156, %v1124
  %v1413 = vpack.c.b16 %v1157, %v1125
  %v1414 = vpack.c.b16 %v1158, %v1126
  %v1415 = vpack.c.b16 %v1159, %v1127
  %v1416 = vpack.c.b16 %v1160, %v1128
  %v1417 = vpack.c.b16 %v1161, %v1129
  %v1418 = vpack.c.b16 %v1162, %v1130
  %v1419 = vpack.c.b16 %v1163, %v1131
  %1676 = vmatpush.bf16.msra.mxu0 %v1388
  %1677 = vmatpush.bf16.msra.mxu0 %v1356
  %1678 = vmatpush.bf16.msra.mxu0 %v1324
  %1679 = vmatpush.bf16.msra.mxu0 %v1292
  %1680 = vmatpush.bf16.msra.mxu0 %v1260
  %1681 = vmatpush.bf16.msra.mxu0 %v1228
  %1682 = vmatpush.bf16.msra.mxu0 %v1196
  %1683 = vmatpush.bf16.msra.mxu0 %v1164
  %1684 = vmatmul.bf16.gmra.mxu0 %v67
  %v1685 = vpop.f32.mrf.mxu0
  %v1686 = vadd.f32 %v332, %v1685
  %v1687 = vpop.f32.mrf.mxu0
  %v1688 = vadd.f32 %v332, %v1687
  %1689 = vdwg.mxu0
  %1690 = vmatpush.bf16.msra.mxu0 %v1389
  %1691 = vmatpush.bf16.msra.mxu0 %v1357
  %1692 = vmatpush.bf16.msra.mxu0 %v1325
  %1693 = vmatpush.bf16.msra.mxu0 %v1293
  %1694 = vmatpush.bf16.msra.mxu0 %v1261
  %1695 = vmatpush.bf16.msra.mxu0 %v1229
  %1696 = vmatpush.bf16.msra.mxu0 %v1197
  %1697 = vmatpush.bf16.msra.mxu0 %v1165
  %1698 = vmatmul.bf16.gmra.mxu0 %v67
  %v1699 = vpop.f32.mrf.mxu0
  %v1700 = vadd.f32 %v333, %v1699
  %v1701 = vpop.f32.mrf.mxu0
  %v1702 = vadd.f32 %v333, %v1701
  %1703 = vdwg.mxu0
  %1704 = vmatpush.bf16.msra.mxu0 %v1390
  %1705 = vmatpush.bf16.msra.mxu0 %v1358
  %1706 = vmatpush.bf16.msra.mxu0 %v1326
  %1707 = vmatpush.bf16.msra.mxu0 %v1294
  %1708 = vmatpush.bf16.msra.mxu0 %v1262
  %1709 = vmatpush.bf16.msra.mxu0 %v1230
  %1710 = vmatpush.bf16.msra.mxu0 %v1198
  %1711 = vmatpush.bf16.msra.mxu0 %v1166
  %1712 = vmatmul.bf16.gmra.mxu0 %v67
  %v1713 = vpop.f32.mrf.mxu0
  %v1714 = vadd.f32 %v334, %v1713
  %v1715 = vpop.f32.mrf.mxu0
  %v1716 = vadd.f32 %v334, %v1715
  %1717 = vdwg.mxu0
  %1718 = vmatpush.bf16.msra.mxu0 %v1391
  %1719 = vmatpush.bf16.msra.mxu0 %v1359
  %1720 = vmatpush.bf16.msra.mxu0 %v1327
  %1721 = vmatpush.bf16.msra.mxu0 %v1295
  %1722 = vmatpush.bf16.msra.mxu0 %v1263
  %1723 = vmatpush.bf16.msra.mxu0 %v1231
  %1724 = vmatpush.bf16.msra.mxu0 %v1199
  %1725 = vmatpush.bf16.msra.mxu0 %v1167
  %1726 = vmatmul.bf16.gmra.mxu0 %v67
  %v1727 = vpop.f32.mrf.mxu0
  %v1728 = vadd.f32 %v335, %v1727
  %v1729 = vpop.f32.mrf.mxu0
  %v1730 = vadd.f32 %v335, %v1729
  %1731 = vdwg.mxu0
  %1732 = vmatpush.bf16.msra.mxu0 %v1392
  %1733 = vmatpush.bf16.msra.mxu0 %v1360
  %1734 = vmatpush.bf16.msra.mxu0 %v1328
  %1735 = vmatpush.bf16.msra.mxu0 %v1296
  %1736 = vmatpush.bf16.msra.mxu0 %v1264
  %1737 = vmatpush.bf16.msra.mxu0 %v1232
  %1738 = vmatpush.bf16.msra.mxu0 %v1200
  %1739 = vmatpush.bf16.msra.mxu0 %v1168
  %1740 = vmatmul.bf16.gmra.mxu0 %v67
  %v1741 = vpop.f32.mrf.mxu0
  %v1742 = vadd.f32 %v336, %v1741
  %v1743 = vpop.f32.mrf.mxu0
  %v1744 = vadd.f32 %v336, %v1743
  %1745 = vdwg.mxu0
  %1746 = vmatpush.bf16.msra.mxu0 %v1393
  %1747 = vmatpush.bf16.msra.mxu0 %v1361
  %1748 = vmatpush.bf16.msra.mxu0 %v1329
  %1749 = vmatpush.bf16.msra.mxu0 %v1297
  %1750 = vmatpush.bf16.msra.mxu0 %v1265
  %1751 = vmatpush.bf16.msra.mxu0 %v1233
  %1752 = vmatpush.bf16.msra.mxu0 %v1201
  %1753 = vmatpush.bf16.msra.mxu0 %v1169
  %1754 = vmatmul.bf16.gmra.mxu0 %v67
  %v1755 = vpop.f32.mrf.mxu0
  %v1756 = vadd.f32 %v337, %v1755
  %v1757 = vpop.f32.mrf.mxu0
  %v1758 = vadd.f32 %v337, %v1757
  %1759 = vdwg.mxu0
  %1760 = vmatpush.bf16.msra.mxu0 %v1394
  %1761 = vmatpush.bf16.msra.mxu0 %v1362
  %1762 = vmatpush.bf16.msra.mxu0 %v1330
  %1763 = vmatpush.bf16.msra.mxu0 %v1298
  %1764 = vmatpush.bf16.msra.mxu0 %v1266
  %1765 = vmatpush.bf16.msra.mxu0 %v1234
  %1766 = vmatpush.bf16.msra.mxu0 %v1202
  %1767 = vmatpush.bf16.msra.mxu0 %v1170
  %1768 = vmatmul.bf16.gmra.mxu0 %v67
  %v1769 = vpop.f32.mrf.mxu0
  %v1770 = vadd.f32 %v338, %v1769
  %v1771 = vpop.f32.mrf.mxu0
  %v1772 = vadd.f32 %v338, %v1771
  %1773 = vdwg.mxu0
  %1774 = vmatpush.bf16.msra.mxu0 %v1395
  %1775 = vmatpush.bf16.msra.mxu0 %v1363
  %1776 = vmatpush.bf16.msra.mxu0 %v1331
  %1777 = vmatpush.bf16.msra.mxu0 %v1299
  %1778 = vmatpush.bf16.msra.mxu0 %v1267
  %1779 = vmatpush.bf16.msra.mxu0 %v1235
  %1780 = vmatpush.bf16.msra.mxu0 %v1203
  %1781 = vmatpush.bf16.msra.mxu0 %v1171
  %1782 = vmatmul.bf16.gmra.mxu0 %v67
  %v1783 = vpop.f32.mrf.mxu0
  %v1784 = vadd.f32 %v339, %v1783
  %v1785 = vpop.f32.mrf.mxu0
  %v1786 = vadd.f32 %v339, %v1785
  %1787 = vdwg.mxu0
  %1788 = vmatpush.bf16.msra.mxu0 %v1396
  %1789 = vmatpush.bf16.msra.mxu0 %v1364
  %1790 = vmatpush.bf16.msra.mxu0 %v1332
  %1791 = vmatpush.bf16.msra.mxu0 %v1300
  %1792 = vmatpush.bf16.msra.mxu0 %v1268
  %1793 = vmatpush.bf16.msra.mxu0 %v1236
  %1794 = vmatpush.bf16.msra.mxu0 %v1204
  %1795 = vmatpush.bf16.msra.mxu0 %v1172
  %1796 = vmatmul.bf16.gmra.mxu0 %v67
  %v1797 = vpop.f32.mrf.mxu0
  %v1798 = vadd.f32 %v340, %v1797
  %v1799 = vpop.f32.mrf.mxu0
  %v1800 = vadd.f32 %v340, %v1799
  %1801 = vdwg.mxu0
  %1802 = vmatpush.bf16.msra.mxu0 %v1397
  %1803 = vmatpush.bf16.msra.mxu0 %v1365
  %1804 = vmatpush.bf16.msra.mxu0 %v1333
  %1805 = vmatpush.bf16.msra.mxu0 %v1301
  %1806 = vmatpush.bf16.msra.mxu0 %v1269
  %1807 = vmatpush.bf16.msra.mxu0 %v1237
  %1808 = vmatpush.bf16.msra.mxu0 %v1205
  %1809 = vmatpush.bf16.msra.mxu0 %v1173
  %1810 = vmatmul.bf16.gmra.mxu0 %v67
  %v1811 = vpop.f32.mrf.mxu0
  %v1812 = vadd.f32 %v341, %v1811
  %v1813 = vpop.f32.mrf.mxu0
  %v1814 = vadd.f32 %v341, %v1813
  %1815 = vdwg.mxu0
  %1816 = vmatpush.bf16.msra.mxu0 %v1398
  %1817 = vmatpush.bf16.msra.mxu0 %v1366
  %1818 = vmatpush.bf16.msra.mxu0 %v1334
  %1819 = vmatpush.bf16.msra.mxu0 %v1302
  %1820 = vmatpush.bf16.msra.mxu0 %v1270
  %1821 = vmatpush.bf16.msra.mxu0 %v1238
  %1822 = vmatpush.bf16.msra.mxu0 %v1206
  %1823 = vmatpush.bf16.msra.mxu0 %v1174
  %1824 = vmatmul.bf16.gmra.mxu0 %v67
  %v1825 = vpop.f32.mrf.mxu0
  %v1826 = vadd.f32 %v342, %v1825
  %v1827 = vpop.f32.mrf.mxu0
  %v1828 = vadd.f32 %v342, %v1827
  %1829 = vdwg.mxu0
  %1830 = vmatpush.bf16.msra.mxu0 %v1399
  %1831 = vmatpush.bf16.msra.mxu0 %v1367
  %1832 = vmatpush.bf16.msra.mxu0 %v1335
  %1833 = vmatpush.bf16.msra.mxu0 %v1303
  %1834 = vmatpush.bf16.msra.mxu0 %v1271
  %1835 = vmatpush.bf16.msra.mxu0 %v1239
  %1836 = vmatpush.bf16.msra.mxu0 %v1207
  %1837 = vmatpush.bf16.msra.mxu0 %v1175
  %1838 = vmatmul.bf16.gmra.mxu0 %v67
  %v1839 = vpop.f32.mrf.mxu0
  %v1840 = vadd.f32 %v343, %v1839
  %v1841 = vpop.f32.mrf.mxu0
  %v1842 = vadd.f32 %v343, %v1841
  %1843 = vdwg.mxu0
  %1844 = vmatpush.bf16.msra.mxu0 %v1400
  %1845 = vmatpush.bf16.msra.mxu0 %v1368
  %1846 = vmatpush.bf16.msra.mxu0 %v1336
  %1847 = vmatpush.bf16.msra.mxu0 %v1304
  %1848 = vmatpush.bf16.msra.mxu0 %v1272
  %1849 = vmatpush.bf16.msra.mxu0 %v1240
  %1850 = vmatpush.bf16.msra.mxu0 %v1208
  %1851 = vmatpush.bf16.msra.mxu0 %v1176
  %1852 = vmatmul.bf16.gmra.mxu0 %v67
  %v1853 = vpop.f32.mrf.mxu0
  %v1854 = vadd.f32 %v344, %v1853
  %v1855 = vpop.f32.mrf.mxu0
  %v1856 = vadd.f32 %v344, %v1855
  %1857 = vdwg.mxu0
  %1858 = vmatpush.bf16.msra.mxu0 %v1401
  %1859 = vmatpush.bf16.msra.mxu0 %v1369
  %1860 = vmatpush.bf16.msra.mxu0 %v1337
  %1861 = vmatpush.bf16.msra.mxu0 %v1305
  %1862 = vmatpush.bf16.msra.mxu0 %v1273
  %1863 = vmatpush.bf16.msra.mxu0 %v1241
  %1864 = vmatpush.bf16.msra.mxu0 %v1209
  %1865 = vmatpush.bf16.msra.mxu0 %v1177
  %1866 = vmatmul.bf16.gmra.mxu0 %v67
  %v1867 = vpop.f32.mrf.mxu0
  %v1868 = vadd.f32 %v345, %v1867
  %v1869 = vpop.f32.mrf.mxu0
  %v1870 = vadd.f32 %v345, %v1869
  %1871 = vdwg.mxu0
  %1872 = vmatpush.bf16.msra.mxu0 %v1402
  %1873 = vmatpush.bf16.msra.mxu0 %v1370
  %1874 = vmatpush.bf16.msra.mxu0 %v1338
  %1875 = vmatpush.bf16.msra.mxu0 %v1306
  %1876 = vmatpush.bf16.msra.mxu0 %v1274
  %1877 = vmatpush.bf16.msra.mxu0 %v1242
  %1878 = vmatpush.bf16.msra.mxu0 %v1210
  %1879 = vmatpush.bf16.msra.mxu0 %v1178
  %1880 = vmatmul.bf16.gmra.mxu0 %v67
  %v1881 = vpop.f32.mrf.mxu0
  %v1882 = vadd.f32 %v346, %v1881
  %v1883 = vpop.f32.mrf.mxu0
  %v1884 = vadd.f32 %v346, %v1883
  %1885 = vdwg.mxu0
  %1886 = vmatpush.bf16.msra.mxu0 %v1403
  %1887 = vmatpush.bf16.msra.mxu0 %v1371
  %1888 = vmatpush.bf16.msra.mxu0 %v1339
  %1889 = vmatpush.bf16.msra.mxu0 %v1307
  %1890 = vmatpush.bf16.msra.mxu0 %v1275
  %1891 = vmatpush.bf16.msra.mxu0 %v1243
  %1892 = vmatpush.bf16.msra.mxu0 %v1211
  %1893 = vmatpush.bf16.msra.mxu0 %v1179
  %1894 = vmatmul.bf16.gmra.mxu0 %v67
  %v1895 = vpop.f32.mrf.mxu0
  %v1896 = vadd.f32 %v347, %v1895
  %v1897 = vpop.f32.mrf.mxu0
  %v1898 = vadd.f32 %v347, %v1897
  %1899 = vdwg.mxu0
  %1900 = vmatpush.bf16.msra.mxu0 %v1404
  %1901 = vmatpush.bf16.msra.mxu0 %v1372
  %1902 = vmatpush.bf16.msra.mxu0 %v1340
  %1903 = vmatpush.bf16.msra.mxu0 %v1308
  %1904 = vmatpush.bf16.msra.mxu0 %v1276
  %1905 = vmatpush.bf16.msra.mxu0 %v1244
  %1906 = vmatpush.bf16.msra.mxu0 %v1212
  %1907 = vmatpush.bf16.msra.mxu0 %v1180
  %1908 = vmatmul.bf16.gmra.mxu0 %v67
  %v1909 = vpop.f32.mrf.mxu0
  %v1910 = vadd.f32 %v348, %v1909
  %v1911 = vpop.f32.mrf.mxu0
  %v1912 = vadd.f32 %v348, %v1911
  %1913 = vdwg.mxu0
  %1914 = vmatpush.bf16.msra.mxu0 %v1405
  %1915 = vmatpush.bf16.msra.mxu0 %v1373
  %1916 = vmatpush.bf16.msra.mxu0 %v1341
  %1917 = vmatpush.bf16.msra.mxu0 %v1309
  %1918 = vmatpush.bf16.msra.mxu0 %v1277
  %1919 = vmatpush.bf16.msra.mxu0 %v1245
  %1920 = vmatpush.bf16.msra.mxu0 %v1213
  %1921 = vmatpush.bf16.msra.mxu0 %v1181
  %1922 = vmatmul.bf16.gmra.mxu0 %v67
  %v1923 = vpop.f32.mrf.mxu0
  %v1924 = vadd.f32 %v349, %v1923
  %v1925 = vpop.f32.mrf.mxu0
  %v1926 = vadd.f32 %v349, %v1925
  %1927 = vdwg.mxu0
  %1928 = vmatpush.bf16.msra.mxu0 %v1406
  %1929 = vmatpush.bf16.msra.mxu0 %v1374
  %1930 = vmatpush.bf16.msra.mxu0 %v1342
  %1931 = vmatpush.bf16.msra.mxu0 %v1310
  %1932 = vmatpush.bf16.msra.mxu0 %v1278
  %1933 = vmatpush.bf16.msra.mxu0 %v1246
  %1934 = vmatpush.bf16.msra.mxu0 %v1214
  %1935 = vmatpush.bf16.msra.mxu0 %v1182
  %1936 = vmatmul.bf16.gmra.mxu0 %v67
  %v1937 = vpop.f32.mrf.mxu0
  %v1938 = vadd.f32 %v350, %v1937
  %v1939 = vpop.f32.mrf.mxu0
  %v1940 = vadd.f32 %v350, %v1939
  %1941 = vdwg.mxu0
  %1942 = vmatpush.bf16.msra.mxu0 %v1407
  %1943 = vmatpush.bf16.msra.mxu0 %v1375
  %1944 = vmatpush.bf16.msra.mxu0 %v1343
  %1945 = vmatpush.bf16.msra.mxu0 %v1311
  %1946 = vmatpush.bf16.msra.mxu0 %v1279
  %1947 = vmatpush.bf16.msra.mxu0 %v1247
  %1948 = vmatpush.bf16.msra.mxu0 %v1215
  %1949 = vmatpush.bf16.msra.mxu0 %v1183
  %1950 = vmatmul.bf16.gmra.mxu0 %v67
  %v1951 = vpop.f32.mrf.mxu0
  %v1952 = vadd.f32 %v351, %v1951
  %v1953 = vpop.f32.mrf.mxu0
  %v1954 = vadd.f32 %v351, %v1953
  %1955 = vdwg.mxu0
  %1956 = vmatpush.bf16.msra.mxu0 %v1408
  %1957 = vmatpush.bf16.msra.mxu0 %v1376
  %1958 = vmatpush.bf16.msra.mxu0 %v1344
  %1959 = vmatpush.bf16.msra.mxu0 %v1312
  %1960 = vmatpush.bf16.msra.mxu0 %v1280
  %1961 = vmatpush.bf16.msra.mxu0 %v1248
  %1962 = vmatpush.bf16.msra.mxu0 %v1216
  %1963 = vmatpush.bf16.msra.mxu0 %v1184
  %1964 = vmatmul.bf16.gmra.mxu0 %v67
  %v1965 = vpop.f32.mrf.mxu0
  %v1966 = vadd.f32 %v352, %v1965
  %v1967 = vpop.f32.mrf.mxu0
  %v1968 = vadd.f32 %v352, %v1967
  %1969 = vdwg.mxu0
  %1970 = vmatpush.bf16.msra.mxu0 %v1409
  %1971 = vmatpush.bf16.msra.mxu0 %v1377
  %1972 = vmatpush.bf16.msra.mxu0 %v1345
  %1973 = vmatpush.bf16.msra.mxu0 %v1313
  %1974 = vmatpush.bf16.msra.mxu0 %v1281
  %1975 = vmatpush.bf16.msra.mxu0 %v1249
  %1976 = vmatpush.bf16.msra.mxu0 %v1217
  %1977 = vmatpush.bf16.msra.mxu0 %v1185
  %1978 = vmatmul.bf16.gmra.mxu0 %v67
  %v1979 = vpop.f32.mrf.mxu0
  %v1980 = vadd.f32 %v353, %v1979
  %v1981 = vpop.f32.mrf.mxu0
  %v1982 = vadd.f32 %v353, %v1981
  %1983 = vdwg.mxu0
  %1984 = vmatpush.bf16.msra.mxu0 %v1410
  %1985 = vmatpush.bf16.msra.mxu0 %v1378
  %1986 = vmatpush.bf16.msra.mxu0 %v1346
  %1987 = vmatpush.bf16.msra.mxu0 %v1314
  %1988 = vmatpush.bf16.msra.mxu0 %v1282
  %1989 = vmatpush.bf16.msra.mxu0 %v1250
  %1990 = vmatpush.bf16.msra.mxu0 %v1218
  %1991 = vmatpush.bf16.msra.mxu0 %v1186
  %1992 = vmatmul.bf16.gmra.mxu0 %v67
  %v1993 = vpop.f32.mrf.mxu0
  %v1994 = vadd.f32 %v354, %v1993
  %v1995 = vpop.f32.mrf.mxu0
  %v1996 = vadd.f32 %v354, %v1995
  %1997 = vdwg.mxu0
  %1998 = vmatpush.bf16.msra.mxu0 %v1411
  %1999 = vmatpush.bf16.msra.mxu0 %v1379
  %2000 = vmatpush.bf16.msra.mxu0 %v1347
  %2001 = vmatpush.bf16.msra.mxu0 %v1315
  %2002 = vmatpush.bf16.msra.mxu0 %v1283
  %2003 = vmatpush.bf16.msra.mxu0 %v1251
  %2004 = vmatpush.bf16.msra.mxu0 %v1219
  %2005 = vmatpush.bf16.msra.mxu0 %v1187
  %2006 = vmatmul.bf16.gmra.mxu0 %v67
  %v2007 = vpop.f32.mrf.mxu0
  %v2008 = vadd.f32 %v355, %v2007
  %v2009 = vpop.f32.mrf.mxu0
  %v2010 = vadd.f32 %v355, %v2009
  %2011 = vdwg.mxu0
  %2012 = vmatpush.bf16.msra.mxu0 %v1412
  %2013 = vmatpush.bf16.msra.mxu0 %v1380
  %2014 = vmatpush.bf16.msra.mxu0 %v1348
  %2015 = vmatpush.bf16.msra.mxu0 %v1316
  %2016 = vmatpush.bf16.msra.mxu0 %v1284
  %2017 = vmatpush.bf16.msra.mxu0 %v1252
  %2018 = vmatpush.bf16.msra.mxu0 %v1220
  %2019 = vmatpush.bf16.msra.mxu0 %v1188
  %2020 = vmatmul.bf16.gmra.mxu0 %v67
  %v2021 = vpop.f32.mrf.mxu0
  %v2022 = vadd.f32 %v356, %v2021
  %v2023 = vpop.f32.mrf.mxu0
  %v2024 = vadd.f32 %v356, %v2023
  %2025 = vdwg.mxu0
  %2026 = vmatpush.bf16.msra.mxu0 %v1413
  %2027 = vmatpush.bf16.msra.mxu0 %v1381
  %2028 = vmatpush.bf16.msra.mxu0 %v1349
  %2029 = vmatpush.bf16.msra.mxu0 %v1317
  %2030 = vmatpush.bf16.msra.mxu0 %v1285
  %2031 = vmatpush.bf16.msra.mxu0 %v1253
  %2032 = vmatpush.bf16.msra.mxu0 %v1221
  %2033 = vmatpush.bf16.msra.mxu0 %v1189
  %2034 = vmatmul.bf16.gmra.mxu0 %v67
  %v2035 = vpop.f32.mrf.mxu0
  %v2036 = vadd.f32 %v357, %v2035
  %v2037 = vpop.f32.mrf.mxu0
  %v2038 = vadd.f32 %v357, %v2037
  %2039 = vdwg.mxu0
  %2040 = vmatpush.bf16.msra.mxu0 %v1414
  %2041 = vmatpush.bf16.msra.mxu0 %v1382
  %2042 = vmatpush.bf16.msra.mxu0 %v1350
  %2043 = vmatpush.bf16.msra.mxu0 %v1318
  %2044 = vmatpush.bf16.msra.mxu0 %v1286
  %2045 = vmatpush.bf16.msra.mxu0 %v1254
  %2046 = vmatpush.bf16.msra.mxu0 %v1222
  %2047 = vmatpush.bf16.msra.mxu0 %v1190
  %2048 = vmatmul.bf16.gmra.mxu0 %v67
  %v2049 = vpop.f32.mrf.mxu0
  %v2050 = vadd.f32 %v358, %v2049
  %v2051 = vpop.f32.mrf.mxu0
  %v2052 = vadd.f32 %v358, %v2051
  %2053 = vdwg.mxu0
  %2054 = vmatpush.bf16.msra.mxu0 %v1415
  %2055 = vmatpush.bf16.msra.mxu0 %v1383
  %2056 = vmatpush.bf16.msra.mxu0 %v1351
  %2057 = vmatpush.bf16.msra.mxu0 %v1319
  %2058 = vmatpush.bf16.msra.mxu0 %v1287
  %2059 = vmatpush.bf16.msra.mxu0 %v1255
  %2060 = vmatpush.bf16.msra.mxu0 %v1223
  %2061 = vmatpush.bf16.msra.mxu0 %v1191
  %2062 = vmatmul.bf16.gmra.mxu0 %v67
  %v2063 = vpop.f32.mrf.mxu0
  %v2064 = vadd.f32 %v359, %v2063
  %v2065 = vpop.f32.mrf.mxu0
  %v2066 = vadd.f32 %v359, %v2065
  %2067 = vdwg.mxu0
  %2068 = vmatpush.bf16.msra.mxu0 %v1416
  %2069 = vmatpush.bf16.msra.mxu0 %v1384
  %2070 = vmatpush.bf16.msra.mxu0 %v1352
  %2071 = vmatpush.bf16.msra.mxu0 %v1320
  %2072 = vmatpush.bf16.msra.mxu0 %v1288
  %2073 = vmatpush.bf16.msra.mxu0 %v1256
  %2074 = vmatpush.bf16.msra.mxu0 %v1224
  %2075 = vmatpush.bf16.msra.mxu0 %v1192
  %2076 = vmatmul.bf16.gmra.mxu0 %v67
  %v2077 = vpop.f32.mrf.mxu0
  %v2078 = vadd.f32 %v360, %v2077
  %v2079 = vpop.f32.mrf.mxu0
  %v2080 = vadd.f32 %v360, %v2079
  %2081 = vdwg.mxu0
  %2082 = vmatpush.bf16.msra.mxu0 %v1417
  %2083 = vmatpush.bf16.msra.mxu0 %v1385
  %2084 = vmatpush.bf16.msra.mxu0 %v1353
  %2085 = vmatpush.bf16.msra.mxu0 %v1321
  %2086 = vmatpush.bf16.msra.mxu0 %v1289
  %2087 = vmatpush.bf16.msra.mxu0 %v1257
  %2088 = vmatpush.bf16.msra.mxu0 %v1225
  %2089 = vmatpush.bf16.msra.mxu0 %v1193
  %2090 = vmatmul.bf16.gmra.mxu0 %v67
  %v2091 = vpop.f32.mrf.mxu0
  %v2092 = vadd.f32 %v361, %v2091
  %v2093 = vpop.f32.mrf.mxu0
  %v2094 = vadd.f32 %v361, %v2093
  %2095 = vdwg.mxu0
  %2096 = vmatpush.bf16.msra.mxu0 %v1418
  %2097 = vmatpush.bf16.msra.mxu0 %v1386
  %2098 = vmatpush.bf16.msra.mxu0 %v1354
  %2099 = vmatpush.bf16.msra.mxu0 %v1322
  %2100 = vmatpush.bf16.msra.mxu0 %v1290
  %2101 = vmatpush.bf16.msra.mxu0 %v1258
  %2102 = vmatpush.bf16.msra.mxu0 %v1226
  %2103 = vmatpush.bf16.msra.mxu0 %v1194
  %2104 = vmatmul.bf16.gmra.mxu0 %v67
  %v2105 = vpop.f32.mrf.mxu0
  %v2106 = vadd.f32 %v362, %v2105
  %v2107 = vpop.f32.mrf.mxu0
  %v2108 = vadd.f32 %v362, %v2107
  %2109 = vdwg.mxu0
  %2110 = vmatpush.bf16.msra.mxu0 %v1419
  %2111 = vmatpush.bf16.msra.mxu0 %v1387
  %2112 = vmatpush.bf16.msra.mxu0 %v1355
  %2113 = vmatpush.bf16.msra.mxu0 %v1323
  %2114 = vmatpush.bf16.msra.mxu0 %v1291
  %2115 = vmatpush.bf16.msra.mxu0 %v1259
  %2116 = vmatpush.bf16.msra.mxu0 %v1227
  %2117 = vmatpush.bf16.msra.mxu0 %v1195
  %2118 = vmatmul.bf16.gmra.mxu0 %v67
  %v2119 = vpop.f32.mrf.mxu0
  %v2120 = vadd.f32 %v363, %v2119
  %v2121 = vpop.f32.mrf.mxu0
  %v2122 = vadd.f32 %v363, %v2121
  %2123 = vdwg.mxu0
  %v2124 = vpack.c.bf16 %v1700, %v1686
  %v2125 = vpack.c.bf16 %v1728, %v1714
  %v2126 = vpack.c.bf16 %v1756, %v1742
  %v2127 = vpack.c.bf16 %v1784, %v1770
  %v2128 = vpack.c.bf16 %v1812, %v1798
  %v2129 = vpack.c.bf16 %v1840, %v1826
  %v2130 = vpack.c.bf16 %v1868, %v1854
  %v2131 = vpack.c.bf16 %v1896, %v1882
  %v2132 = vpack.c.bf16 %v1924, %v1910
  %v2133 = vpack.c.bf16 %v1952, %v1938
  %v2134 = vpack.c.bf16 %v1980, %v1966
  %v2135 = vpack.c.bf16 %v2008, %v1994
  %v2136 = vpack.c.bf16 %v2036, %v2022
  %v2137 = vpack.c.bf16 %v2064, %v2050
  %v2138 = vpack.c.bf16 %v2092, %v2078
  %v2139 = vpack.c.bf16 %v2120, %v2106
  %v2140 = vpack.c.bf16 %v1702, %v1688
  %v2141 = vpack.c.bf16 %v1730, %v1716
  %v2142 = vpack.c.bf16 %v1758, %v1744
  %v2143 = vpack.c.bf16 %v1786, %v1772
  %v2144 = vpack.c.bf16 %v1814, %v1800
  %v2145 = vpack.c.bf16 %v1842, %v1828
  %v2146 = vpack.c.bf16 %v1870, %v1856
  %v2147 = vpack.c.bf16 %v1898, %v1884
  %v2148 = vpack.c.bf16 %v1926, %v1912
  %v2149 = vpack.c.bf16 %v1954, %v1940
  %v2150 = vpack.c.bf16 %v1982, %v1968
  %v2151 = vpack.c.bf16 %v2010, %v1996
  %v2152 = vpack.c.bf16 %v2038, %v2024
  %v2153 = vpack.c.bf16 %v2066, %v2052
  %v2154 = vpack.c.bf16 %v2094, %v2080
  %v2155 = vpack.c.bf16 %v2122, %v2108
  %2156 = vst [vmem:[%s5] sm:$0xff] %v2124
  %2157 = vst [vmem:[%s5 + $0x8] sm:$0xff] %v2125
  %2158 = vst [vmem:[%s5 + $0x10] sm:$0xff] %v2126
  %2159 = vst [vmem:[%s5 + $0x18] sm:$0xff] %v2127
  %2160 = vst [vmem:[%s5 + $0x20] sm:$0xff] %v2128
  %2161 = vst [vmem:[%s5 + $0x28] sm:$0xff] %v2129
  %2162 = vst [vmem:[%s5 + $0x30] sm:$0xff] %v2130
  %2163 = vst [vmem:[%s5 + $0x38] sm:$0xff] %v2131
  %2164 = vst [vmem:[%s5 + $0x40] sm:$0xff] %v2132
  %2165 = vst [vmem:[%s5 + $0x48] sm:$0xff] %v2133
  %2166 = vst [vmem:[%s5 + $0x50] sm:$0xff] %v2134
  %2167 = vst [vmem:[%s5 + $0x58] sm:$0xff] %v2135
  %2168 = vst [vmem:[%s5 + $0x60] sm:$0xff] %v2136
  %2169 = vst [vmem:[%s5 + $0x68] sm:$0xff] %v2137
  %2170 = vst [vmem:[%s5 + $0x70] sm:$0xff] %v2138
  %2171 = vst [vmem:[%s5 + $0x78] sm:$0xff] %v2139
  %2172 = vst [vmem:[%s5 + $0x80] sm:$0xff] %v2140
  %2173 = vst [vmem:[%s5 + $0x88] sm:$0xff] %v2141
  %2174 = vst [vmem:[%s5 + $0x90] sm:$0xff] %v2142
  %2175 = vst [vmem:[%s5 + $0x98] sm:$0xff] %v2143
  %2176 = vst [vmem:[%s5 + $0xa0] sm:$0xff] %v2144
  %2177 = vst [vmem:[%s5 + $0xa8] sm:$0xff] %v2145
  %2178 = vst [vmem:[%s5 + $0xb0] sm:$0xff] %v2146
  %2179 = vst [vmem:[%s5 + $0xb8] sm:$0xff] %v2147
  %2180 = vst [vmem:[%s5 + $0xc0] sm:$0xff] %v2148
  %2181 = vst [vmem:[%s5 + $0xc8] sm:$0xff] %v2149
  %2182 = vst [vmem:[%s5 + $0xd0] sm:$0xff] %v2150
  %2183 = vst [vmem:[%s5 + $0xd8] sm:$0xff] %v2151
  %2184 = vst [vmem:[%s5 + $0xe0] sm:$0xff] %v2152
  %2185 = vst [vmem:[%s5 + $0xe8] sm:$0xff] %v2153
  %2186 = vst [vmem:[%s5 + $0xf0] sm:$0xff] %v2154
  %2187 = vst [vmem:[%s5 + $0xf8] sm:$0xff] %v2155
  // Predicated region
  $region22: #{mpnnet_forward.2} parent=0 // pred_check
    _
  $region23: #{mpnnet_forward.2} parent=0 // pred_check_branch
    %2189 = sbr.rel (0) target = $region25
  $region24: #{mpnnet_forward.2} parent=0 // pred_region
    _
  $region25: #{mpnnet_forward.2} parent=0 // pred_fallthru
    _
  // Predicated region
  $region26: #{mpnnet_forward.2} parent=0 // pred_check
    _
  $region27: #{mpnnet_forward.2} parent=0 // pred_check_branch
    %2191 = sbr.rel (0) target = $region29
  $region28: #{mpnnet_forward.2} parent=0 // pred_region
    _
  $region29: #{mpnnet_forward.2} parent=0 // pred_fallthru
    _

// kernel: mpnnet_forward.3
$region0: #{mpnnet_forward.3}
  #allocation0 [shape = 'u32[]', space=smem, size = 0x4, offset = 0x4, fixed_abs, tag = 'smem constant byte address 0x4 - core index']
  #allocation1 [shape = 'u32[72,128]{1,0:T(1,128)}', space=vmem, size = 0x9000, scoped, tag = 'internal scratch']
  #allocation2 [shape = 'f32[8,64]{1,0:T(8,128)}', space=vmem, size = 0x1000, scoped, tag = 'scratch operand']
  #allocation3 [shape = 'f32[2,128]{1,0:T(2,128)}', space=vmem, size = 0x400, scoped, tag = 'scratch operand']
  #allocation4 [shape = 'f32[2,64]{1,0:T(2,128)}', space=vmem, size = 0x400, scoped, tag = 'scratch operand']
  #allocation5 [shape = 'f32[2,64]{1,0:T(2,128)}', space=vmem, size = 0x400, scoped, tag = 'scratch operand']
  %s0 = inlined_call_operand.vmem [shape: f32[8,17], index: 0, kind: input, shape index: {}]
  %s1 = inlined_call_operand.vmem [shape: bf16[16,64,64], index: 1, kind: input, shape index: {}]
  %s2 = inlined_call_operand.vmem [shape: bf16[16,8], index: 2, kind: input, shape index: {}]
  %s3 = inlined_call_operand.vmem [shape: bf16[8,16], index: 3, kind: input, shape index: {}]
  %s4 = inlined_call_operand.vmem [shape: f32[8,1], index: 4, kind: input, shape index: {}]
  %s5 = inlined_call_operand.vmem [shape: f32[8,2], index: 5, kind: input, shape index: {}]
  %s6 = inlined_call_operand.vmem [shape: f32[2,8], index: 6, kind: input, shape index: {}]
  %s7 = inlined_call_operand.vmem [shape: f32[17,64], index: 7, kind: input, shape index: {}]
  %s8 = inlined_call_operand.vmem [shape: f32[1,64], index: 8, kind: input, shape index: {}]
  %s9 = inlined_call_operand.vmem [shape: f32[64,64], index: 9, kind: input, shape index: {}]
  %s10 = inlined_call_operand.vmem [shape: f32[1,64], index: 10, kind: input, shape index: {}]
  %s11 = inlined_call_operand.vmem [shape: f32[128,384], index: 11, kind: input, shape index: {}]
  %s12 = inlined_call_operand.vmem [shape: f32[1,384], index: 12, kind: input, shape index: {}]
  %s13 = inlined_call_operand.vmem [shape: f32[192,256], index: 13, kind: input, shape index: {}]
  %s14 = inlined_call_operand.vmem [shape: f32[1,256], index: 14, kind: input, shape index: {}]
  %s15 = inlined_call_operand.vmem [shape: f32[128,128], index: 15, kind: input, shape index: {}]
  %s16 = inlined_call_operand.vmem [shape: f32[1,128], index: 16, kind: input, shape index: {}]
  %s17 = inlined_call_operand.vmem [shape: f32[2,128], index: 17, kind: output, shape index: {}]
  %s18 = sld [smem:[#allocation0]]
  $region92: #{mpnnet_forward.3} parent=0
    _
  %s20 = ssub.s32 1, %s18
  %s21 = scalar_select 0, %s20, %s18
  // Predicated region
  $region2: #{mpnnet_forward.3} parent=0 // pred_check
    _
  $region3: #{mpnnet_forward.3} parent=0 // pred_check_branch
    %23 = sbr.rel (0) target = $region5
  $region4: #{mpnnet_forward.3} parent=0 // pred_region
    _
  $region5: #{mpnnet_forward.3} parent=0 // pred_fallthru
    _
  // Predicated region
  $region6: #{mpnnet_forward.3} parent=0 // pred_check
    _
  $region7: #{mpnnet_forward.3} parent=0 // pred_check_branch
    %25 = sbr.rel (0) target = $region9
  $region8: #{mpnnet_forward.3} parent=0 // pred_region
    _
  $region9: #{mpnnet_forward.3} parent=0 // pred_fallthru
    _
  // Predicated region
  $region10: #{mpnnet_forward.3} parent=0 // pred_check
    _
  $region11: #{mpnnet_forward.3} parent=0 // pred_check_branch
    %27 = sbr.rel (0) target = $region13
  $region12: #{mpnnet_forward.3} parent=0 // pred_region
    _
  $region13: #{mpnnet_forward.3} parent=0 // pred_fallthru
    _
  // Predicated region
  $region14: #{mpnnet_forward.3} parent=0 // pred_check
    _
  $region15: #{mpnnet_forward.3} parent=0 // pred_check_branch
    %29 = sbr.rel (0) target = $region17
  $region16: #{mpnnet_forward.3} parent=0 // pred_region
    _
  $region17: #{mpnnet_forward.3} parent=0 // pred_fallthru
    _
  // Predicated region
  $region18: #{mpnnet_forward.3} parent=0 // pred_check
    _
  $region19: #{mpnnet_forward.3} parent=0 // pred_check_branch
    %31 = sbr.rel (0) target = $region21
  $region20: #{mpnnet_forward.3} parent=0 // pred_region
    _
  $region21: #{mpnnet_forward.3} parent=0 // pred_fallthru
    _
  // Predicated region
  $region22: #{mpnnet_forward.3} parent=0 // pred_check
    _
  $region23: #{mpnnet_forward.3} parent=0 // pred_check_branch
    %33 = sbr.rel (0) target = $region25
  $region24: #{mpnnet_forward.3} parent=0 // pred_region
    _
  $region25: #{mpnnet_forward.3} parent=0 // pred_fallthru
    _
  // Predicated region
  $region26: #{mpnnet_forward.3} parent=0 // pred_check
    _
  $region27: #{mpnnet_forward.3} parent=0 // pred_check_branch
    %35 = sbr.rel (0) target = $region29
  $region28: #{mpnnet_forward.3} parent=0 // pred_region
    _
  $region29: #{mpnnet_forward.3} parent=0 // pred_fallthru
    _
  // Predicated region
  $region30: #{mpnnet_forward.3} parent=0 // pred_check
    _
  $region31: #{mpnnet_forward.3} parent=0 // pred_check_branch
    %37 = sbr.rel (0) target = $region33
  $region32: #{mpnnet_forward.3} parent=0 // pred_region
    _
  $region33: #{mpnnet_forward.3} parent=0 // pred_fallthru
    _
  // Predicated region
  $region34: #{mpnnet_forward.3} parent=0 // pred_check
    _
  $region35: #{mpnnet_forward.3} parent=0 // pred_check_branch
    %39 = sbr.rel (0) target = $region37
  $region36: #{mpnnet_forward.3} parent=0 // pred_region
    _
  $region37: #{mpnnet_forward.3} parent=0 // pred_fallthru
    _
  // Predicated region
  $region38: #{mpnnet_forward.3} parent=0 // pred_check
    _
  $region39: #{mpnnet_forward.3} parent=0 // pred_check_branch
    %41 = sbr.rel (0) target = $region41
  $region40: #{mpnnet_forward.3} parent=0 // pred_region
    _
  $region41: #{mpnnet_forward.3} parent=0 // pred_fallthru
    _
  // Predicated region
  $region42: #{mpnnet_forward.3} parent=0 // pred_check
    _
  $region43: #{mpnnet_forward.3} parent=0 // pred_check_branch
    %43 = sbr.rel (0) target = $region45
  $region44: #{mpnnet_forward.3} parent=0 // pred_region
    _
  $region45: #{mpnnet_forward.3} parent=0 // pred_fallthru
    _
  // Predicated region
  $region46: #{mpnnet_forward.3} parent=0 // pred_check
    _
  $region47: #{mpnnet_forward.3} parent=0 // pred_check_branch
    %45 = sbr.rel (0) target = $region49
  $region48: #{mpnnet_forward.3} parent=0 // pred_region
    _
  $region49: #{mpnnet_forward.3} parent=0 // pred_fallthru
    _
  // Predicated region
  $region50: #{mpnnet_forward.3} parent=0 // pred_check
    _
  $region51: #{mpnnet_forward.3} parent=0 // pred_check_branch
    %47 = sbr.rel (0) target = $region53
  $region52: #{mpnnet_forward.3} parent=0 // pred_region
    _
  $region53: #{mpnnet_forward.3} parent=0 // pred_fallthru
    _
  // Predicated region
  $region54: #{mpnnet_forward.3} parent=0 // pred_check
    _
  $region55: #{mpnnet_forward.3} parent=0 // pred_check_branch
    %49 = sbr.rel (0) target = $region57
  $region56: #{mpnnet_forward.3} parent=0 // pred_region
    _
  $region57: #{mpnnet_forward.3} parent=0 // pred_fallthru
    _
  // Predicated region
  $region58: #{mpnnet_forward.3} parent=0 // pred_check
    _
  $region59: #{mpnnet_forward.3} parent=0 // pred_check_branch
    %51 = sbr.rel (0) target = $region61
  $region60: #{mpnnet_forward.3} parent=0 // pred_region
    _
  $region61: #{mpnnet_forward.3} parent=0 // pred_fallthru
    _
  // Predicated region
  $region62: #{mpnnet_forward.3} parent=0 // pred_check
    _
  $region63: #{mpnnet_forward.3} parent=0 // pred_check_branch
    %53 = sbr.rel (0) target = $region65
  $region64: #{mpnnet_forward.3} parent=0 // pred_region
    _
  $region65: #{mpnnet_forward.3} parent=0 // pred_fallthru
    _
  // Predicated region
  $region66: #{mpnnet_forward.3} parent=0 // pred_check
    _
  $region67: #{mpnnet_forward.3} parent=0 // pred_check_branch
    %55 = sbr.rel (0) target = $region69
  $region68: #{mpnnet_forward.3} parent=0 // pred_region
    _
  $region69: #{mpnnet_forward.3} parent=0 // pred_fallthru
    _
  %v57 = vld [vmem:[%s0] sm:$0xff]
  %v58 = vld [vmem:[%s7] sm:$0xff]
  %v59 = vld [vmem:[%s7 + $0x8] sm:$0xff]
  %v60 = vld [vmem:[%s7 + $0x10] sm:$0x1]
  %v61 = vld [vmem:[%s8] sm:$0x1]
  %v63 = vperm.slane %v61, 0
  %vm65 = vcmask 138240
  %v67 = vsel %vm65, %v57, 0
  %vm69 = vcmask 1040384
  %v71 = vsel %vm69, %v60, 0
  %73 = vmatpush.msra.mxu0 0.0
  %74 = vmatpush.msra.mxu0 0.0
  %75 = vmatpush.msra.mxu0 0.0
  %76 = vmatpush.msra.mxu0 0.0
  %77 = vmatpush.msra.mxu0 0.0
  %78 = vmatpush.msra.mxu0 0.0
  %79 = vmatpush.msra.mxu0 0.0
  %80 = vmatpush.msra.mxu0 0.0
  %81 = vmatpush.msra.mxu0 0.0
  %82 = vmatpush.msra.mxu0 0.0
  %83 = vmatpush.msra.mxu0 0.0
  %84 = vmatpush.msra.mxu0 0.0
  %85 = vmatpush.msra.mxu0 0.0
  %86 = vmatpush.msra.mxu0 %v71
  %87 = vmatpush.msra.mxu0 %v59
  %88 = vmatpush.msra.mxu0 %v58
  %89 = vmatmul.f32.gmra.mxu0 %v67
  %v90 = vpop.f32.mrf.mxu0
  %v91 = vadd.f32 %v63, %v90
  %92 = vdwg.mxu0
  %vm93 = vcmp.gt.f32.partialorder %v91, 0.0
  %v94 = vmul.f32 %v91, 0.01
  %v95 = vsel %vm93, %v91, %v94
  %vm96 = vcmask 523264
  %97 = vst.msk [vmem:[#allocation2] sm:$0xff] %vm96, %v95
  loop: start=0, step=1, limit=12
  $region70: #{mpnnet_forward.3} parent=0 // loop_pre_header
    _
  $region71: #{mpnnet_forward.3} parent=0 // loop_header
    %s99 = sphi 0, %s103
    %p100 = scmp.ge.s32.totalorder %s99, 12
  $region72: #{mpnnet_forward.3} parent=0 // loop_header_branch
    %102 = sbr.rel (%p100) target = $region76
  $region73: #{mpnnet_forward.3} parent=0 // loop_body
    %v104 = vld [vmem:[#allocation2] sm:$0xff]
    %v105 = vpack.c.bf16 %v104, %v104
    %v106 = vld [vmem:[%s2] sm:$0xf]
    %v107 = vld [vmem:[%s2 + $0x4] sm:$0xf]
    %v110 = vunpack.c.l.b16 %v106
    %v111 = vunpack.c.l.b16 %v107
    %v112 = vpack.c.b16 %v111, %v110
    %vm113 = vcmask 64512
    %v115 = vsel %vm113, %v112, 0
    %vm117 = vcmask 1043456
    %v119 = vsel %vm117, %v105, 0
    %121 = vmatpush.bf16.msra.mxu0 0
    %122 = vmatpush.bf16.msra.mxu0 0
    %123 = vmatpush.bf16.msra.mxu0 0
    %124 = vmatpush.bf16.msra.mxu0 0
    %125 = vmatpush.bf16.msra.mxu0 0
    %126 = vmatpush.bf16.msra.mxu0 0
    %127 = vmatpush.bf16.msra.mxu0 0
    %128 = vmatpush.bf16.msra.mxu0 %v119
    %129 = vmatmul.bf16.gmra.mxu0 %v115
    %v130 = vpop.f32.mrf.mxu0
    %v131 = vadd.f32 0.0, %v130
    %v132 = vpop.f32.mrf.mxu0
    %v133 = vadd.f32 0.0, %v132
    %134 = vdwg.mxu0
    %v135 = vpack.c.bf16 %v131, %v131
    %v136 = vpack.c.bf16 %v133, %v133
    %v139 = vrot.slane %v135, 3
    %v140 = vrot.slane %v136, 3
    %v143 = vsel %vm69, %v135, %v139
    %vm145 = vcmask 1041409
    %v146 = vsel %vm145, %v135, %v139
    %v148 = vrot.slane %v146, 1
    %vm149 = vcmask 1042434
    %v150 = vsel %vm149, %v135, %v139
    %v152 = vrot.slane %v150, 2
    %vm153 = vcmask 1043459
    %v154 = vsel %vm153, %v135, %v139
    %v156 = vrot.slane %v154, 3
    %v159 = vsel %vm69, %v136, %v140
    %v161 = vsel %vm145, %v136, %v140
    %v163 = vrot.slane %v161, 1
    %v164 = vsel %vm149, %v136, %v140
    %v166 = vrot.slane %v164, 2
    %v167 = vsel %vm153, %v136, %v140
    %v169 = vrot.slane %v167, 3
    %v170 = vunpack.i.l.s16 %v143
    %v171 = vunpack.i.h.s16 %v143
    %v172 = vunpack.i.l.s16 %v148
    %v173 = vunpack.i.h.s16 %v148
    %v174 = vunpack.i.l.s16 %v152
    %v175 = vunpack.i.h.s16 %v152
    %v176 = vunpack.i.l.s16 %v156
    %v177 = vunpack.i.h.s16 %v156
    %v178 = vunpack.i.l.s16 %v159
    %v179 = vunpack.i.h.s16 %v159
    %v180 = vunpack.i.l.s16 %v163
    %v181 = vunpack.i.h.s16 %v163
    %v182 = vunpack.i.l.s16 %v166
    %v183 = vunpack.i.h.s16 %v166
    %v184 = vunpack.i.l.s16 %v169
    %v185 = vunpack.i.h.s16 %v169
    %v186 = vld [vmem:[%s1] sm:$0xf]
    %v187 = vld [vmem:[%s1 + $0x4] sm:$0xf]
    %v188 = vld [vmem:[%s1 + $0x8] sm:$0xf]
    %v189 = vld [vmem:[%s1 + $0xc] sm:$0xf]
    %v190 = vld [vmem:[%s1 + $0x10] sm:$0xf]
    %v191 = vld [vmem:[%s1 + $0x14] sm:$0xf]
    %v192 = vld [vmem:[%s1 + $0x18] sm:$0xf]
    %v193 = vld [vmem:[%s1 + $0x1c] sm:$0xf]
    %v194 = vld [vmem:[%s1 + $0x20] sm:$0xf]
    %v195 = vld [vmem:[%s1 + $0x24] sm:$0xf]
    %v196 = vld [vmem:[%s1 + $0x28] sm:$0xf]
    %v197 = vld [vmem:[%s1 + $0x2c] sm:$0xf]
    %v198 = vld [vmem:[%s1 + $0x30] sm:$0xf]
    %v199 = vld [vmem:[%s1 + $0x34] sm:$0xf]
    %v200 = vld [vmem:[%s1 + $0x38] sm:$0xf]
    %v201 = vld [vmem:[%s1 + $0x3c] sm:$0xf]
    %v202 = vld [vmem:[%s1 + $0x40] sm:$0xf]
    %v203 = vld [vmem:[%s1 + $0x44] sm:$0xf]
    %v204 = vld [vmem:[%s1 + $0x48] sm:$0xf]
    %v205 = vld [vmem:[%s1 + $0x4c] sm:$0xf]
    %v206 = vld [vmem:[%s1 + $0x50] sm:$0xf]
    %v207 = vld [vmem:[%s1 + $0x54] sm:$0xf]
    %v208 = vld [vmem:[%s1 + $0x58] sm:$0xf]
    %v209 = vld [vmem:[%s1 + $0x5c] sm:$0xf]
    %v210 = vld [vmem:[%s1 + $0x60] sm:$0xf]
    %v211 = vld [vmem:[%s1 + $0x64] sm:$0xf]
    %v212 = vld [vmem:[%s1 + $0x68] sm:$0xf]
    %v213 = vld [vmem:[%s1 + $0x6c] sm:$0xf]
    %v214 = vld [vmem:[%s1 + $0x70] sm:$0xf]
    %v215 = vld [vmem:[%s1 + $0x74] sm:$0xf]
    %v216 = vld [vmem:[%s1 + $0x78] sm:$0xf]
    %v217 = vld [vmem:[%s1 + $0x7c] sm:$0xf]
    %v218 = vld [vmem:[%s1 + $0x80] sm:$0xf]
    %v219 = vld [vmem:[%s1 + $0x84] sm:$0xf]
    %v220 = vld [vmem:[%s1 + $0x88] sm:$0xf]
    %v221 = vld [vmem:[%s1 + $0x8c] sm:$0xf]
    %v222 = vld [vmem:[%s1 + $0x90] sm:$0xf]
    %v223 = vld [vmem:[%s1 + $0x94] sm:$0xf]
    %v224 = vld [vmem:[%s1 + $0x98] sm:$0xf]
    %v225 = vld [vmem:[%s1 + $0x9c] sm:$0xf]
    %v226 = vld [vmem:[%s1 + $0xa0] sm:$0xf]
    %v227 = vld [vmem:[%s1 + $0xa4] sm:$0xf]
    %v228 = vld [vmem:[%s1 + $0xa8] sm:$0xf]
    %v229 = vld [vmem:[%s1 + $0xac] sm:$0xf]
    %v230 = vld [vmem:[%s1 + $0xb0] sm:$0xf]
    %v231 = vld [vmem:[%s1 + $0xb4] sm:$0xf]
    %v232 = vld [vmem:[%s1 + $0xb8] sm:$0xf]
    %v233 = vld [vmem:[%s1 + $0xbc] sm:$0xf]
    %v234 = vld [vmem:[%s1 + $0xc0] sm:$0xf]
    %v235 = vld [vmem:[%s1 + $0xc4] sm:$0xf]
    %v236 = vld [vmem:[%s1 + $0xc8] sm:$0xf]
    %v237 = vld [vmem:[%s1 + $0xcc] sm:$0xf]
    %v238 = vld [vmem:[%s1 + $0xd0] sm:$0xf]
    %v239 = vld [vmem:[%s1 + $0xd4] sm:$0xf]
    %v240 = vld [vmem:[%s1 + $0xd8] sm:$0xf]
    %v241 = vld [vmem:[%s1 + $0xdc] sm:$0xf]
    %v242 = vld [vmem:[%s1 + $0xe0] sm:$0xf]
    %v243 = vld [vmem:[%s1 + $0xe4] sm:$0xf]
    %v244 = vld [vmem:[%s1 + $0xe8] sm:$0xf]
    %v245 = vld [vmem:[%s1 + $0xec] sm:$0xf]
    %v246 = vld [vmem:[%s1 + $0xf0] sm:$0xf]
    %v247 = vld [vmem:[%s1 + $0xf4] sm:$0xf]
    %v248 = vld [vmem:[%s1 + $0xf8] sm:$0xf]
    %v249 = vld [vmem:[%s1 + $0xfc] sm:$0xf]
    %v250 = vld [vmem:[%s1 + $0x100] sm:$0xf]
    %v251 = vld [vmem:[%s1 + $0x104] sm:$0xf]
    %v252 = vld [vmem:[%s1 + $0x108] sm:$0xf]
    %v253 = vld [vmem:[%s1 + $0x10c] sm:$0xf]
    %v254 = vld [vmem:[%s1 + $0x110] sm:$0xf]
    %v255 = vld [vmem:[%s1 + $0x114] sm:$0xf]
    %v256 = vld [vmem:[%s1 + $0x118] sm:$0xf]
    %v257 = vld [vmem:[%s1 + $0x11c] sm:$0xf]
    %v258 = vld [vmem:[%s1 + $0x120] sm:$0xf]
    %v259 = vld [vmem:[%s1 + $0x124] sm:$0xf]
    %v260 = vld [vmem:[%s1 + $0x128] sm:$0xf]
    %v261 = vld [vmem:[%s1 + $0x12c] sm:$0xf]
    %v262 = vld [vmem:[%s1 + $0x130] sm:$0xf]
    %v263 = vld [vmem:[%s1 + $0x134] sm:$0xf]
    %v264 = vld [vmem:[%s1 + $0x138] sm:$0xf]
    %v265 = vld [vmem:[%s1 + $0x13c] sm:$0xf]
    %v266 = vld [vmem:[%s1 + $0x140] sm:$0xf]
    %v267 = vld [vmem:[%s1 + $0x144] sm:$0xf]
    %v268 = vld [vmem:[%s1 + $0x148] sm:$0xf]
    %v269 = vld [vmem:[%s1 + $0x14c] sm:$0xf]
    %v270 = vld [vmem:[%s1 + $0x150] sm:$0xf]
    %v271 = vld [vmem:[%s1 + $0x154] sm:$0xf]
    %v272 = vld [vmem:[%s1 + $0x158] sm:$0xf]
    %v273 = vld [vmem:[%s1 + $0x15c] sm:$0xf]
    %v274 = vld [vmem:[%s1 + $0x160] sm:$0xf]
    %v275 = vld [vmem:[%s1 + $0x164] sm:$0xf]
    %v276 = vld [vmem:[%s1 + $0x168] sm:$0xf]
    %v277 = vld [vmem:[%s1 + $0x16c] sm:$0xf]
    %v278 = vld [vmem:[%s1 + $0x170] sm:$0xf]
    %v279 = vld [vmem:[%s1 + $0x174] sm:$0xf]
    %v280 = vld [vmem:[%s1 + $0x178] sm:$0xf]
    %v281 = vld [vmem:[%s1 + $0x17c] sm:$0xf]
    %v282 = vld [vmem:[%s1 + $0x180] sm:$0xf]
    %v283 = vld [vmem:[%s1 + $0x184] sm:$0xf]
    %v284 = vld [vmem:[%s1 + $0x188] sm:$0xf]
    %v285 = vld [vmem:[%s1 + $0x18c] sm:$0xf]
    %v286 = vld [vmem:[%s1 + $0x190] sm:$0xf]
    %v287 = vld [vmem:[%s1 + $0x194] sm:$0xf]
    %v288 = vld [vmem:[%s1 + $0x198] sm:$0xf]
    %v289 = vld [vmem:[%s1 + $0x19c] sm:$0xf]
    %v290 = vld [vmem:[%s1 + $0x1a0] sm:$0xf]
    %v291 = vld [vmem:[%s1 + $0x1a4] sm:$0xf]
    %v292 = vld [vmem:[%s1 + $0x1a8] sm:$0xf]
    %v293 = vld [vmem:[%s1 + $0x1ac] sm:$0xf]
    %v294 = vld [vmem:[%s1 + $0x1b0] sm:$0xf]
    %v295 = vld [vmem:[%s1 + $0x1b4] sm:$0xf]
    %v296 = vld [vmem:[%s1 + $0x1b8] sm:$0xf]
    %v297 = vld [vmem:[%s1 + $0x1bc] sm:$0xf]
    %v298 = vld [vmem:[%s1 + $0x1c0] sm:$0xf]
    %v299 = vld [vmem:[%s1 + $0x1c4] sm:$0xf]
    %v300 = vld [vmem:[%s1 + $0x1c8] sm:$0xf]
    %v301 = vld [vmem:[%s1 + $0x1cc] sm:$0xf]
    %v302 = vld [vmem:[%s1 + $0x1d0] sm:$0xf]
    %v303 = vld [vmem:[%s1 + $0x1d4] sm:$0xf]
    %v304 = vld [vmem:[%s1 + $0x1d8] sm:$0xf]
    %v305 = vld [vmem:[%s1 + $0x1dc] sm:$0xf]
    %v306 = vld [vmem:[%s1 + $0x1e0] sm:$0xf]
    %v307 = vld [vmem:[%s1 + $0x1e4] sm:$0xf]
    %v308 = vld [vmem:[%s1 + $0x1e8] sm:$0xf]
    %v309 = vld [vmem:[%s1 + $0x1ec] sm:$0xf]
    %v310 = vld [vmem:[%s1 + $0x1f0] sm:$0xf]
    %v311 = vld [vmem:[%s1 + $0x1f4] sm:$0xf]
    %v312 = vld [vmem:[%s1 + $0x1f8] sm:$0xf]
    %v313 = vld [vmem:[%s1 + $0x1fc] sm:$0xf]
    %v314 = vpack.i.b16 %v170, %v170
    %v315 = vperm.slane %v314, 0
    %v324 = vunpack.c.l.b16 %v186
    %v325 = vunpack.c.l.b16 %v187
    %v326 = vunpack.c.l.b16 %v188
    %v327 = vunpack.c.l.b16 %v189
    %v328 = vunpack.c.l.b16 %v190
    %v329 = vunpack.c.l.b16 %v191
    %v330 = vunpack.c.l.b16 %v192
    %v331 = vunpack.c.l.b16 %v193
    %v332 = vpack.c.b16 %v325, %v324
    %v333 = vpack.c.b16 %v327, %v326
    %v334 = vpack.c.b16 %v329, %v328
    %v335 = vpack.c.b16 %v331, %v330
    %v341 = vsel %vm96, %v315, 0
    %343 = vmatpush.bf16.msra.mxu0 0
    %344 = vmatpush.bf16.msra.mxu0 0
    %345 = vmatpush.bf16.msra.mxu0 0
    %346 = vmatpush.bf16.msra.mxu0 0
    %347 = vmatpush.bf16.msra.mxu0 %v335
    %348 = vmatpush.bf16.msra.mxu0 %v334
    %349 = vmatpush.bf16.msra.mxu0 %v333
    %350 = vmatpush.bf16.msra.mxu0 %v332
    %351 = vmatmul.bf16.gmra.mxu0 %v341
    %v352 = vpop.f32.mrf.mxu0
    %v353 = vadd.f32 0.0, %v352
    %v354 = vpop.f32.mrf.mxu0
    %355 = vdwg.mxu0
    %v356 = vpack.i.b16 %v171, %v171
    %v357 = vperm.slane %v356, 0
    %v366 = vunpack.c.l.b16 %v194
    %v367 = vunpack.c.l.b16 %v195
    %v368 = vunpack.c.l.b16 %v196
    %v369 = vunpack.c.l.b16 %v197
    %v370 = vunpack.c.l.b16 %v198
    %v371 = vunpack.c.l.b16 %v199
    %v372 = vunpack.c.l.b16 %v200
    %v373 = vunpack.c.l.b16 %v201
    %v374 = vpack.c.b16 %v367, %v366
    %v375 = vpack.c.b16 %v369, %v368
    %v376 = vpack.c.b16 %v371, %v370
    %v377 = vpack.c.b16 %v373, %v372
    %v383 = vsel %vm96, %v357, 0
    %385 = vmatpush.bf16.msra.mxu0 0
    %386 = vmatpush.bf16.msra.mxu0 0
    %387 = vmatpush.bf16.msra.mxu0 0
    %388 = vmatpush.bf16.msra.mxu0 0
    %389 = vmatpush.bf16.msra.mxu0 %v377
    %390 = vmatpush.bf16.msra.mxu0 %v376
    %391 = vmatpush.bf16.msra.mxu0 %v375
    %392 = vmatpush.bf16.msra.mxu0 %v374
    %393 = vmatmul.bf16.gmra.mxu0 %v383
    %v394 = vpop.f32.mrf.mxu0
    %v395 = vadd.f32 0.0, %v394
    %v396 = vpop.f32.mrf.mxu0
    %397 = vdwg.mxu0
    %v398 = vpack.i.b16 %v172, %v172
    %v399 = vperm.slane %v398, 0
    %v408 = vunpack.c.l.b16 %v202
    %v409 = vunpack.c.l.b16 %v203
    %v410 = vunpack.c.l.b16 %v204
    %v411 = vunpack.c.l.b16 %v205
    %v412 = vunpack.c.l.b16 %v206
    %v413 = vunpack.c.l.b16 %v207
    %v414 = vunpack.c.l.b16 %v208
    %v415 = vunpack.c.l.b16 %v209
    %v416 = vpack.c.b16 %v409, %v408
    %v417 = vpack.c.b16 %v411, %v410
    %v418 = vpack.c.b16 %v413, %v412
    %v419 = vpack.c.b16 %v415, %v414
    %v425 = vsel %vm96, %v399, 0
    %427 = vmatpush.bf16.msra.mxu0 0
    %428 = vmatpush.bf16.msra.mxu0 0
    %429 = vmatpush.bf16.msra.mxu0 0
    %430 = vmatpush.bf16.msra.mxu0 0
    %431 = vmatpush.bf16.msra.mxu0 %v419
    %432 = vmatpush.bf16.msra.mxu0 %v418
    %433 = vmatpush.bf16.msra.mxu0 %v417
    %434 = vmatpush.bf16.msra.mxu0 %v416
    %435 = vmatmul.bf16.gmra.mxu0 %v425
    %v436 = vpop.f32.mrf.mxu0
    %v437 = vadd.f32 0.0, %v436
    %v438 = vpop.f32.mrf.mxu0
    %439 = vdwg.mxu0
    %v440 = vpack.i.b16 %v173, %v173
    %v441 = vperm.slane %v440, 0
    %v450 = vunpack.c.l.b16 %v210
    %v451 = vunpack.c.l.b16 %v211
    %v452 = vunpack.c.l.b16 %v212
    %v453 = vunpack.c.l.b16 %v213
    %v454 = vunpack.c.l.b16 %v214
    %v455 = vunpack.c.l.b16 %v215
    %v456 = vunpack.c.l.b16 %v216
    %v457 = vunpack.c.l.b16 %v217
    %v458 = vpack.c.b16 %v451, %v450
    %v459 = vpack.c.b16 %v453, %v452
    %v460 = vpack.c.b16 %v455, %v454
    %v461 = vpack.c.b16 %v457, %v456
    %v467 = vsel %vm96, %v441, 0
    %469 = vmatpush.bf16.msra.mxu0 0
    %470 = vmatpush.bf16.msra.mxu0 0
    %471 = vmatpush.bf16.msra.mxu0 0
    %472 = vmatpush.bf16.msra.mxu0 0
    %473 = vmatpush.bf16.msra.mxu0 %v461
    %474 = vmatpush.bf16.msra.mxu0 %v460
    %475 = vmatpush.bf16.msra.mxu0 %v459
    %476 = vmatpush.bf16.msra.mxu0 %v458
    %477 = vmatmul.bf16.gmra.mxu0 %v467
    %v478 = vpop.f32.mrf.mxu0
    %v479 = vadd.f32 0.0, %v478
    %v480 = vpop.f32.mrf.mxu0
    %481 = vdwg.mxu0
    %v482 = vpack.i.b16 %v174, %v174
    %v483 = vperm.slane %v482, 0
    %v492 = vunpack.c.l.b16 %v218
    %v493 = vunpack.c.l.b16 %v219
    %v494 = vunpack.c.l.b16 %v220
    %v495 = vunpack.c.l.b16 %v221
    %v496 = vunpack.c.l.b16 %v222
    %v497 = vunpack.c.l.b16 %v223
    %v498 = vunpack.c.l.b16 %v224
    %v499 = vunpack.c.l.b16 %v225
    %v500 = vpack.c.b16 %v493, %v492
    %v501 = vpack.c.b16 %v495, %v494
    %v502 = vpack.c.b16 %v497, %v496
    %v503 = vpack.c.b16 %v499, %v498
    %v509 = vsel %vm96, %v483, 0
    %511 = vmatpush.bf16.msra.mxu0 0
    %512 = vmatpush.bf16.msra.mxu0 0
    %513 = vmatpush.bf16.msra.mxu0 0
    %514 = vmatpush.bf16.msra.mxu0 0
    %515 = vmatpush.bf16.msra.mxu0 %v503
    %516 = vmatpush.bf16.msra.mxu0 %v502
    %517 = vmatpush.bf16.msra.mxu0 %v501
    %518 = vmatpush.bf16.msra.mxu0 %v500
    %519 = vmatmul.bf16.gmra.mxu0 %v509
    %v520 = vpop.f32.mrf.mxu0
    %v521 = vadd.f32 0.0, %v520
    %v522 = vpop.f32.mrf.mxu0
    %523 = vdwg.mxu0
    %v524 = vpack.i.b16 %v175, %v175
    %v525 = vperm.slane %v524, 0
    %v534 = vunpack.c.l.b16 %v226
    %v535 = vunpack.c.l.b16 %v227
    %v536 = vunpack.c.l.b16 %v228
    %v537 = vunpack.c.l.b16 %v229
    %v538 = vunpack.c.l.b16 %v230
    %v539 = vunpack.c.l.b16 %v231
    %v540 = vunpack.c.l.b16 %v232
    %v541 = vunpack.c.l.b16 %v233
    %v542 = vpack.c.b16 %v535, %v534
    %v543 = vpack.c.b16 %v537, %v536
    %v544 = vpack.c.b16 %v539, %v538
    %v545 = vpack.c.b16 %v541, %v540
    %v551 = vsel %vm96, %v525, 0
    %553 = vmatpush.bf16.msra.mxu0 0
    %554 = vmatpush.bf16.msra.mxu0 0
    %555 = vmatpush.bf16.msra.mxu0 0
    %556 = vmatpush.bf16.msra.mxu0 0
    %557 = vmatpush.bf16.msra.mxu0 %v545
    %558 = vmatpush.bf16.msra.mxu0 %v544
    %559 = vmatpush.bf16.msra.mxu0 %v543
    %560 = vmatpush.bf16.msra.mxu0 %v542
    %561 = vmatmul.bf16.gmra.mxu0 %v551
    %v562 = vpop.f32.mrf.mxu0
    %v563 = vadd.f32 0.0, %v562
    %v564 = vpop.f32.mrf.mxu0
    %565 = vdwg.mxu0
    %v566 = vpack.i.b16 %v176, %v176
    %v567 = vperm.slane %v566, 0
    %v576 = vunpack.c.l.b16 %v234
    %v577 = vunpack.c.l.b16 %v235
    %v578 = vunpack.c.l.b16 %v236
    %v579 = vunpack.c.l.b16 %v237
    %v580 = vunpack.c.l.b16 %v238
    %v581 = vunpack.c.l.b16 %v239
    %v582 = vunpack.c.l.b16 %v240
    %v583 = vunpack.c.l.b16 %v241
    %v584 = vpack.c.b16 %v577, %v576
    %v585 = vpack.c.b16 %v579, %v578
    %v586 = vpack.c.b16 %v581, %v580
    %v587 = vpack.c.b16 %v583, %v582
    %v593 = vsel %vm96, %v567, 0
    %595 = vmatpush.bf16.msra.mxu0 0
    %596 = vmatpush.bf16.msra.mxu0 0
    %597 = vmatpush.bf16.msra.mxu0 0
    %598 = vmatpush.bf16.msra.mxu0 0
    %599 = vmatpush.bf16.msra.mxu0 %v587
    %600 = vmatpush.bf16.msra.mxu0 %v586
    %601 = vmatpush.bf16.msra.mxu0 %v585
    %602 = vmatpush.bf16.msra.mxu0 %v584
    %603 = vmatmul.bf16.gmra.mxu0 %v593
    %v604 = vpop.f32.mrf.mxu0
    %v605 = vadd.f32 0.0, %v604
    %v606 = vpop.f32.mrf.mxu0
    %607 = vdwg.mxu0
    %v608 = vpack.i.b16 %v177, %v177
    %v609 = vperm.slane %v608, 0
    %v618 = vunpack.c.l.b16 %v242
    %v619 = vunpack.c.l.b16 %v243
    %v620 = vunpack.c.l.b16 %v244
    %v621 = vunpack.c.l.b16 %v245
    %v622 = vunpack.c.l.b16 %v246
    %v623 = vunpack.c.l.b16 %v247
    %v624 = vunpack.c.l.b16 %v248
    %v625 = vunpack.c.l.b16 %v249
    %v626 = vpack.c.b16 %v619, %v618
    %v627 = vpack.c.b16 %v621, %v620
    %v628 = vpack.c.b16 %v623, %v622
    %v629 = vpack.c.b16 %v625, %v624
    %v635 = vsel %vm96, %v609, 0
    %637 = vmatpush.bf16.msra.mxu0 0
    %638 = vmatpush.bf16.msra.mxu0 0
    %639 = vmatpush.bf16.msra.mxu0 0
    %640 = vmatpush.bf16.msra.mxu0 0
    %641 = vmatpush.bf16.msra.mxu0 %v629
    %642 = vmatpush.bf16.msra.mxu0 %v628
    %643 = vmatpush.bf16.msra.mxu0 %v627
    %644 = vmatpush.bf16.msra.mxu0 %v626
    %645 = vmatmul.bf16.gmra.mxu0 %v635
    %v646 = vpop.f32.mrf.mxu0
    %v647 = vadd.f32 0.0, %v646
    %v648 = vpop.f32.mrf.mxu0
    %649 = vdwg.mxu0
    %v650 = vpack.i.b16 %v178, %v178
    %v651 = vperm.slane %v650, 0
    %v660 = vunpack.c.l.b16 %v250
    %v661 = vunpack.c.l.b16 %v251
    %v662 = vunpack.c.l.b16 %v252
    %v663 = vunpack.c.l.b16 %v253
    %v664 = vunpack.c.l.b16 %v254
    %v665 = vunpack.c.l.b16 %v255
    %v666 = vunpack.c.l.b16 %v256
    %v667 = vunpack.c.l.b16 %v257
    %v668 = vpack.c.b16 %v661, %v660
    %v669 = vpack.c.b16 %v663, %v662
    %v670 = vpack.c.b16 %v665, %v664
    %v671 = vpack.c.b16 %v667, %v666
    %v677 = vsel %vm96, %v651, 0
    %679 = vmatpush.bf16.msra.mxu0 0
    %680 = vmatpush.bf16.msra.mxu0 0
    %681 = vmatpush.bf16.msra.mxu0 0
    %682 = vmatpush.bf16.msra.mxu0 0
    %683 = vmatpush.bf16.msra.mxu0 %v671
    %684 = vmatpush.bf16.msra.mxu0 %v670
    %685 = vmatpush.bf16.msra.mxu0 %v669
    %686 = vmatpush.bf16.msra.mxu0 %v668
    %687 = vmatmul.bf16.gmra.mxu0 %v677
    %v688 = vpop.f32.mrf.mxu0
    %v689 = vadd.f32 0.0, %v688
    %v690 = vpop.f32.mrf.mxu0
    %691 = vdwg.mxu0
    %v692 = vpack.i.b16 %v179, %v179
    %v693 = vperm.slane %v692, 0
    %v702 = vunpack.c.l.b16 %v258
    %v703 = vunpack.c.l.b16 %v259
    %v704 = vunpack.c.l.b16 %v260
    %v705 = vunpack.c.l.b16 %v261
    %v706 = vunpack.c.l.b16 %v262
    %v707 = vunpack.c.l.b16 %v263
    %v708 = vunpack.c.l.b16 %v264
    %v709 = vunpack.c.l.b16 %v265
    %v710 = vpack.c.b16 %v703, %v702
    %v711 = vpack.c.b16 %v705, %v704
    %v712 = vpack.c.b16 %v707, %v706
    %v713 = vpack.c.b16 %v709, %v708
    %v719 = vsel %vm96, %v693, 0
    %721 = vmatpush.bf16.msra.mxu0 0
    %722 = vmatpush.bf16.msra.mxu0 0
    %723 = vmatpush.bf16.msra.mxu0 0
    %724 = vmatpush.bf16.msra.mxu0 0
    %725 = vmatpush.bf16.msra.mxu0 %v713
    %726 = vmatpush.bf16.msra.mxu0 %v712
    %727 = vmatpush.bf16.msra.mxu0 %v711
    %728 = vmatpush.bf16.msra.mxu0 %v710
    %729 = vmatmul.bf16.gmra.mxu0 %v719
    %v730 = vpop.f32.mrf.mxu0
    %v731 = vadd.f32 0.0, %v730
    %v732 = vpop.f32.mrf.mxu0
    %733 = vdwg.mxu0
    %v734 = vpack.i.b16 %v180, %v180
    %v735 = vperm.slane %v734, 0
    %v744 = vunpack.c.l.b16 %v266
    %v745 = vunpack.c.l.b16 %v267
    %v746 = vunpack.c.l.b16 %v268
    %v747 = vunpack.c.l.b16 %v269
    %v748 = vunpack.c.l.b16 %v270
    %v749 = vunpack.c.l.b16 %v271
    %v750 = vunpack.c.l.b16 %v272
    %v751 = vunpack.c.l.b16 %v273
    %v752 = vpack.c.b16 %v745, %v744
    %v753 = vpack.c.b16 %v747, %v746
    %v754 = vpack.c.b16 %v749, %v748
    %v755 = vpack.c.b16 %v751, %v750
    %v761 = vsel %vm96, %v735, 0
    %763 = vmatpush.bf16.msra.mxu0 0
    %764 = vmatpush.bf16.msra.mxu0 0
    %765 = vmatpush.bf16.msra.mxu0 0
    %766 = vmatpush.bf16.msra.mxu0 0
    %767 = vmatpush.bf16.msra.mxu0 %v755
    %768 = vmatpush.bf16.msra.mxu0 %v754
    %769 = vmatpush.bf16.msra.mxu0 %v753
    %770 = vmatpush.bf16.msra.mxu0 %v752
    %771 = vmatmul.bf16.gmra.mxu0 %v761
    %v772 = vpop.f32.mrf.mxu0
    %v773 = vadd.f32 0.0, %v772
    %v774 = vpop.f32.mrf.mxu0
    %775 = vdwg.mxu0
    %v776 = vpack.i.b16 %v181, %v181
    %v777 = vperm.slane %v776, 0
    %v786 = vunpack.c.l.b16 %v274
    %v787 = vunpack.c.l.b16 %v275
    %v788 = vunpack.c.l.b16 %v276
    %v789 = vunpack.c.l.b16 %v277
    %v790 = vunpack.c.l.b16 %v278
    %v791 = vunpack.c.l.b16 %v279
    %v792 = vunpack.c.l.b16 %v280
    %v793 = vunpack.c.l.b16 %v281
    %v794 = vpack.c.b16 %v787, %v786
    %v795 = vpack.c.b16 %v789, %v788
    %v796 = vpack.c.b16 %v791, %v790
    %v797 = vpack.c.b16 %v793, %v792
    %v803 = vsel %vm96, %v777, 0
    %805 = vmatpush.bf16.msra.mxu0 0
    %806 = vmatpush.bf16.msra.mxu0 0
    %807 = vmatpush.bf16.msra.mxu0 0
    %808 = vmatpush.bf16.msra.mxu0 0
    %809 = vmatpush.bf16.msra.mxu0 %v797
    %810 = vmatpush.bf16.msra.mxu0 %v796
    %811 = vmatpush.bf16.msra.mxu0 %v795
    %812 = vmatpush.bf16.msra.mxu0 %v794
    %813 = vmatmul.bf16.gmra.mxu0 %v803
    %v814 = vpop.f32.mrf.mxu0
    %v815 = vadd.f32 0.0, %v814
    %v816 = vpop.f32.mrf.mxu0
    %817 = vdwg.mxu0
    %v818 = vpack.i.b16 %v182, %v182
    %v819 = vperm.slane %v818, 0
    %v828 = vunpack.c.l.b16 %v282
    %v829 = vunpack.c.l.b16 %v283
    %v830 = vunpack.c.l.b16 %v284
    %v831 = vunpack.c.l.b16 %v285
    %v832 = vunpack.c.l.b16 %v286
    %v833 = vunpack.c.l.b16 %v287
    %v834 = vunpack.c.l.b16 %v288
    %v835 = vunpack.c.l.b16 %v289
    %v836 = vpack.c.b16 %v829, %v828
    %v837 = vpack.c.b16 %v831, %v830
    %v838 = vpack.c.b16 %v833, %v832
    %v839 = vpack.c.b16 %v835, %v834
    %v845 = vsel %vm96, %v819, 0
    %847 = vmatpush.bf16.msra.mxu0 0
    %848 = vmatpush.bf16.msra.mxu0 0
    %849 = vmatpush.bf16.msra.mxu0 0
    %850 = vmatpush.bf16.msra.mxu0 0
    %851 = vmatpush.bf16.msra.mxu0 %v839
    %852 = vmatpush.bf16.msra.mxu0 %v838
    %853 = vmatpush.bf16.msra.mxu0 %v837
    %854 = vmatpush.bf16.msra.mxu0 %v836
    %855 = vmatmul.bf16.gmra.mxu0 %v845
    %v856 = vpop.f32.mrf.mxu0
    %v857 = vadd.f32 0.0, %v856
    %v858 = vpop.f32.mrf.mxu0
    %859 = vdwg.mxu0
    %v860 = vpack.i.b16 %v183, %v183
    %v861 = vperm.slane %v860, 0
    %v870 = vunpack.c.l.b16 %v290
    %v871 = vunpack.c.l.b16 %v291
    %v872 = vunpack.c.l.b16 %v292
    %v873 = vunpack.c.l.b16 %v293
    %v874 = vunpack.c.l.b16 %v294
    %v875 = vunpack.c.l.b16 %v295
    %v876 = vunpack.c.l.b16 %v296
    %v877 = vunpack.c.l.b16 %v297
    %v878 = vpack.c.b16 %v871, %v870
    %v879 = vpack.c.b16 %v873, %v872
    %v880 = vpack.c.b16 %v875, %v874
    %v881 = vpack.c.b16 %v877, %v876
    %v887 = vsel %vm96, %v861, 0
    %889 = vmatpush.bf16.msra.mxu0 0
    %890 = vmatpush.bf16.msra.mxu0 0
    %891 = vmatpush.bf16.msra.mxu0 0
    %892 = vmatpush.bf16.msra.mxu0 0
    %893 = vmatpush.bf16.msra.mxu0 %v881
    %894 = vmatpush.bf16.msra.mxu0 %v880
    %895 = vmatpush.bf16.msra.mxu0 %v879
    %896 = vmatpush.bf16.msra.mxu0 %v878
    %897 = vmatmul.bf16.gmra.mxu0 %v887
    %v898 = vpop.f32.mrf.mxu0
    %v899 = vadd.f32 0.0, %v898
    %v900 = vpop.f32.mrf.mxu0
    %901 = vdwg.mxu0
    %v902 = vpack.i.b16 %v184, %v184
    %v903 = vperm.slane %v902, 0
    %v912 = vunpack.c.l.b16 %v298
    %v913 = vunpack.c.l.b16 %v299
    %v914 = vunpack.c.l.b16 %v300
    %v915 = vunpack.c.l.b16 %v301
    %v916 = vunpack.c.l.b16 %v302
    %v917 = vunpack.c.l.b16 %v303
    %v918 = vunpack.c.l.b16 %v304
    %v919 = vunpack.c.l.b16 %v305
    %v920 = vpack.c.b16 %v913, %v912
    %v921 = vpack.c.b16 %v915, %v914
    %v922 = vpack.c.b16 %v917, %v916
    %v923 = vpack.c.b16 %v919, %v918
    %v929 = vsel %vm96, %v903, 0
    %931 = vmatpush.bf16.msra.mxu0 0
    %932 = vmatpush.bf16.msra.mxu0 0
    %933 = vmatpush.bf16.msra.mxu0 0
    %934 = vmatpush.bf16.msra.mxu0 0
    %935 = vmatpush.bf16.msra.mxu0 %v923
    %936 = vmatpush.bf16.msra.mxu0 %v922
    %937 = vmatpush.bf16.msra.mxu0 %v921
    %938 = vmatpush.bf16.msra.mxu0 %v920
    %939 = vmatmul.bf16.gmra.mxu0 %v929
    %v940 = vpop.f32.mrf.mxu0
    %v941 = vadd.f32 0.0, %v940
    %v942 = vpop.f32.mrf.mxu0
    %943 = vdwg.mxu0
    %v944 = vpack.i.b16 %v185, %v185
    %v945 = vperm.slane %v944, 0
    %v954 = vunpack.c.l.b16 %v306
    %v955 = vunpack.c.l.b16 %v307
    %v956 = vunpack.c.l.b16 %v308
    %v957 = vunpack.c.l.b16 %v309
    %v958 = vunpack.c.l.b16 %v310
    %v959 = vunpack.c.l.b16 %v311
    %v960 = vunpack.c.l.b16 %v312
    %v961 = vunpack.c.l.b16 %v313
    %v962 = vpack.c.b16 %v955, %v954
    %v963 = vpack.c.b16 %v957, %v956
    %v964 = vpack.c.b16 %v959, %v958
    %v965 = vpack.c.b16 %v961, %v960
    %v971 = vsel %vm96, %v945, 0
    %973 = vmatpush.bf16.msra.mxu0 0
    %974 = vmatpush.bf16.msra.mxu0 0
    %975 = vmatpush.bf16.msra.mxu0 0
    %976 = vmatpush.bf16.msra.mxu0 0
    %977 = vmatpush.bf16.msra.mxu0 %v965
    %978 = vmatpush.bf16.msra.mxu0 %v964
    %979 = vmatpush.bf16.msra.mxu0 %v963
    %980 = vmatpush.bf16.msra.mxu0 %v962
    %981 = vmatmul.bf16.gmra.mxu0 %v971
    %v982 = vpop.f32.mrf.mxu0
    %v983 = vadd.f32 0.0, %v982
    %v984 = vpop.f32.mrf.mxu0
    %985 = vdwg.mxu0
    %v986 = vld [vmem:[%s3] sm:$0xf]
    %v987 = vpack.c.bf16 %v353, %v353
    %v988 = vpack.c.bf16 %v395, %v395
    %v989 = vpack.c.bf16 %v437, %v437
    %v990 = vpack.c.bf16 %v479, %v479
    %v991 = vpack.c.bf16 %v521, %v521
    %v992 = vpack.c.bf16 %v563, %v563
    %v993 = vpack.c.bf16 %v605, %v605
    %v994 = vpack.c.bf16 %v647, %v647
    %v995 = vpack.c.bf16 %v689, %v689
    %v996 = vpack.c.bf16 %v731, %v731
    %v997 = vpack.c.bf16 %v773, %v773
    %v998 = vpack.c.bf16 %v815, %v815
    %v999 = vpack.c.bf16 %v857, %v857
    %v1000 = vpack.c.bf16 %v899, %v899
    %v1001 = vpack.c.bf16 %v941, %v941
    %v1002 = vpack.c.bf16 %v983, %v983
    %v1019 = vunpack.c.l.b16 %v987
    %v1020 = vunpack.c.l.b16 %v988
    %v1021 = vunpack.c.l.b16 %v989
    %v1022 = vunpack.c.l.b16 %v990
    %v1023 = vunpack.c.l.b16 %v991
    %v1024 = vunpack.c.l.b16 %v992
    %v1025 = vunpack.c.l.b16 %v993
    %v1026 = vunpack.c.l.b16 %v994
    %v1027 = vunpack.c.l.b16 %v995
    %v1028 = vunpack.c.l.b16 %v996
    %v1029 = vunpack.c.l.b16 %v997
    %v1030 = vunpack.c.l.b16 %v998
    %v1031 = vunpack.c.l.b16 %v999
    %v1032 = vunpack.c.l.b16 %v1000
    %v1033 = vunpack.c.l.b16 %v1001
    %v1034 = vunpack.c.l.b16 %v1002
    %v1035 = vrot.slane %v1020, 7
    %v1036 = vsel %vm145, %v1035, %v1019
    %v1037 = vrot.slane %v1021, 6
    %v1038 = vsel %vm149, %v1037, %v1036
    %v1039 = vrot.slane %v1022, 5
    %v1040 = vsel %vm153, %v1039, %v1038
    %v1041 = vrot.slane %v1023, 4
    %vm1042 = vcmask 1044484
    %v1043 = vsel %vm1042, %v1041, %v1040
    %v1044 = vrot.slane %v1024, 3
    %vm1045 = vcmask 1045509
    %v1046 = vsel %vm1045, %v1044, %v1043
    %v1047 = vrot.slane %v1025, 2
    %vm1048 = vcmask 1046534
    %v1049 = vsel %vm1048, %v1047, %v1046
    %v1050 = vrot.slane %v1026, 1
    %vm1051 = vcmask 1047559
    %v1052 = vsel %vm1051, %v1050, %v1049
    %v1053 = vrot.slane %v1028, 7
    %v1054 = vsel %vm145, %v1053, %v1027
    %v1055 = vrot.slane %v1029, 6
    %v1056 = vsel %vm149, %v1055, %v1054
    %v1057 = vrot.slane %v1030, 5
    %v1058 = vsel %vm153, %v1057, %v1056
    %v1059 = vrot.slane %v1031, 4
    %v1060 = vsel %vm1042, %v1059, %v1058
    %v1061 = vrot.slane %v1032, 3
    %v1062 = vsel %vm1045, %v1061, %v1060
    %v1063 = vrot.slane %v1033, 2
    %v1064 = vsel %vm1048, %v1063, %v1062
    %v1065 = vrot.slane %v1034, 1
    %v1066 = vsel %vm1051, %v1065, %v1064
    %v1067 = vpack.c.b16 %v1066, %v1052
    %vm1069 = vcmask 130048
    %v1071 = vsel %vm1069, %v986, 0
    %1073 = vmatpush.bf16.msra.mxu0 0
    %1074 = vmatpush.bf16.msra.mxu0 0
    %1075 = vmatpush.bf16.msra.mxu0 0
    %1076 = vmatpush.bf16.msra.mxu0 0
    %1077 = vmatpush.bf16.msra.mxu0 0
    %1078 = vmatpush.bf16.msra.mxu0 0
    %1079 = vmatpush.bf16.msra.mxu0 0
    %1080 = vmatpush.bf16.msra.mxu0 %v1067
    %1081 = vmatmul.bf16.gmra.mxu0 %v1071
    %v1082 = vpop.f32.mrf.mxu0
    %v1083 = vadd.f32 0.0, %v1082
    %v1084 = vpop.f32.mrf.mxu0
    %1085 = vdwg.mxu0
    %v1086 = vld [vmem:[%s4] sm:$0xff]
    %1088 = vset.pattern.permute.xlu0 0
    %1089 = vperm.xlu0 %1088, %v1086
    %v1090 = vpop.permute.xlu0 %1089
    %v1092 = vmul.f32 %v1083, %v1090
    %v1093 = vld [vmem:[%s9] sm:$0xff]
    %v1094 = vld [vmem:[%s9 + $0x8] sm:$0xff]
    %v1095 = vld [vmem:[%s9 + $0x10] sm:$0xff]
    %v1096 = vld [vmem:[%s9 + $0x18] sm:$0xff]
    %v1097 = vld [vmem:[%s9 + $0x20] sm:$0xff]
    %v1098 = vld [vmem:[%s9 + $0x28] sm:$0xff]
    %v1099 = vld [vmem:[%s9 + $0x30] sm:$0xff]
    %v1100 = vld [vmem:[%s9 + $0x38] sm:$0xff]
    %v1102 = vsel %vm96, %v104, 0
    %1104 = vmatpush.msra.mxu0 0.0
    %1105 = vmatpush.msra.mxu0 0.0
    %1106 = vmatpush.msra.mxu0 0.0
    %1107 = vmatpush.msra.mxu0 0.0
    %1108 = vmatpush.msra.mxu0 0.0
    %1109 = vmatpush.msra.mxu0 0.0
    %1110 = vmatpush.msra.mxu0 0.0
    %1111 = vmatpush.msra.mxu0 0.0
    %1112 = vmatpush.msra.mxu0 %v1100
    %1113 = vmatpush.msra.mxu0 %v1099
    %1114 = vmatpush.msra.mxu0 %v1098
    %1115 = vmatpush.msra.mxu0 %v1097
    %1116 = vmatpush.msra.mxu0 %v1096
    %1117 = vmatpush.msra.mxu0 %v1095
    %1118 = vmatpush.msra.mxu0 %v1094
    %1119 = vmatpush.msra.mxu0 %v1093
    %1120 = vmatmul.f32.gmra.mxu0 %v1102
    %v1121 = vpop.f32.mrf.mxu0
    %v1122 = vadd.f32 0.0, %v1121
    %1123 = vdwg.mxu0
    %v1124 = vadd.f32 %v1092, %v1122
    %v1125 = vld [vmem:[%s10] sm:$0x1]
    %v1127 = vperm.slane %v1125, 0
    %v1129 = vadd.f32 %v1124, %v1127
    %vm1130 = vcmp.gt.f32.partialorder %v1129, 0.0
    %v1131 = vmul.f32 %v1129, 0.01
    %v1132 = vsel %vm1130, %v1129, %v1131
    %1133 = vrot.lane.b32.xlu0 %v104, 64
    %v1134 = vpop.permute.xlu0 %1133
    %v1136 = vsel %vm96, %v1132, %v1134
    %v1137 = vld [vmem:[%s11] sm:$0xff]
    %v1138 = vld [vmem:[%s11 + $0x8] sm:$0xff]
    %v1139 = vld [vmem:[%s11 + $0x10] sm:$0xff]
    %v1140 = vld [vmem:[%s11 + $0x18] sm:$0xff]
    %v1141 = vld [vmem:[%s11 + $0x20] sm:$0xff]
    %v1142 = vld [vmem:[%s11 + $0x28] sm:$0xff]
    %v1143 = vld [vmem:[%s11 + $0x30] sm:$0xff]
    %v1144 = vld [vmem:[%s11 + $0x38] sm:$0xff]
    %v1145 = vld [vmem:[%s11 + $0x40] sm:$0xff]
    %v1146 = vld [vmem:[%s11 + $0x48] sm:$0xff]
    %v1147 = vld [vmem:[%s11 + $0x50] sm:$0xff]
    %v1148 = vld [vmem:[%s11 + $0x58] sm:$0xff]
    %v1149 = vld [vmem:[%s11 + $0x60] sm:$0xff]
    %v1150 = vld [vmem:[%s11 + $0x68] sm:$0xff]
    %v1151 = vld [vmem:[%s11 + $0x70] sm:$0xff]
    %v1152 = vld [vmem:[%s11 + $0x78] sm:$0xff]
    %v1153 = vld [vmem:[%s11 + $0x80] sm:$0xff]
    %v1154 = vld [vmem:[%s11 + $0x88] sm:$0xff]
    %v1155 = vld [vmem:[%s11 + $0x90] sm:$0xff]
    %v1156 = vld [vmem:[%s11 + $0x98] sm:$0xff]
    %v1157 = vld [vmem:[%s11 + $0xa0] sm:$0xff]
    %v1158 = vld [vmem:[%s11 + $0xa8] sm:$0xff]
    %v1159 = vld [vmem:[%s11 + $0xb0] sm:$0xff]
    %v1160 = vld [vmem:[%s11 + $0xb8] sm:$0xff]
    %v1161 = vld [vmem:[%s11 + $0xc0] sm:$0xff]
    %v1162 = vld [vmem:[%s11 + $0xc8] sm:$0xff]
    %v1163 = vld [vmem:[%s11 + $0xd0] sm:$0xff]
    %v1164 = vld [vmem:[%s11 + $0xd8] sm:$0xff]
    %v1165 = vld [vmem:[%s11 + $0xe0] sm:$0xff]
    %v1166 = vld [vmem:[%s11 + $0xe8] sm:$0xff]
    %v1167 = vld [vmem:[%s11 + $0xf0] sm:$0xff]
    %v1168 = vld [vmem:[%s11 + $0xf8] sm:$0xff]
    %v1169 = vld [vmem:[%s11 + $0x100] sm:$0xff]
    %v1170 = vld [vmem:[%s11 + $0x108] sm:$0xff]
    %v1171 = vld [vmem:[%s11 + $0x110] sm:$0xff]
    %v1172 = vld [vmem:[%s11 + $0x118] sm:$0xff]
    %v1173 = vld [vmem:[%s11 + $0x120] sm:$0xff]
    %v1174 = vld [vmem:[%s11 + $0x128] sm:$0xff]
    %v1175 = vld [vmem:[%s11 + $0x130] sm:$0xff]
    %v1176 = vld [vmem:[%s11 + $0x138] sm:$0xff]
    %v1177 = vld [vmem:[%s11 + $0x140] sm:$0xff]
    %v1178 = vld [vmem:[%s11 + $0x148] sm:$0xff]
    %v1179 = vld [vmem:[%s11 + $0x150] sm:$0xff]
    %v1180 = vld [vmem:[%s11 + $0x158] sm:$0xff]
    %v1181 = vld [vmem:[%s11 + $0x160] sm:$0xff]
    %v1182 = vld [vmem:[%s11 + $0x168] sm:$0xff]
    %v1183 = vld [vmem:[%s11 + $0x170] sm:$0xff]
    %v1184 = vld [vmem:[%s11 + $0x178] sm:$0xff]
    %v1185 = vld [vmem:[%s12] sm:$0x7]
    %v1187 = vperm.slane %v1185, 0
    %v1188 = vperm.slane %v1185, 1
    %v1189 = vperm.slane %v1185, 2
    %1193 = vmatpush.msra.mxu0 %v1182
    %1194 = vmatpush.msra.mxu0 %v1179
    %1195 = vmatpush.msra.mxu0 %v1176
    %1196 = vmatpush.msra.mxu0 %v1173
    %1197 = vmatpush.msra.mxu0 %v1170
    %1198 = vmatpush.msra.mxu0 %v1167
    %1199 = vmatpush.msra.mxu0 %v1164
    %1200 = vmatpush.msra.mxu0 %v1161
    %1201 = vmatpush.msra.mxu0 %v1158
    %1202 = vmatpush.msra.mxu0 %v1155
    %1203 = vmatpush.msra.mxu0 %v1152
    %1204 = vmatpush.msra.mxu0 %v1149
    %1205 = vmatpush.msra.mxu0 %v1146
    %1206 = vmatpush.msra.mxu0 %v1143
    %1207 = vmatpush.msra.mxu0 %v1140
    %1208 = vmatpush.msra.mxu0 %v1137
    %1209 = vmatmul.f32.gmra.mxu0 %v1136
    %v1210 = vpop.f32.mrf.mxu0
    %v1211 = vadd.f32 %v1187, %v1210
    %1212 = vdwg.mxu0
    %1213 = vmatpush.msra.mxu0 %v1183
    %1214 = vmatpush.msra.mxu0 %v1180
    %1215 = vmatpush.msra.mxu0 %v1177
    %1216 = vmatpush.msra.mxu0 %v1174
    %1217 = vmatpush.msra.mxu0 %v1171
    %1218 = vmatpush.msra.mxu0 %v1168
    %1219 = vmatpush.msra.mxu0 %v1165
    %1220 = vmatpush.msra.mxu0 %v1162
    %1221 = vmatpush.msra.mxu0 %v1159
    %1222 = vmatpush.msra.mxu0 %v1156
    %1223 = vmatpush.msra.mxu0 %v1153
    %1224 = vmatpush.msra.mxu0 %v1150
    %1225 = vmatpush.msra.mxu0 %v1147
    %1226 = vmatpush.msra.mxu0 %v1144
    %1227 = vmatpush.msra.mxu0 %v1141
    %1228 = vmatpush.msra.mxu0 %v1138
    %1229 = vmatmul.f32.gmra.mxu0 %v1136
    %v1230 = vpop.f32.mrf.mxu0
    %v1231 = vadd.f32 %v1188, %v1230
    %1232 = vdwg.mxu0
    %1233 = vmatpush.msra.mxu0 %v1184
    %1234 = vmatpush.msra.mxu0 %v1181
    %1235 = vmatpush.msra.mxu0 %v1178
    %1236 = vmatpush.msra.mxu0 %v1175
    %1237 = vmatpush.msra.mxu0 %v1172
    %1238 = vmatpush.msra.mxu0 %v1169
    %1239 = vmatpush.msra.mxu0 %v1166
    %1240 = vmatpush.msra.mxu0 %v1163
    %1241 = vmatpush.msra.mxu0 %v1160
    %1242 = vmatpush.msra.mxu0 %v1157
    %1243 = vmatpush.msra.mxu0 %v1154
    %1244 = vmatpush.msra.mxu0 %v1151
    %1245 = vmatpush.msra.mxu0 %v1148
    %1246 = vmatpush.msra.mxu0 %v1145
    %1247 = vmatpush.msra.mxu0 %v1142
    %1248 = vmatpush.msra.mxu0 %v1139
    %1249 = vmatmul.f32.gmra.mxu0 %v1136
    %v1250 = vpop.f32.mrf.mxu0
    %v1251 = vadd.f32 %v1189, %v1250
    %1252 = vdwg.mxu0
    %1254 = vrot.lane.b32.xlu0 %v1231, 64
    %v1255 = vpop.permute.xlu0 %1254
    %v1257 = vadd.f32 %v1211, %v1255
    %v1258 = vxor.u32 %v1257, 2147483648
    %v1259 = vmul.f32 %v1258, 1.442695
    %v1260 = vpow.pop %v1259
    %v1261 = vadd.f32 %v1260, 1.0
    %v1262 = vrcp.pop %v1261
    %v1263 = vmul.f32 %v1261, %v1262
    %v1264 = vsub.f32 1.0, %v1263
    %v1265 = vmul.f32 %v1262, %v1264
    %v1266 = vadd.f32 %v1262, %v1265
    %vm1267 = vweird.f32 %v1261
    %vm1268 = vweird.f32 %v1262
    %vm1269 = vmor %vm1267, %vm1268
    %v1270 = vsel %vm1269, %v1262, %v1266
    %v1271 = vand.u32 2147483647, %v1261
    %vm1272 = vcmp.eq.f32.partialorder %v1271, 8.507059e+37
    %v1273 = vand.u32 %v1261, 2147483648
    %v1274 = vor.u32 1.1754944e-38, %v1273
    %v1275 = vsel %vm1272, %v1274, %v1270
    %v1276 = vmul.f32 1.0, %v1275
    %1278 = vrot.lane.b32.xlu0 %v1251, 64
    %v1279 = vpop.permute.xlu0 %1278
    %v1281 = vadd.f32 %v1211, %v1279
    %v1282 = vxor.u32 %v1281, 2147483648
    %v1283 = vmul.f32 %v1282, 1.442695
    %v1284 = vpow.pop %v1283
    %v1285 = vadd.f32 %v1284, 1.0
    %v1286 = vrcp.pop %v1285
    %v1287 = vmul.f32 %v1285, %v1286
    %v1288 = vsub.f32 1.0, %v1287
    %v1289 = vmul.f32 %v1286, %v1288
    %v1290 = vadd.f32 %v1286, %v1289
    %vm1291 = vweird.f32 %v1285
    %vm1292 = vweird.f32 %v1286
    %vm1293 = vmor %vm1291, %vm1292
    %v1294 = vsel %vm1293, %v1286, %v1290
    %v1295 = vand.u32 2147483647, %v1285
    %vm1296 = vcmp.eq.f32.partialorder %v1295, 8.507059e+37
    %v1297 = vand.u32 %v1285, 2147483648
    %v1298 = vor.u32 1.1754944e-38, %v1297
    %v1299 = vsel %vm1296, %v1298, %v1294
    %v1300 = vmul.f32 1.0, %v1299
    %v1301 = vmul.f32 %v1276, %v1279
    %v1302 = vadd.f32 %v1231, %v1301
    %v1303 = vtanh.pop %v1302
    %v1304 = vsub.f32 1.0, %v1300
    %1306 = vrot.lane.b32.xlu0 %v1303, 64
    %v1307 = vpop.permute.xlu0 %1306
    %v1309 = vmul.f32 %v1304, %v1307
    %v1310 = vmul.f32 %v1300, %v1134
    %v1311 = vadd.f32 %v1309, %v1310
    %1313 = vrot.lane.b32.xlu0 %v1311, 64
    %v1314 = vpop.permute.xlu0 %1313
    %1316 = vst.msk [vmem:[#allocation2] sm:$0xff] %vm96, %v1314
  $region74: #{mpnnet_forward.3} parent=0 // loop_footer
    %s103 = sadd.s32 1, %s99
  $region75: #{mpnnet_forward.3} parent=0 // loop_footer_branch
    %98 = sbr.rel target = $region71
  $region76: #{mpnnet_forward.3} parent=0 // loop_exit
    _
  %1317 = vst [vmem:[#allocation3] sm:$0x3] 0.0
  %vm1318 = vcmask 517120
  %1319 = vst.msk [vmem:[#allocation4] sm:$0x3] %vm1318, 0.0
  %1320 = vst.msk [vmem:[#allocation5] sm:$0x3] %vm1318, 0.0
  loop: start=0, step=1, limit=3
  $region77: #{mpnnet_forward.3} parent=0 // loop_pre_header
    _
  $region78: #{mpnnet_forward.3} parent=0 // loop_header
    %s1322 = sphi 0, %s1326
    %p1323 = scmp.ge.s32.totalorder %s1322, 3
  $region79: #{mpnnet_forward.3} parent=0 // loop_header_branch
    %1325 = sbr.rel (%p1323) target = $region83
  $region80: #{mpnnet_forward.3} parent=0 // loop_body
    %v1327 = vld [vmem:[#allocation2] sm:$0xff]
    %v1328 = vld [vmem:[%s5] sm:$0xff]
    %v1329 = vld [vmem:[%s6] sm:$0x3]
    %v1330 = vld [vmem:[#allocation3] sm:$0x3]
    %v1331 = vld [vmem:[#allocation4] sm:$0x3]
    %v1332 = vld [vmem:[%s13] sm:$0xff]
    %v1333 = vld [vmem:[%s13 + $0x8] sm:$0xff]
    %v1334 = vld [vmem:[%s13 + $0x10] sm:$0xff]
    %v1335 = vld [vmem:[%s13 + $0x18] sm:$0xff]
    %v1336 = vld [vmem:[%s13 + $0x20] sm:$0xff]
    %v1337 = vld [vmem:[%s13 + $0x28] sm:$0xff]
    %v1338 = vld [vmem:[%s13 + $0x30] sm:$0xff]
    %v1339 = vld [vmem:[%s13 + $0x38] sm:$0xff]
    %v1340 = vld [vmem:[%s13 + $0x40] sm:$0xff]
    %v1341 = vld [vmem:[%s13 + $0x48] sm:$0xff]
    %v1342 = vld [vmem:[%s13 + $0x50] sm:$0xff]
    %v1343 = vld [vmem:[%s13 + $0x58] sm:$0xff]
    %v1344 = vld [vmem:[%s13 + $0x60] sm:$0xff]
    %v1345 = vld [vmem:[%s13 + $0x68] sm:$0xff]
    %v1346 = vld [vmem:[%s13 + $0x70] sm:$0xff]
    %v1347 = vld [vmem:[%s13 + $0x78] sm:$0xff]
    %v1348 = vld [vmem:[%s13 + $0x80] sm:$0xff]
    %v1349 = vld [vmem:[%s13 + $0x88] sm:$0xff]
    %v1350 = vld [vmem:[%s13 + $0x90] sm:$0xff]
    %v1351 = vld [vmem:[%s13 + $0x98] sm:$0xff]
    %v1352 = vld [vmem:[%s13 + $0xa0] sm:$0xff]
    %v1353 = vld [vmem:[%s13 + $0xa8] sm:$0xff]
    %v1354 = vld [vmem:[%s13 + $0xb0] sm:$0xff]
    %v1355 = vld [vmem:[%s13 + $0xb8] sm:$0xff]
    %v1356 = vld [vmem:[%s13 + $0xc0] sm:$0xff]
    %v1357 = vld [vmem:[%s13 + $0xc8] sm:$0xff]
    %v1358 = vld [vmem:[%s13 + $0xd0] sm:$0xff]
    %v1359 = vld [vmem:[%s13 + $0xd8] sm:$0xff]
    %v1360 = vld [vmem:[%s13 + $0xe0] sm:$0xff]
    %v1361 = vld [vmem:[%s13 + $0xe8] sm:$0xff]
    %v1362 = vld [vmem:[%s13 + $0xf0] sm:$0xff]
    %v1363 = vld [vmem:[%s13 + $0xf8] sm:$0xff]
    %v1364 = vld [vmem:[%s13 + $0x100] sm:$0xff]
    %v1365 = vld [vmem:[%s13 + $0x108] sm:$0xff]
    %v1366 = vld [vmem:[%s13 + $0x110] sm:$0xff]
    %v1367 = vld [vmem:[%s13 + $0x118] sm:$0xff]
    %v1368 = vld [vmem:[%s13 + $0x120] sm:$0xff]
    %v1369 = vld [vmem:[%s13 + $0x128] sm:$0xff]
    %v1370 = vld [vmem:[%s13 + $0x130] sm:$0xff]
    %v1371 = vld [vmem:[%s13 + $0x138] sm:$0xff]
    %v1372 = vld [vmem:[%s13 + $0x140] sm:$0xff]
    %v1373 = vld [vmem:[%s13 + $0x148] sm:$0xff]
    %v1374 = vld [vmem:[%s13 + $0x150] sm:$0xff]
    %v1375 = vld [vmem:[%s13 + $0x158] sm:$0xff]
    %v1376 = vld [vmem:[%s13 + $0x160] sm:$0xff]
    %v1377 = vld [vmem:[%s13 + $0x168] sm:$0xff]
    %v1378 = vld [vmem:[%s13 + $0x170] sm:$0xff]
    %v1379 = vld [vmem:[%s13 + $0x178] sm:$0xff]
    %v1380 = vld [vmem:[%s14] sm:$0x3]
    %v1382 = vperm.slane %v1380, 0
    %v1383 = vperm.slane %v1380, 1
    %v1387 = vsel %vm96, %v1331, 0
    %1389 = vmatpush.msra.mxu0 %v1362
    %1390 = vmatpush.msra.mxu0 %v1360
    %1391 = vmatpush.msra.mxu0 %v1358
    %1392 = vmatpush.msra.mxu0 %v1356
    %1393 = vmatpush.msra.mxu0 %v1354
    %1394 = vmatpush.msra.mxu0 %v1352
    %1395 = vmatpush.msra.mxu0 %v1350
    %1396 = vmatpush.msra.mxu0 %v1348
    %1397 = vmatpush.msra.mxu0 %v1346
    %1398 = vmatpush.msra.mxu0 %v1344
    %1399 = vmatpush.msra.mxu0 %v1342
    %1400 = vmatpush.msra.mxu0 %v1340
    %1401 = vmatpush.msra.mxu0 %v1338
    %1402 = vmatpush.msra.mxu0 %v1336
    %1403 = vmatpush.msra.mxu0 %v1334
    %1404 = vmatpush.msra.mxu0 %v1332
    %1405 = vmatmul.f32.gmra.mxu0 %v1330
    %v1406 = vpop.f32.mrf.mxu0
    %v1407 = vadd.f32 %v1382, %v1406
    %1408 = vdwg.mxu0
    %1409 = vmatpush.msra.mxu0 0.0
    %1410 = vmatpush.msra.mxu0 0.0
    %1411 = vmatpush.msra.mxu0 0.0
    %1412 = vmatpush.msra.mxu0 0.0
    %1413 = vmatpush.msra.mxu0 0.0
    %1414 = vmatpush.msra.mxu0 0.0
    %1415 = vmatpush.msra.mxu0 0.0
    %1416 = vmatpush.msra.mxu0 0.0
    %1417 = vmatpush.msra.mxu0 %v1378
    %1418 = vmatpush.msra.mxu0 %v1376
    %1419 = vmatpush.msra.mxu0 %v1374
    %1420 = vmatpush.msra.mxu0 %v1372
    %1421 = vmatpush.msra.mxu0 %v1370
    %1422 = vmatpush.msra.mxu0 %v1368
    %1423 = vmatpush.msra.mxu0 %v1366
    %1424 = vmatpush.msra.mxu0 %v1364
    %1425 = vmatmul.f32.gmra.mxu0 %v1387
    %v1426 = vpop.f32.mrf.mxu0
    %v1427 = vadd.f32 %v1407, %v1426
    %1428 = vdwg.mxu0
    %1429 = vmatpush.msra.mxu0 %v1363
    %1430 = vmatpush.msra.mxu0 %v1361
    %1431 = vmatpush.msra.mxu0 %v1359
    %1432 = vmatpush.msra.mxu0 %v1357
    %1433 = vmatpush.msra.mxu0 %v1355
    %1434 = vmatpush.msra.mxu0 %v1353
    %1435 = vmatpush.msra.mxu0 %v1351
    %1436 = vmatpush.msra.mxu0 %v1349
    %1437 = vmatpush.msra.mxu0 %v1347
    %1438 = vmatpush.msra.mxu0 %v1345
    %1439 = vmatpush.msra.mxu0 %v1343
    %1440 = vmatpush.msra.mxu0 %v1341
    %1441 = vmatpush.msra.mxu0 %v1339
    %1442 = vmatpush.msra.mxu0 %v1337
    %1443 = vmatpush.msra.mxu0 %v1335
    %1444 = vmatpush.msra.mxu0 %v1333
    %1445 = vmatmul.f32.gmra.mxu0 %v1330
    %v1446 = vpop.f32.mrf.mxu0
    %v1447 = vadd.f32 %v1383, %v1446
    %1448 = vdwg.mxu0
    %1449 = vmatpush.msra.mxu0 0.0
    %1450 = vmatpush.msra.mxu0 0.0
    %1451 = vmatpush.msra.mxu0 0.0
    %1452 = vmatpush.msra.mxu0 0.0
    %1453 = vmatpush.msra.mxu0 0.0
    %1454 = vmatpush.msra.mxu0 0.0
    %1455 = vmatpush.msra.mxu0 0.0
    %1456 = vmatpush.msra.mxu0 0.0
    %1457 = vmatpush.msra.mxu0 %v1379
    %1458 = vmatpush.msra.mxu0 %v1377
    %1459 = vmatpush.msra.mxu0 %v1375
    %1460 = vmatpush.msra.mxu0 %v1373
    %1461 = vmatpush.msra.mxu0 %v1371
    %1462 = vmatpush.msra.mxu0 %v1369
    %1463 = vmatpush.msra.mxu0 %v1367
    %1464 = vmatpush.msra.mxu0 %v1365
    %1465 = vmatmul.f32.gmra.mxu0 %v1387
    %v1466 = vpop.f32.mrf.mxu0
    %v1467 = vadd.f32 %v1447, %v1466
    %1468 = vdwg.mxu0
    %v1469 = vxor.u32 %v1427, 2147483648
    %v1470 = vmul.f32 %v1469, 1.442695
    %v1471 = vpow.pop %v1470
    %v1472 = vadd.f32 %v1471, 1.0
    %v1473 = vrcp.pop %v1472
    %v1474 = vmul.f32 %v1472, %v1473
    %v1475 = vsub.f32 1.0, %v1474
    %v1476 = vmul.f32 %v1473, %v1475
    %v1477 = vadd.f32 %v1473, %v1476
    %vm1478 = vweird.f32 %v1472
    %vm1479 = vweird.f32 %v1473
    %vm1480 = vmor %vm1478, %vm1479
    %v1481 = vsel %vm1480, %v1473, %v1477
    %v1482 = vand.u32 2147483647, %v1472
    %vm1483 = vcmp.eq.f32.partialorder %v1482, 8.507059e+37
    %v1484 = vand.u32 %v1472, 2147483648
    %v1485 = vor.u32 1.1754944e-38, %v1484
    %v1486 = vsel %vm1483, %v1485, %v1481
    %v1487 = vmul.f32 1.0, %v1486
    %v1488 = vtanh.pop %v1467
    %v1489 = vxor.u32 %v1467, 2147483648
    %v1490 = vmul.f32 %v1489, 1.442695
    %v1491 = vpow.pop %v1490
    %v1492 = vadd.f32 %v1491, 1.0
    %v1493 = vrcp.pop %v1492
    %v1494 = vmul.f32 %v1492, %v1493
    %v1495 = vsub.f32 1.0, %v1494
    %v1496 = vmul.f32 %v1493, %v1495
    %v1497 = vadd.f32 %v1493, %v1496
    %vm1498 = vweird.f32 %v1492
    %vm1499 = vweird.f32 %v1493
    %vm1500 = vmor %vm1498, %vm1499
    %v1501 = vsel %vm1500, %v1493, %v1497
    %v1502 = vand.u32 2147483647, %v1492
    %vm1503 = vcmp.eq.f32.partialorder %v1502, 8.507059e+37
    %v1504 = vand.u32 %v1492, 2147483648
    %v1505 = vor.u32 1.1754944e-38, %v1504
    %v1506 = vsel %vm1503, %v1505, %v1501
    %v1507 = vmul.f32 1.0, %v1506
    %v1508 = vld [vmem:[#allocation5] sm:$0x3]
    %1510 = vrot.lane.b32.xlu0 %v1508, 64
    %v1511 = vpop.permute.xlu0 %1510
    %v1513 = vmul.f32 %v1487, %v1511
    %v1514 = vmul.f32 %v1487, %v1488
    %1516 = vrot.lane.b32.xlu0 %v1514, 64
    %v1517 = vpop.permute.xlu0 %1516
    %v1519 = vadd.f32 %v1513, %v1517
    %v1520 = vtanh.pop %v1519
    %v1521 = vmul.f32 %v1507, %v1520
    %1523 = vrot.lane.b32.xlu0 %v1521, 64
    %v1524 = vpop.permute.xlu0 %1523
    %1526 = vst.msk [vmem:[#allocation4] sm:$0x3] %vm1318, %v1524
    %1528 = vrot.lane.b32.xlu0 %v1519, 64
    %v1529 = vpop.permute.xlu0 %1528
    %1531 = vst.msk [vmem:[#allocation5] sm:$0x3] %vm1318, %v1529
    %vm1532 = vcmask 15360
    %v1534 = vsel %vm1532, %v1328, 0
    %vm1536 = vcmask 1041408
    %v1537 = vsel %vm1536, %v1524, 0
    %1539 = vmatpush.msra.mxu0 0.0
    %1540 = vmatpush.msra.mxu0 0.0
    %1541 = vmatpush.msra.mxu0 0.0
    %1542 = vmatpush.msra.mxu0 0.0
    %1543 = vmatpush.msra.mxu0 0.0
    %1544 = vmatpush.msra.mxu0 0.0
    %1545 = vmatpush.msra.mxu0 0.0
    %1546 = vmatpush.msra.mxu0 0.0
    %1547 = vmatpush.msra.mxu0 0.0
    %1548 = vmatpush.msra.mxu0 0.0
    %1549 = vmatpush.msra.mxu0 0.0
    %1550 = vmatpush.msra.mxu0 0.0
    %1551 = vmatpush.msra.mxu0 0.0
    %1552 = vmatpush.msra.mxu0 0.0
    %1553 = vmatpush.msra.mxu0 0.0
    %1554 = vmatpush.msra.mxu0 %v1537
    %1555 = vmatmul.f32.gmra.mxu0 %v1534
    %v1556 = vpop.f32.mrf.mxu0
    %v1557 = vadd.f32 0.0, %v1556
    %1558 = vdwg.mxu0
    %v1559 = vmul.f32 %v1327, %v1557
    %v1560 = vsel %vm96, %v1559, 0.0
    %1561 = vadd.xlane.f32.xlu0 %v1560
    %v1562 = vpop.xlane.xlu0 %1561
    %vm1563 = vcmp.gt.f32.partialorder %v1328, 0.0
    %v1564 = vsel %vm1563, %v1562, -1e+30
    %v1565 = vsel %vm1532, %v1564, -inf
    %v1566 = vrot.slane %v1565, 4
    %v1567 = vmax.f32 %v1565, %v1566
    %v1568 = vrot.slane %v1567, 2
    %v1569 = vmax.f32 %v1567, %v1568
    %v1570 = vrot.slane %v1569, 1
    %v1571 = vmax.f32 %v1569, %v1570
    %v1572 = vmul.f32 %v1328, %v1571
    %v1573 = vsel %vm1532, %v1572, 0.0
    %1574 = vadd.xlane.f32.xlu0 %v1573
    %v1575 = vpop.xlane.xlu0 %1574
    %v1576 = vsub.f32 %v1562, %v1575
    %v1577 = vmul.f32 %v1576, 1.442695
    %v1578 = vpow.pop %v1577
    %v1579 = vmul.f32 %v1578, %v1327
    %vm1580 = vcmask 64512
    %v1582 = vsel %vm1580, %v1329, 0
    %1584 = vmatpush.msra.mxu0 0.0
    %1585 = vmatpush.msra.mxu0 0.0
    %1586 = vmatpush.msra.mxu0 0.0
    %1587 = vmatpush.msra.mxu0 0.0
    %1588 = vmatpush.msra.mxu0 0.0
    %1589 = vmatpush.msra.mxu0 0.0
    %1590 = vmatpush.msra.mxu0 0.0
    %1591 = vmatpush.msra.mxu0 0.0
    %1592 = vmatpush.msra.mxu0 0.0
    %1593 = vmatpush.msra.mxu0 0.0
    %1594 = vmatpush.msra.mxu0 0.0
    %1595 = vmatpush.msra.mxu0 0.0
    %1596 = vmatpush.msra.mxu0 0.0
    %1597 = vmatpush.msra.mxu0 0.0
    %1598 = vmatpush.msra.mxu0 0.0
    %1599 = vmatpush.msra.mxu0 %v1579
    %1600 = vmatmul.f32.gmra.mxu0 %v1582
    %v1601 = vpop.f32.mrf.mxu0
    %v1602 = vadd.f32 0.0, %v1601
    %1603 = vdwg.mxu0
    %1604 = vmatpush.msra.mxu0 0.0
    %1605 = vmatpush.msra.mxu0 0.0
    %1606 = vmatpush.msra.mxu0 0.0
    %1607 = vmatpush.msra.mxu0 0.0
    %1608 = vmatpush.msra.mxu0 0.0
    %1609 = vmatpush.msra.mxu0 0.0
    %1610 = vmatpush.msra.mxu0 0.0
    %1611 = vmatpush.msra.mxu0 0.0
    %1612 = vmatpush.msra.mxu0 0.0
    %1613 = vmatpush.msra.mxu0 0.0
    %1614 = vmatpush.msra.mxu0 0.0
    %1615 = vmatpush.msra.mxu0 0.0
    %1616 = vmatpush.msra.mxu0 0.0
    %1617 = vmatpush.msra.mxu0 0.0
    %1618 = vmatpush.msra.mxu0 0.0
    %1619 = vmatpush.msra.mxu0 %v1578
    %1620 = vmatmul.f32.gmra.mxu0 %v1582
    %v1621 = vpop.f32.mrf.mxu0
    %v1622 = vadd.f32 0.0, %v1621
    %1623 = vdwg.mxu0
    %v1624 = vmax.f32 %v1622, 1e-20
    %1626 = vset.pattern.permute.xlu0 0
    %1627 = vperm.xlu0 %1626, %v1624
    %v1628 = vpop.permute.xlu0 %1627
    %v1630 = vrcp.pop %v1628
    %v1631 = vmul.f32 %v1628, %v1630
    %v1632 = vsub.f32 1.0, %v1631
    %v1633 = vmul.f32 %v1630, %v1632
    %v1634 = vadd.f32 %v1630, %v1633
    %vm1635 = vweird.f32 %v1628
    %vm1636 = vweird.f32 %v1630
    %vm1637 = vmor %vm1635, %vm1636
    %v1638 = vsel %vm1637, %v1630, %v1634
    %v1639 = vand.u32 2147483647, %v1628
    %vm1640 = vcmp.eq.f32.partialorder %v1639, 8.507059e+37
    %v1641 = vand.u32 %v1628, 2147483648
    %v1642 = vor.u32 1.1754944e-38, %v1641
    %v1643 = vsel %vm1640, %v1642, %v1638
    %v1644 = vmul.f32 %v1602, %v1643
    %1646 = vrot.lane.b32.xlu0 %v1644, 64
    %v1647 = vpop.permute.xlu0 %1646
    %v1649 = vsel %vm96, %v1524, %v1647
    %1650 = vst [vmem:[#allocation3] sm:$0x3] %v1649
  $region81: #{mpnnet_forward.3} parent=0 // loop_footer
    %s1326 = sadd.s32 1, %s1322
  $region82: #{mpnnet_forward.3} parent=0 // loop_footer_branch
    %1321 = sbr.rel target = $region78
  $region83: #{mpnnet_forward.3} parent=0 // loop_exit
    _
  %v1651 = vld [vmem:[#allocation3] sm:$0x3]
  %v1652 = vld [vmem:[%s15] sm:$0xff]
  %v1653 = vld [vmem:[%s15 + $0x8] sm:$0xff]
  %v1654 = vld [vmem:[%s15 + $0x10] sm:$0xff]
  %v1655 = vld [vmem:[%s15 + $0x18] sm:$0xff]
  %v1656 = vld [vmem:[%s15 + $0x20] sm:$0xff]
  %v1657 = vld [vmem:[%s15 + $0x28] sm:$0xff]
  %v1658 = vld [vmem:[%s15 + $0x30] sm:$0xff]
  %v1659 = vld [vmem:[%s15 + $0x38] sm:$0xff]
  %v1660 = vld [vmem:[%s15 + $0x40] sm:$0xff]
  %v1661 = vld [vmem:[%s15 + $0x48] sm:$0xff]
  %v1662 = vld [vmem:[%s15 + $0x50] sm:$0xff]
  %v1663 = vld [vmem:[%s15 + $0x58] sm:$0xff]
  %v1664 = vld [vmem:[%s15 + $0x60] sm:$0xff]
  %v1665 = vld [vmem:[%s15 + $0x68] sm:$0xff]
  %v1666 = vld [vmem:[%s15 + $0x70] sm:$0xff]
  %v1667 = vld [vmem:[%s15 + $0x78] sm:$0xff]
  %v1668 = vld [vmem:[%s16] sm:$0x1]
  %v1670 = vperm.slane %v1668, 0
  %1672 = vmatpush.msra.mxu0 %v1667
  %1673 = vmatpush.msra.mxu0 %v1666
  %1674 = vmatpush.msra.mxu0 %v1665
  %1675 = vmatpush.msra.mxu0 %v1664
  %1676 = vmatpush.msra.mxu0 %v1663
  %1677 = vmatpush.msra.mxu0 %v1662
  %1678 = vmatpush.msra.mxu0 %v1661
  %1679 = vmatpush.msra.mxu0 %v1660
  %1680 = vmatpush.msra.mxu0 %v1659
  %1681 = vmatpush.msra.mxu0 %v1658
  %1682 = vmatpush.msra.mxu0 %v1657
  %1683 = vmatpush.msra.mxu0 %v1656
  %1684 = vmatpush.msra.mxu0 %v1655
  %1685 = vmatpush.msra.mxu0 %v1654
  %1686 = vmatpush.msra.mxu0 %v1653
  %1687 = vmatpush.msra.mxu0 %v1652
  %1688 = vmatmul.f32.gmra.mxu0 %v1651
  %v1689 = vpop.f32.mrf.mxu0
  %v1690 = vadd.f32 %v1670, %v1689
  %1691 = vdwg.mxu0
  %1692 = vst [vmem:[%s17] sm:$0x3] %v1690
  // Predicated region
  $region84: #{mpnnet_forward.3} parent=0 // pred_check
    _
  $region85: #{mpnnet_forward.3} parent=0 // pred_check_branch
    %1694 = sbr.rel (0) target = $region87
  $region86: #{mpnnet_forward.3} parent=0 // pred_region
    _
  $region87: #{mpnnet_forward.3} parent=0 // pred_fallthru
    _
  // Predicated region
  $region88: #{mpnnet_forward.3} parent=0 // pred_check
    _
  $region89: #{mpnnet_forward.3} parent=0 // pred_check_branch
    %1696 = sbr.rel (0) target = $region91
  $region90: #{mpnnet_forward.3} parent=0 // pred_region
    _
  $region91: #{mpnnet_forward.3} parent=0 // pred_fallthru
    _

</llo_original>
